<compile_context>
chip_gen: v5e
topology: v5e:2x2
jax: 0.10.0
libtpu: 0.0.40
codegen_flags: <defaults>
</compile_context>

<pallas_src>
import functools

import jax
import jax.numpy as jnp
from jax.experimental import pallas as pl
from jax.experimental.pallas import tpu as pltpu

_EPS = 1e-5


def _shift_lanes(x, s):
    """shifted[:, p] = x[:, (p + s) % L]  (static circular lane shift)."""
    if s == 0:
        return x
    L = x.shape[-1]
    s = s % L
    return jnp.concatenate([x[:, s:], x[:, :s]], axis=-1)


def _conv3x3_mxu(x_flat, w_ref, shifts):
    """x_flat: (Cin, L) f32; w_ref: (9, Cout, Cin) VMEM ref -> (Cout, L)."""
    acc = None
    for k, s in enumerate(shifts):
        xs = _shift_lanes(x_flat, s)                       # (Cin, L)
        term = jnp.dot(w_ref[k], xs,                       # MXU matmul
                       preferred_element_type=jnp.float32)  # (Cout, L)
        acc = term if acc is None else acc + term
    return acc


def _bn_train(acc, mask, g, b, inv_count):
    """Training-mode BN over the masked (valid) lanes, per channel (sublane)."""
    s1 = jnp.sum(acc * mask, axis=-1, keepdims=True) * inv_count          # mean
    s2 = jnp.sum((acc * acc) * mask, axis=-1, keepdims=True) * inv_count  # E[x^2]
    var = s2 - s1 * s1                                                     # biased
    scale = g * jax.lax.rsqrt(var + _EPS)
    return (acc - s1) * scale + b


def _residual_block_kernel(x_ref, w1_ref, w2_ref, g1_ref, b1_ref, g2_ref,
                           b2_ref, mask_ref, o_ref, *, shifts, inv_count):
    x = x_ref[...]        # (C, L)  zero-padded-image data, flattened on lanes
    mask = mask_ref[...]  # (1, L)  1.0 at valid (non-pad) positions

    # ---- conv1 -> BN1 -> ReLU (masked so pad positions stay exactly zero) ---
    acc1 = _conv3x3_mxu(x, w1_ref, shifts)
    y1 = _bn_train(acc1, mask, g1_ref[...], b1_ref[...], inv_count)
    y1 = jnp.maximum(y1, 0.0) * mask

    # ---- conv2 -> BN2 -> + residual -> ReLU ---------------------------------
    acc2 = _conv3x3_mxu(y1, w2_ref, shifts)
    y2 = _bn_train(acc2, mask, g2_ref[...], b2_ref[...], inv_count)
    o_ref[...] = jnp.maximum(y2 + x, 0.0)   # single full-width lane-dense store


def residual_block(x_nchw, w1, w2, g1, b1, g2, b2):
    """x_nchw: (N, C, H, W); w1/w2: (C, C, 3, 3); g*/b*: (C,)."""
    N, Cin, H, W = x_nchw.shape
    Cout = w1.shape[0]
    assert Cin == Cout, "ResidualBlock with downsample=None needs Cin == Cout"
    Hp, Wp = H + 2, W + 2
    P0 = N * Hp * Wp
    L = ((P0 + 127) // 128) * 128          # lane-dense (multiple of 128)

    x = x_nchw.astype(jnp.float32)
    # (N,C,H,W) -> (C,N,Hp,Wp) zero-padded -> (C, L) flattened, zero tail.
    xp = jnp.pad(jnp.transpose(x, (1, 0, 2, 3)), ((0, 0), (0, 0), (1, 1), (1, 1)))
    xflat = jnp.pad(xp.reshape(Cin, P0), ((0, 0), (0, L - P0)))

    # Weights (Cout,Cin,3,3) -> (9, Cout, Cin), k = ky*3 + kx, kept in VMEM.
    def prep_w(w):
        w = w.astype(jnp.float32)
        return jnp.transpose(w, (2, 3, 0, 1)).reshape(9, w.shape[0], w.shape[1])

    w1m, w2m = prep_w(w1), prep_w(w2)

    # Mask of valid (non-pad) flattened positions.
    valid = jnp.pad(jnp.ones((N, H, W), jnp.float32), ((0, 0), (1, 1), (1, 1)))
    mask = jnp.pad(valid.reshape(1, P0), ((0, 0), (0, L - P0)))

    shifts = tuple((ky - 1) * Wp + (kx - 1)
                   for ky in range(3) for kx in range(3))
    inv_count = 1.0 / float(N * H * W)

    col = lambda v: v.astype(jnp.float32).reshape(-1, 1)   # (C,1) for lane bcast
    vmem = pl.BlockSpec(memory_space=pltpu.MemorySpace.VMEM)

    kernel = functools.partial(_residual_block_kernel,
                               shifts=shifts, inv_count=inv_count)
    out_flat = pl.pallas_call(
        kernel,
        out_shape=jax.ShapeDtypeStruct((Cout, L), jnp.float32),
        in_specs=[vmem] * 8,
        out_specs=vmem,
    )(xflat, w1m, w2m, col(g1), col(b1), col(g2), col(b2), mask)

    out = out_flat[:, :P0].reshape(Cout, N, Hp, Wp)[:, :, 1:H + 1, 1:W + 1]
    return jnp.transpose(out, (1, 0, 2, 3))


# ---------------- pure-JAX reference (same semantics, NCHW) ----------------
def _reference(x, w1, w2, g1, b1, g2, b2):
    def conv(inp, w):
        return jax.lax.conv_general_dilated(
            inp, w, window_strides=(1, 1), padding=((1, 1), (1, 1)),
            dimension_numbers=("NCHW", "OIHW", "NCHW"))

    def bn_train(inp, g, b):
        mu = jnp.mean(inp, axis=(0, 2, 3), keepdims=True)
        var = jnp.mean((inp - mu) ** 2, axis=(0, 2, 3), keepdims=True)
        return ((inp - mu) * jax.lax.rsqrt(var + _EPS)
                * g.reshape(1, -1, 1, 1) + b.reshape(1, -1, 1, 1))

    out = jax.nn.relu(bn_train(conv(x, w1), g1, b1))
    out = bn_train(conv(out, w2), g2, b2)
    return jax.nn.relu(out + x)


if __name__ == "__main__":
    N, C, H, W = 2, 4, 16, 16

    key = jax.random.PRNGKey(0)
    kx, k1, k2, k3, k4, k5, k6 = jax.random.split(key, 7)

    x = jax.random.normal(kx, (N, C, H, W), dtype=jnp.float32)
    w1 = 0.2 * jax.random.normal(k1, (C, C, 3, 3), dtype=jnp.float32)
    w2 = 0.2 * jax.random.normal(k2, (C, C, 3, 3), dtype=jnp.float32)
    g1 = 1.0 + 0.1 * jax.random.normal(k3, (C,), dtype=jnp.float32)
    b1 = 0.1 * jax.random.normal(k4, (C,), dtype=jnp.float32)
    g2 = 1.0 + 0.1 * jax.random.normal(k5, (C,), dtype=jnp.float32)
    b2 = 0.1 * jax.random.normal(k6, (C,), dtype=jnp.float32)

    out = jax.block_until_ready(residual_block(x, w1, w2, g1, b1, g2, b2))
    ref = jax.block_until_ready(_reference(x, w1, w2, g1, b1, g2, b2))

    assert out.shape == ref.shape and out.dtype == ref.dtype
    # Tolerance accommodates MXU f32 pass decomposition vs XLA's conv path.
    assert jnp.allclose(out, ref, atol=1e-2, rtol=1e-2), (
        float(jnp.max(jnp.abs(out - ref))))

    print("KERNEL_OK")
</pallas_src>

<mosaic_0001>
module attributes {stable_mosaic.version = 11 : i64} {
  func.func @_residual_block_kernel(%arg0: memref<4x768xf32, #tpu.memory_space<vmem>>, %arg1: memref<9x4x4xf32, #tpu.memory_space<vmem>>, %arg2: memref<9x4x4xf32, #tpu.memory_space<vmem>>, %arg3: memref<4x1xf32, #tpu.memory_space<vmem>>, %arg4: memref<4x1xf32, #tpu.memory_space<vmem>>, %arg5: memref<4x1xf32, #tpu.memory_space<vmem>>, %arg6: memref<4x1xf32, #tpu.memory_space<vmem>>, %arg7: memref<1x768xf32, #tpu.memory_space<vmem>>, %arg8: memref<4x768xf32, #tpu.memory_space<vmem>>) attributes {dimension_semantics = [], scalar_prefetch = 0 : i64, scratch_operands = 0 : i64, tpu.core_type = #tpu.core_type<tc>} {
    %c0 = arith.constant 0 : index
    %c0_0 = arith.constant 0 : index
    %0 = vector.load %arg0[%c0, %c0_0] : memref<4x768xf32, #tpu.memory_space<vmem>>, vector<4x768xf32>
    %c0_1 = arith.constant 0 : index
    %c0_2 = arith.constant 0 : index
    %1 = vector.load %arg7[%c0_1, %c0_2] : memref<1x768xf32, #tpu.memory_space<vmem>>, vector<1x768xf32>
    %2 = vector.extract_strided_slice %0 {offsets = [0, 749], sizes = [4, 19], strides = [1, 1]} : vector<4x768xf32> to vector<4x19xf32>
    %3 = vector.extract_strided_slice %0 {offsets = [0, 0], sizes = [4, 749], strides = [1, 1]} : vector<4x768xf32> to vector<4x749xf32>
    %4 = tpu.concatenate %2, %3 in 1 : vector<4x19xf32>, vector<4x749xf32> -> vector<4x768xf32>
    %c0_3 = arith.constant 0 : index
    %c0_4 = arith.constant 0 : index
    %c0_5 = arith.constant 0 : index
    %5 = vector.load %arg1[%c0_3, %c0_4, %c0_5] : memref<9x4x4xf32, #tpu.memory_space<vmem>>, vector<1x4x4xf32>
    %6 = vector.shape_cast %5 : vector<1x4x4xf32> to vector<4x4xf32>
    %cst = arith.constant dense<0.000000e+00> : vector<4x768xf32>
    %7 = tpu.matmul %6, %4, %cst {dimension_numbers = #tpu.dot_dimension_numbers<[1], [0], [0], [1], [0, 0, 1, 1], [], []>} : vector<4x4xf32>, vector<4x768xf32>, vector<4x768xf32> -> vector<4x768xf32>
    %8 = vector.extract_strided_slice %0 {offsets = [0, 750], sizes = [4, 18], strides = [1, 1]} : vector<4x768xf32> to vector<4x18xf32>
    %9 = vector.extract_strided_slice %0 {offsets = [0, 0], sizes = [4, 750], strides = [1, 1]} : vector<4x768xf32> to vector<4x750xf32>
    %10 = tpu.concatenate %8, %9 in 1 : vector<4x18xf32>, vector<4x750xf32> -> vector<4x768xf32>
    %c1 = arith.constant 1 : index
    %c0_6 = arith.constant 0 : index
    %c0_7 = arith.constant 0 : index
    %11 = vector.load %arg1[%c1, %c0_6, %c0_7] : memref<9x4x4xf32, #tpu.memory_space<vmem>>, vector<1x4x4xf32>
    %12 = vector.shape_cast %11 : vector<1x4x4xf32> to vector<4x4xf32>
    %cst_8 = arith.constant dense<0.000000e+00> : vector<4x768xf32>
    %13 = tpu.matmul %12, %10, %cst_8 {dimension_numbers = #tpu.dot_dimension_numbers<[1], [0], [0], [1], [0, 0, 1, 1], [], []>} : vector<4x4xf32>, vector<4x768xf32>, vector<4x768xf32> -> vector<4x768xf32>
    %14 = arith.addf %7, %13 : vector<4x768xf32>
    %15 = vector.extract_strided_slice %0 {offsets = [0, 751], sizes = [4, 17], strides = [1, 1]} : vector<4x768xf32> to vector<4x17xf32>
    %16 = vector.extract_strided_slice %0 {offsets = [0, 0], sizes = [4, 751], strides = [1, 1]} : vector<4x768xf32> to vector<4x751xf32>
    %17 = tpu.concatenate %15, %16 in 1 : vector<4x17xf32>, vector<4x751xf32> -> vector<4x768xf32>
    %c2 = arith.constant 2 : index
    %c0_9 = arith.constant 0 : index
    %c0_10 = arith.constant 0 : index
    %18 = vector.load %arg1[%c2, %c0_9, %c0_10] : memref<9x4x4xf32, #tpu.memory_space<vmem>>, vector<1x4x4xf32>
    %19 = vector.shape_cast %18 : vector<1x4x4xf32> to vector<4x4xf32>
    %cst_11 = arith.constant dense<0.000000e+00> : vector<4x768xf32>
    %20 = tpu.matmul %19, %17, %cst_11 {dimension_numbers = #tpu.dot_dimension_numbers<[1], [0], [0], [1], [0, 0, 1, 1], [], []>} : vector<4x4xf32>, vector<4x768xf32>, vector<4x768xf32> -> vector<4x768xf32>
    %21 = arith.addf %14, %20 : vector<4x768xf32>
    %22 = vector.extract_strided_slice %0 {offsets = [0, 767], sizes = [4, 1], strides = [1, 1]} : vector<4x768xf32> to vector<4x1xf32>
    %23 = vector.extract_strided_slice %0 {offsets = [0, 0], sizes = [4, 767], strides = [1, 1]} : vector<4x768xf32> to vector<4x767xf32>
    %24 = tpu.concatenate %22, %23 in 1 : vector<4x1xf32>, vector<4x767xf32> -> vector<4x768xf32>
    %c3 = arith.constant 3 : index
    %c0_12 = arith.constant 0 : index
    %c0_13 = arith.constant 0 : index
    %25 = vector.load %arg1[%c3, %c0_12, %c0_13] : memref<9x4x4xf32, #tpu.memory_space<vmem>>, vector<1x4x4xf32>
    %26 = vector.shape_cast %25 : vector<1x4x4xf32> to vector<4x4xf32>
    %cst_14 = arith.constant dense<0.000000e+00> : vector<4x768xf32>
    %27 = tpu.matmul %26, %24, %cst_14 {dimension_numbers = #tpu.dot_dimension_numbers<[1], [0], [0], [1], [0, 0, 1, 1], [], []>} : vector<4x4xf32>, vector<4x768xf32>, vector<4x768xf32> -> vector<4x768xf32>
    %28 = arith.addf %21, %27 : vector<4x768xf32>
    %c4 = arith.constant 4 : index
    %c0_15 = arith.constant 0 : index
    %c0_16 = arith.constant 0 : index
    %29 = vector.load %arg1[%c4, %c0_15, %c0_16] : memref<9x4x4xf32, #tpu.memory_space<vmem>>, vector<1x4x4xf32>
    %30 = vector.shape_cast %29 : vector<1x4x4xf32> to vector<4x4xf32>
    %cst_17 = arith.constant dense<0.000000e+00> : vector<4x768xf32>
    %31 = tpu.matmul %30, %0, %cst_17 {dimension_numbers = #tpu.dot_dimension_numbers<[1], [0], [0], [1], [0, 0, 1, 1], [], []>} : vector<4x4xf32>, vector<4x768xf32>, vector<4x768xf32> -> vector<4x768xf32>
    %32 = arith.addf %28, %31 : vector<4x768xf32>
    %33 = vector.extract_strided_slice %0 {offsets = [0, 1], sizes = [4, 767], strides = [1, 1]} : vector<4x768xf32> to vector<4x767xf32>
    %34 = vector.extract_strided_slice %0 {offsets = [0, 0], sizes = [4, 1], strides = [1, 1]} : vector<4x768xf32> to vector<4x1xf32>
    %35 = tpu.concatenate %33, %34 in 1 : vector<4x767xf32>, vector<4x1xf32> -> vector<4x768xf32>
    %c5 = arith.constant 5 : index
    %c0_18 = arith.constant 0 : index
    %c0_19 = arith.constant 0 : index
    %36 = vector.load %arg1[%c5, %c0_18, %c0_19] : memref<9x4x4xf32, #tpu.memory_space<vmem>>, vector<1x4x4xf32>
    %37 = vector.shape_cast %36 : vector<1x4x4xf32> to vector<4x4xf32>
    %cst_20 = arith.constant dense<0.000000e+00> : vector<4x768xf32>
    %38 = tpu.matmul %37, %35, %cst_20 {dimension_numbers = #tpu.dot_dimension_numbers<[1], [0], [0], [1], [0, 0, 1, 1], [], []>} : vector<4x4xf32>, vector<4x768xf32>, vector<4x768xf32> -> vector<4x768xf32>
    %39 = arith.addf %32, %38 : vector<4x768xf32>
    %40 = vector.extract_strided_slice %0 {offsets = [0, 17], sizes = [4, 751], strides = [1, 1]} : vector<4x768xf32> to vector<4x751xf32>
    %41 = vector.extract_strided_slice %0 {offsets = [0, 0], sizes = [4, 17], strides = [1, 1]} : vector<4x768xf32> to vector<4x17xf32>
    %42 = tpu.concatenate %40, %41 in 1 : vector<4x751xf32>, vector<4x17xf32> -> vector<4x768xf32>
    %c6 = arith.constant 6 : index
    %c0_21 = arith.constant 0 : index
    %c0_22 = arith.constant 0 : index
    %43 = vector.load %arg1[%c6, %c0_21, %c0_22] : memref<9x4x4xf32, #tpu.memory_space<vmem>>, vector<1x4x4xf32>
    %44 = vector.shape_cast %43 : vector<1x4x4xf32> to vector<4x4xf32>
    %cst_23 = arith.constant dense<0.000000e+00> : vector<4x768xf32>
    %45 = tpu.matmul %44, %42, %cst_23 {dimension_numbers = #tpu.dot_dimension_numbers<[1], [0], [0], [1], [0, 0, 1, 1], [], []>} : vector<4x4xf32>, vector<4x768xf32>, vector<4x768xf32> -> vector<4x768xf32>
    %46 = arith.addf %39, %45 : vector<4x768xf32>
    %47 = vector.extract_strided_slice %0 {offsets = [0, 18], sizes = [4, 750], strides = [1, 1]} : vector<4x768xf32> to vector<4x750xf32>
    %48 = vector.extract_strided_slice %0 {offsets = [0, 0], sizes = [4, 18], strides = [1, 1]} : vector<4x768xf32> to vector<4x18xf32>
    %49 = tpu.concatenate %47, %48 in 1 : vector<4x750xf32>, vector<4x18xf32> -> vector<4x768xf32>
    %c7 = arith.constant 7 : index
    %c0_24 = arith.constant 0 : index
    %c0_25 = arith.constant 0 : index
    %50 = vector.load %arg1[%c7, %c0_24, %c0_25] : memref<9x4x4xf32, #tpu.memory_space<vmem>>, vector<1x4x4xf32>
    %51 = vector.shape_cast %50 : vector<1x4x4xf32> to vector<4x4xf32>
    %cst_26 = arith.constant dense<0.000000e+00> : vector<4x768xf32>
    %52 = tpu.matmul %51, %49, %cst_26 {dimension_numbers = #tpu.dot_dimension_numbers<[1], [0], [0], [1], [0, 0, 1, 1], [], []>} : vector<4x4xf32>, vector<4x768xf32>, vector<4x768xf32> -> vector<4x768xf32>
    %53 = arith.addf %46, %52 : vector<4x768xf32>
    %54 = vector.extract_strided_slice %0 {offsets = [0, 19], sizes = [4, 749], strides = [1, 1]} : vector<4x768xf32> to vector<4x749xf32>
    %55 = vector.extract_strided_slice %0 {offsets = [0, 0], sizes = [4, 19], strides = [1, 1]} : vector<4x768xf32> to vector<4x19xf32>
    %56 = tpu.concatenate %54, %55 in 1 : vector<4x749xf32>, vector<4x19xf32> -> vector<4x768xf32>
    %c8 = arith.constant 8 : index
    %c0_27 = arith.constant 0 : index
    %c0_28 = arith.constant 0 : index
    %57 = vector.load %arg1[%c8, %c0_27, %c0_28] : memref<9x4x4xf32, #tpu.memory_space<vmem>>, vector<1x4x4xf32>
    %58 = vector.shape_cast %57 : vector<1x4x4xf32> to vector<4x4xf32>
    %cst_29 = arith.constant dense<0.000000e+00> : vector<4x768xf32>
    %59 = tpu.matmul %58, %56, %cst_29 {dimension_numbers = #tpu.dot_dimension_numbers<[1], [0], [0], [1], [0, 0, 1, 1], [], []>} : vector<4x4xf32>, vector<4x768xf32>, vector<4x768xf32> -> vector<4x768xf32>
    %60 = arith.addf %53, %59 : vector<4x768xf32>
    %c0_30 = arith.constant 0 : index
    %c0_31 = arith.constant 0 : index
    %61 = vector.load %arg3[%c0_30, %c0_31] : memref<4x1xf32, #tpu.memory_space<vmem>>, vector<4x1xf32>
    %c0_32 = arith.constant 0 : index
    %c0_33 = arith.constant 0 : index
    %62 = vector.load %arg4[%c0_32, %c0_33] : memref<4x1xf32, #tpu.memory_space<vmem>>, vector<4x1xf32>
    %63 = vector.broadcast %1 : vector<1x768xf32> to vector<4x768xf32>
    %64 = arith.mulf %60, %63 : vector<4x768xf32>
    %cst_34 = arith.constant dense<0.000000e+00> : vector<4xf32>
    %65 = vector.multi_reduction <add>, %64, %cst_34 [1] : vector<4x768xf32> to vector<4xf32>
    %66 = vector.shape_cast %65 : vector<4xf32> to vector<4x1xf32>
    %cst_35 = arith.constant 0.001953125 : f32
    %67 = vector.broadcast %cst_35 : f32 to vector<4x1xf32>
    %68 = arith.mulf %66, %67 : vector<4x1xf32>
    %69 = arith.mulf %60, %60 : vector<4x768xf32>
    %70 = vector.broadcast %1 : vector<1x768xf32> to vector<4x768xf32>
    %71 = arith.mulf %69, %70 : vector<4x768xf32>
    %cst_36 = arith.constant dense<0.000000e+00> : vector<4xf32>
    %72 = vector.multi_reduction <add>, %71, %cst_36 [1] : vector<4x768xf32> to vector<4xf32>
    %73 = vector.shape_cast %72 : vector<4xf32> to vector<4x1xf32>
    %cst_37 = arith.constant 0.001953125 : f32
    %74 = vector.broadcast %cst_37 : f32 to vector<4x1xf32>
    %75 = arith.mulf %73, %74 : vector<4x1xf32>
    %76 = arith.mulf %68, %68 : vector<4x1xf32>
    %77 = arith.subf %75, %76 : vector<4x1xf32>
    %cst_38 = arith.constant 9.99999974E-6 : f32
    %78 = vector.broadcast %cst_38 : f32 to vector<4x1xf32>
    %79 = arith.addf %77, %78 : vector<4x1xf32>
    %80 = math.rsqrt %79 : vector<4x1xf32>
    %81 = arith.mulf %61, %80 : vector<4x1xf32>
    %82 = vector.broadcast %68 : vector<4x1xf32> to vector<4x768xf32>
    %83 = arith.subf %60, %82 : vector<4x768xf32>
    %84 = vector.broadcast %81 : vector<4x1xf32> to vector<4x768xf32>
    %85 = arith.mulf %83, %84 : vector<4x768xf32>
    %86 = vector.broadcast %62 : vector<4x1xf32> to vector<4x768xf32>
    %87 = arith.addf %85, %86 : vector<4x768xf32>
    %cst_39 = arith.constant 0.000000e+00 : f32
    %88 = vector.broadcast %cst_39 : f32 to vector<4x768xf32>
    %89 = arith.maximumf %87, %88 : vector<4x768xf32>
    %90 = vector.broadcast %1 : vector<1x768xf32> to vector<4x768xf32>
    %91 = arith.mulf %89, %90 : vector<4x768xf32>
    %92 = vector.extract_strided_slice %91 {offsets = [0, 749], sizes = [4, 19], strides = [1, 1]} : vector<4x768xf32> to vector<4x19xf32>
    %93 = vector.extract_strided_slice %91 {offsets = [0, 0], sizes = [4, 749], strides = [1, 1]} : vector<4x768xf32> to vector<4x749xf32>
    %94 = tpu.concatenate %92, %93 in 1 : vector<4x19xf32>, vector<4x749xf32> -> vector<4x768xf32>
    %c0_40 = arith.constant 0 : index
    %c0_41 = arith.constant 0 : index
    %c0_42 = arith.constant 0 : index
    %95 = vector.load %arg2[%c0_40, %c0_41, %c0_42] : memref<9x4x4xf32, #tpu.memory_space<vmem>>, vector<1x4x4xf32>
    %96 = vector.shape_cast %95 : vector<1x4x4xf32> to vector<4x4xf32>
    %cst_43 = arith.constant dense<0.000000e+00> : vector<4x768xf32>
    %97 = tpu.matmul %96, %94, %cst_43 {dimension_numbers = #tpu.dot_dimension_numbers<[1], [0], [0], [1], [0, 0, 1, 1], [], []>} : vector<4x4xf32>, vector<4x768xf32>, vector<4x768xf32> -> vector<4x768xf32>
    %98 = vector.extract_strided_slice %91 {offsets = [0, 750], sizes = [4, 18], strides = [1, 1]} : vector<4x768xf32> to vector<4x18xf32>
    %99 = vector.extract_strided_slice %91 {offsets = [0, 0], sizes = [4, 750], strides = [1, 1]} : vector<4x768xf32> to vector<4x750xf32>
    %100 = tpu.concatenate %98, %99 in 1 : vector<4x18xf32>, vector<4x750xf32> -> vector<4x768xf32>
    %c1_44 = arith.constant 1 : index
    %c0_45 = arith.constant 0 : index
    %c0_46 = arith.constant 0 : index
    %101 = vector.load %arg2[%c1_44, %c0_45, %c0_46] : memref<9x4x4xf32, #tpu.memory_space<vmem>>, vector<1x4x4xf32>
    %102 = vector.shape_cast %101 : vector<1x4x4xf32> to vector<4x4xf32>
    %cst_47 = arith.constant dense<0.000000e+00> : vector<4x768xf32>
    %103 = tpu.matmul %102, %100, %cst_47 {dimension_numbers = #tpu.dot_dimension_numbers<[1], [0], [0], [1], [0, 0, 1, 1], [], []>} : vector<4x4xf32>, vector<4x768xf32>, vector<4x768xf32> -> vector<4x768xf32>
    %104 = arith.addf %97, %103 : vector<4x768xf32>
    %105 = vector.extract_strided_slice %91 {offsets = [0, 751], sizes = [4, 17], strides = [1, 1]} : vector<4x768xf32> to vector<4x17xf32>
    %106 = vector.extract_strided_slice %91 {offsets = [0, 0], sizes = [4, 751], strides = [1, 1]} : vector<4x768xf32> to vector<4x751xf32>
    %107 = tpu.concatenate %105, %106 in 1 : vector<4x17xf32>, vector<4x751xf32> -> vector<4x768xf32>
    %c2_48 = arith.constant 2 : index
    %c0_49 = arith.constant 0 : index
    %c0_50 = arith.constant 0 : index
    %108 = vector.load %arg2[%c2_48, %c0_49, %c0_50] : memref<9x4x4xf32, #tpu.memory_space<vmem>>, vector<1x4x4xf32>
    %109 = vector.shape_cast %108 : vector<1x4x4xf32> to vector<4x4xf32>
    %cst_51 = arith.constant dense<0.000000e+00> : vector<4x768xf32>
    %110 = tpu.matmul %109, %107, %cst_51 {dimension_numbers = #tpu.dot_dimension_numbers<[1], [0], [0], [1], [0, 0, 1, 1], [], []>} : vector<4x4xf32>, vector<4x768xf32>, vector<4x768xf32> -> vector<4x768xf32>
    %111 = arith.addf %104, %110 : vector<4x768xf32>
    %112 = vector.extract_strided_slice %91 {offsets = [0, 767], sizes = [4, 1], strides = [1, 1]} : vector<4x768xf32> to vector<4x1xf32>
    %113 = vector.extract_strided_slice %91 {offsets = [0, 0], sizes = [4, 767], strides = [1, 1]} : vector<4x768xf32> to vector<4x767xf32>
    %114 = tpu.concatenate %112, %113 in 1 : vector<4x1xf32>, vector<4x767xf32> -> vector<4x768xf32>
    %c3_52 = arith.constant 3 : index
    %c0_53 = arith.constant 0 : index
    %c0_54 = arith.constant 0 : index
    %115 = vector.load %arg2[%c3_52, %c0_53, %c0_54] : memref<9x4x4xf32, #tpu.memory_space<vmem>>, vector<1x4x4xf32>
    %116 = vector.shape_cast %115 : vector<1x4x4xf32> to vector<4x4xf32>
    %cst_55 = arith.constant dense<0.000000e+00> : vector<4x768xf32>
    %117 = tpu.matmul %116, %114, %cst_55 {dimension_numbers = #tpu.dot_dimension_numbers<[1], [0], [0], [1], [0, 0, 1, 1], [], []>} : vector<4x4xf32>, vector<4x768xf32>, vector<4x768xf32> -> vector<4x768xf32>
    %118 = arith.addf %111, %117 : vector<4x768xf32>
    %c4_56 = arith.constant 4 : index
    %c0_57 = arith.constant 0 : index
    %c0_58 = arith.constant 0 : index
    %119 = vector.load %arg2[%c4_56, %c0_57, %c0_58] : memref<9x4x4xf32, #tpu.memory_space<vmem>>, vector<1x4x4xf32>
    %120 = vector.shape_cast %119 : vector<1x4x4xf32> to vector<4x4xf32>
    %cst_59 = arith.constant dense<0.000000e+00> : vector<4x768xf32>
    %121 = tpu.matmul %120, %91, %cst_59 {dimension_numbers = #tpu.dot_dimension_numbers<[1], [0], [0], [1], [0, 0, 1, 1], [], []>} : vector<4x4xf32>, vector<4x768xf32>, vector<4x768xf32> -> vector<4x768xf32>
    %122 = arith.addf %118, %121 : vector<4x768xf32>
    %123 = vector.extract_strided_slice %91 {offsets = [0, 1], sizes = [4, 767], strides = [1, 1]} : vector<4x768xf32> to vector<4x767xf32>
    %124 = vector.extract_strided_slice %91 {offsets = [0, 0], sizes = [4, 1], strides = [1, 1]} : vector<4x768xf32> to vector<4x1xf32>
    %125 = tpu.concatenate %123, %124 in 1 : vector<4x767xf32>, vector<4x1xf32> -> vector<4x768xf32>
    %c5_60 = arith.constant 5 : index
    %c0_61 = arith.constant 0 : index
    %c0_62 = arith.constant 0 : index
    %126 = vector.load %arg2[%c5_60, %c0_61, %c0_62] : memref<9x4x4xf32, #tpu.memory_space<vmem>>, vector<1x4x4xf32>
    %127 = vector.shape_cast %126 : vector<1x4x4xf32> to vector<4x4xf32>
    %cst_63 = arith.constant dense<0.000000e+00> : vector<4x768xf32>
    %128 = tpu.matmul %127, %125, %cst_63 {dimension_numbers = #tpu.dot_dimension_numbers<[1], [0], [0], [1], [0, 0, 1, 1], [], []>} : vector<4x4xf32>, vector<4x768xf32>, vector<4x768xf32> -> vector<4x768xf32>
    %129 = arith.addf %122, %128 : vector<4x768xf32>
    %130 = vector.extract_strided_slice %91 {offsets = [0, 17], sizes = [4, 751], strides = [1, 1]} : vector<4x768xf32> to vector<4x751xf32>
    %131 = vector.extract_strided_slice %91 {offsets = [0, 0], sizes = [4, 17], strides = [1, 1]} : vector<4x768xf32> to vector<4x17xf32>
    %132 = tpu.concatenate %130, %131 in 1 : vector<4x751xf32>, vector<4x17xf32> -> vector<4x768xf32>
    %c6_64 = arith.constant 6 : index
    %c0_65 = arith.constant 0 : index
    %c0_66 = arith.constant 0 : index
    %133 = vector.load %arg2[%c6_64, %c0_65, %c0_66] : memref<9x4x4xf32, #tpu.memory_space<vmem>>, vector<1x4x4xf32>
    %134 = vector.shape_cast %133 : vector<1x4x4xf32> to vector<4x4xf32>
    %cst_67 = arith.constant dense<0.000000e+00> : vector<4x768xf32>
    %135 = tpu.matmul %134, %132, %cst_67 {dimension_numbers = #tpu.dot_dimension_numbers<[1], [0], [0], [1], [0, 0, 1, 1], [], []>} : vector<4x4xf32>, vector<4x768xf32>, vector<4x768xf32> -> vector<4x768xf32>
    %136 = arith.addf %129, %135 : vector<4x768xf32>
    %137 = vector.extract_strided_slice %91 {offsets = [0, 18], sizes = [4, 750], strides = [1, 1]} : vector<4x768xf32> to vector<4x750xf32>
    %138 = vector.extract_strided_slice %91 {offsets = [0, 0], sizes = [4, 18], strides = [1, 1]} : vector<4x768xf32> to vector<4x18xf32>
    %139 = tpu.concatenate %137, %138 in 1 : vector<4x750xf32>, vector<4x18xf32> -> vector<4x768xf32>
    %c7_68 = arith.constant 7 : index
    %c0_69 = arith.constant 0 : index
    %c0_70 = arith.constant 0 : index
    %140 = vector.load %arg2[%c7_68, %c0_69, %c0_70] : memref<9x4x4xf32, #tpu.memory_space<vmem>>, vector<1x4x4xf32>
    %141 = vector.shape_cast %140 : vector<1x4x4xf32> to vector<4x4xf32>
    %cst_71 = arith.constant dense<0.000000e+00> : vector<4x768xf32>
    %142 = tpu.matmul %141, %139, %cst_71 {dimension_numbers = #tpu.dot_dimension_numbers<[1], [0], [0], [1], [0, 0, 1, 1], [], []>} : vector<4x4xf32>, vector<4x768xf32>, vector<4x768xf32> -> vector<4x768xf32>
    %143 = arith.addf %136, %142 : vector<4x768xf32>
    %144 = vector.extract_strided_slice %91 {offsets = [0, 19], sizes = [4, 749], strides = [1, 1]} : vector<4x768xf32> to vector<4x749xf32>
    %145 = vector.extract_strided_slice %91 {offsets = [0, 0], sizes = [4, 19], strides = [1, 1]} : vector<4x768xf32> to vector<4x19xf32>
    %146 = tpu.concatenate %144, %145 in 1 : vector<4x749xf32>, vector<4x19xf32> -> vector<4x768xf32>
    %c8_72 = arith.constant 8 : index
    %c0_73 = arith.constant 0 : index
    %c0_74 = arith.constant 0 : index
    %147 = vector.load %arg2[%c8_72, %c0_73, %c0_74] : memref<9x4x4xf32, #tpu.memory_space<vmem>>, vector<1x4x4xf32>
    %148 = vector.shape_cast %147 : vector<1x4x4xf32> to vector<4x4xf32>
    %cst_75 = arith.constant dense<0.000000e+00> : vector<4x768xf32>
    %149 = tpu.matmul %148, %146, %cst_75 {dimension_numbers = #tpu.dot_dimension_numbers<[1], [0], [0], [1], [0, 0, 1, 1], [], []>} : vector<4x4xf32>, vector<4x768xf32>, vector<4x768xf32> -> vector<4x768xf32>
    %150 = arith.addf %143, %149 : vector<4x768xf32>
    %c0_76 = arith.constant 0 : index
    %c0_77 = arith.constant 0 : index
    %151 = vector.load %arg5[%c0_76, %c0_77] : memref<4x1xf32, #tpu.memory_space<vmem>>, vector<4x1xf32>
    %c0_78 = arith.constant 0 : index
    %c0_79 = arith.constant 0 : index
    %152 = vector.load %arg6[%c0_78, %c0_79] : memref<4x1xf32, #tpu.memory_space<vmem>>, vector<4x1xf32>
    %153 = vector.broadcast %1 : vector<1x768xf32> to vector<4x768xf32>
    %154 = arith.mulf %150, %153 : vector<4x768xf32>
    %cst_80 = arith.constant dense<0.000000e+00> : vector<4xf32>
    %155 = vector.multi_reduction <add>, %154, %cst_80 [1] : vector<4x768xf32> to vector<4xf32>
    %156 = vector.shape_cast %155 : vector<4xf32> to vector<4x1xf32>
    %cst_81 = arith.constant 0.001953125 : f32
    %157 = vector.broadcast %cst_81 : f32 to vector<4x1xf32>
    %158 = arith.mulf %156, %157 : vector<4x1xf32>
    %159 = arith.mulf %150, %150 : vector<4x768xf32>
    %160 = vector.broadcast %1 : vector<1x768xf32> to vector<4x768xf32>
    %161 = arith.mulf %159, %160 : vector<4x768xf32>
    %cst_82 = arith.constant dense<0.000000e+00> : vector<4xf32>
    %162 = vector.multi_reduction <add>, %161, %cst_82 [1] : vector<4x768xf32> to vector<4xf32>
    %163 = vector.shape_cast %162 : vector<4xf32> to vector<4x1xf32>
    %cst_83 = arith.constant 0.001953125 : f32
    %164 = vector.broadcast %cst_83 : f32 to vector<4x1xf32>
    %165 = arith.mulf %163, %164 : vector<4x1xf32>
    %166 = arith.mulf %158, %158 : vector<4x1xf32>
    %167 = arith.subf %165, %166 : vector<4x1xf32>
    %cst_84 = arith.constant 9.99999974E-6 : f32
    %168 = vector.broadcast %cst_84 : f32 to vector<4x1xf32>
    %169 = arith.addf %167, %168 : vector<4x1xf32>
    %170 = math.rsqrt %169 : vector<4x1xf32>
    %171 = arith.mulf %151, %170 : vector<4x1xf32>
    %172 = vector.broadcast %158 : vector<4x1xf32> to vector<4x768xf32>
    %173 = arith.subf %150, %172 : vector<4x768xf32>
    %174 = vector.broadcast %171 : vector<4x1xf32> to vector<4x768xf32>
    %175 = arith.mulf %173, %174 : vector<4x768xf32>
    %176 = vector.broadcast %152 : vector<4x1xf32> to vector<4x768xf32>
    %177 = arith.addf %175, %176 : vector<4x768xf32>
    %178 = arith.addf %177, %0 : vector<4x768xf32>
    %cst_85 = arith.constant 0.000000e+00 : f32
    %179 = vector.broadcast %cst_85 : f32 to vector<4x768xf32>
    %180 = arith.maximumf %178, %179 : vector<4x768xf32>
    %c0_86 = arith.constant 0 : index
    %c0_87 = arith.constant 0 : index
    %181 = vector.load %arg8[%c0_86, %c0_87] : memref<4x768xf32, #tpu.memory_space<vmem>>, vector<4x768xf32>
    tpu.vector_store %arg8[%c0_86, %c0_87], %180 {strides = array<i32>} : memref<4x768xf32, #tpu.memory_space<vmem>>, vector<4x768xf32>,
    return
  }
}

</mosaic_0001>

<llo_original>
// kernel: tpu_custom_call.1
$region0: #{tpu_custom_call.1}
  #allocation0 [shape = 'u32[]', space=smem, size = 0x4, offset = 0x4, fixed_abs, tag = 'smem constant byte address 0x4 - core index']
  #allocation1 [shape = 'u32[72,128]{1,0:T(1,128)}', space=vmem, size = 0x9000, scoped, tag = 'internal scratch']
  %s0 = inlined_call_operand.vmem [shape: f32[4,768], index: 0, kind: input, shape index: {}]
  %s1 = inlined_call_operand.vmem [shape: f32[9,4,4], index: 1, kind: input, shape index: {}]
  %s2 = inlined_call_operand.vmem [shape: f32[9,4,4], index: 2, kind: input, shape index: {}]
  %s3 = inlined_call_operand.vmem [shape: f32[4,1], index: 3, kind: input, shape index: {}]
  %s4 = inlined_call_operand.vmem [shape: f32[4,1], index: 4, kind: input, shape index: {}]
  %s5 = inlined_call_operand.vmem [shape: f32[4,1], index: 5, kind: input, shape index: {}]
  %s6 = inlined_call_operand.vmem [shape: f32[4,1], index: 6, kind: input, shape index: {}]
  %s7 = inlined_call_operand.vmem [shape: f32[1,768], index: 7, kind: input, shape index: {}]
  %s8 = inlined_call_operand.hbm [shape: f32[4,768], index: 8, kind: output, shape index: {}]
  %s9 = sld [smem:[#allocation0]]
  $region42: #{tpu_custom_call.1} parent=0
    _
  %s11 = ssub.s32 1, %s9
  %s12 = scalar_select 0, %s11, %s9
  $region1: #{tpu_custom_call.1} parent=0
    #allocation2 [shape = 'u8[12288]{0}', space=vmem, size = 0x3000, scoped, tag = 'output window, operand 0, single buffered']
    #allocation3 [shape = 's32[1]{0}', space=sflag, size = 0x4, scoped, tag = 'scoped memory for tpu_custom_call.1']
    %13 = vsyncpa [#allocation3], 0
    // Predicated region
    $region2: #{tpu_custom_call.1} parent=1 // pred_check
      _
    $region3: #{tpu_custom_call.1} parent=1 // pred_check_branch
      %15 = sbr.rel (0) target = $region5
    $region4: #{tpu_custom_call.1} parent=1 // pred_region
      _
    $region5: #{tpu_custom_call.1} parent=1 // pred_fallthru
      _
    // Predicated region
    $region6: #{tpu_custom_call.1} parent=1 // pred_check
      _
    $region7: #{tpu_custom_call.1} parent=1 // pred_check_branch
      %17 = sbr.rel (0) target = $region9
    $region8: #{tpu_custom_call.1} parent=1 // pred_region
      _
    $region9: #{tpu_custom_call.1} parent=1 // pred_fallthru
      _
    // Predicated region
    $region10: #{tpu_custom_call.1} parent=1 // pred_check
      _
    $region11: #{tpu_custom_call.1} parent=1 // pred_check_branch
      %19 = sbr.rel (0) target = $region13
    $region12: #{tpu_custom_call.1} parent=1 // pred_region
      _
    $region13: #{tpu_custom_call.1} parent=1 // pred_fallthru
      _
    // Predicated region
    $region14: #{tpu_custom_call.1} parent=1 // pred_check
      _
    $region15: #{tpu_custom_call.1} parent=1 // pred_check_branch
      %21 = sbr.rel (0) target = $region17
    $region16: #{tpu_custom_call.1} parent=1 // pred_region
      _
    $region17: #{tpu_custom_call.1} parent=1 // pred_fallthru
      _
    // Predicated region
    $region18: #{tpu_custom_call.1} parent=1 // pred_check
      _
    $region19: #{tpu_custom_call.1} parent=1 // pred_check_branch
      %23 = sbr.rel (0) target = $region21
    $region20: #{tpu_custom_call.1} parent=1 // pred_region
      _
    $region21: #{tpu_custom_call.1} parent=1 // pred_fallthru
      _
    // Predicated region
    $region22: #{tpu_custom_call.1} parent=1 // pred_check
      _
    $region23: #{tpu_custom_call.1} parent=1 // pred_check_branch
      %25 = sbr.rel (0) target = $region25
    $region24: #{tpu_custom_call.1} parent=1 // pred_region
      _
    $region25: #{tpu_custom_call.1} parent=1 // pred_fallthru
      _
    // Predicated region
    $region26: #{tpu_custom_call.1} parent=1 // pred_check
      _
    $region27: #{tpu_custom_call.1} parent=1 // pred_check_branch
      %27 = sbr.rel (0) target = $region29
    $region28: #{tpu_custom_call.1} parent=1 // pred_region
      _
    $region29: #{tpu_custom_call.1} parent=1 // pred_fallthru
      _
    // Predicated region
    $region30: #{tpu_custom_call.1} parent=1 // pred_check
      _
    $region31: #{tpu_custom_call.1} parent=1 // pred_check_branch
      %29 = sbr.rel (0) target = $region33
    $region32: #{tpu_custom_call.1} parent=1 // pred_region
      _
    $region33: #{tpu_custom_call.1} parent=1 // pred_fallthru
      _
    %v30 = vld [vmem:[%s0] sm:$0xff]
    %v31 = vld [vmem:[%s0 + $0x8] sm:$0xff]
    %v32 = vld [vmem:[%s0 + $0x10] sm:$0xff]
    %v33 = vld [vmem:[%s7] sm:$0x3f]
    %35 = vst [vmem:[#allocation1] ss:$2 sm:$0xff] %v32
    %v36 = vld.sshfl [vmem:[#allocation1 + $0x8] sm:$0xff pattern:$0x75316420]
    %37 = vrot.lane.b32.xlu0 %v36, 19
    %v38 = vpop.permute.xlu0 %37
    %42 = vst [vmem:[#allocation1] ss:$2 sm:$0xff] %v30
    %s43 = scalar_lea.vmem [#allocation1], 16
    %44 = vst [vmem:[%s43] ss:$2 sm:$0xff] %v31
    %s45 = scalar_lea.vmem [#allocation1], 32
    %46 = vst [vmem:[%s45] ss:$2 sm:$0xff] %v32
    %v47 = vld.sshfl [vmem:[#allocation1] sm:$0xff pattern:$0x75316420]
    %v48 = vld.sshfl [vmem:[#allocation1 + $0x8] sm:$0xff pattern:$0x75316420]
    %v49 = vld.sshfl [vmem:[#allocation1 + $0x10] sm:$0xff pattern:$0x75316420]
    %v50 = vld.sshfl [vmem:[#allocation1 + $0x18] sm:$0xff pattern:$0x75316420]
    %v51 = vld.sshfl [vmem:[#allocation1 + $0x20] sm:$0xff pattern:$0x75316420]
    %v52 = vld.sshfl [vmem:[#allocation1 + $0x28] sm:$0xff pattern:$0x75316420]
    %53 = vrot.lane.b32.xlu0 %v47, 19
    %v54 = vpop.permute.xlu0 %53
    %55 = vrot.lane.b32.xlu0 %v48, 19
    %v56 = vpop.permute.xlu0 %55
    %57 = vrot.lane.b32.xlu0 %v49, 19
    %v58 = vpop.permute.xlu0 %57
    %59 = vrot.lane.b32.xlu0 %v50, 19
    %v60 = vpop.permute.xlu0 %59
    %61 = vrot.lane.b32.xlu0 %v51, 19
    %v62 = vpop.permute.xlu0 %61
    %63 = vrot.lane.b32.xlu0 %v52, 19
    %v64 = vpop.permute.xlu0 %63
    %vm65 = vcmask 154624
    %v66 = vsel %vm65, %v54, %v56
    %v67 = vsel %vm65, %v56, %v58
    %v68 = vsel %vm65, %v58, %v60
    %v69 = vsel %vm65, %v60, %v62
    %v70 = vsel %vm65, %v62, %v64
    %v72 = vsel %vm65, %v38, %v54
    %v73 = vld [vmem:[%s1] sm:$0xf]
    %74 = vst [vmem:[#allocation1] ss:$2 sm:$0xff] %v32
    %v75 = vld.sshfl [vmem:[#allocation1 + $0x8] sm:$0xff pattern:$0x75316420]
    %76 = vrot.lane.b32.xlu0 %v75, 18
    %v77 = vpop.permute.xlu0 %76
    %79 = vst [vmem:[#allocation1] ss:$2 sm:$0xff] %v30
    %s80 = scalar_lea.vmem [#allocation1], 16
    %81 = vst [vmem:[%s80] ss:$2 sm:$0xff] %v31
    %s82 = scalar_lea.vmem [#allocation1], 32
    %83 = vst [vmem:[%s82] ss:$2 sm:$0xff] %v32
    %v84 = vld.sshfl [vmem:[#allocation1] sm:$0xff pattern:$0x75316420]
    %v85 = vld.sshfl [vmem:[#allocation1 + $0x8] sm:$0xff pattern:$0x75316420]
    %v86 = vld.sshfl [vmem:[#allocation1 + $0x10] sm:$0xff pattern:$0x75316420]
    %v87 = vld.sshfl [vmem:[#allocation1 + $0x18] sm:$0xff pattern:$0x75316420]
    %v88 = vld.sshfl [vmem:[#allocation1 + $0x20] sm:$0xff pattern:$0x75316420]
    %v89 = vld.sshfl [vmem:[#allocation1 + $0x28] sm:$0xff pattern:$0x75316420]
    %90 = vrot.lane.b32.xlu0 %v84, 18
    %v91 = vpop.permute.xlu0 %90
    %92 = vrot.lane.b32.xlu0 %v85, 18
    %v93 = vpop.permute.xlu0 %92
    %94 = vrot.lane.b32.xlu0 %v86, 18
    %v95 = vpop.permute.xlu0 %94
    %96 = vrot.lane.b32.xlu0 %v87, 18
    %v97 = vpop.permute.xlu0 %96
    %98 = vrot.lane.b32.xlu0 %v88, 18
    %v99 = vpop.permute.xlu0 %98
    %100 = vrot.lane.b32.xlu0 %v89, 18
    %v101 = vpop.permute.xlu0 %100
    %vm102 = vcmask 146432
    %v103 = vsel %vm102, %v91, %v93
    %v104 = vsel %vm102, %v93, %v95
    %v105 = vsel %vm102, %v95, %v97
    %v106 = vsel %vm102, %v97, %v99
    %v107 = vsel %vm102, %v99, %v101
    %v109 = vsel %vm102, %v77, %v91
    %s110 = scalar_lea.vmem %s1, 4
    %v111 = vld [vmem:[%s110] sm:$0xf]
    %vm112 = vcmask 31744
    %v114 = vsel %vm112, %v111, 0
    %vm116 = vcmask 1043456
    %v118 = vsel %vm116, %v109, 0
    %v120 = vsel %vm116, %v103, 0
    %v122 = vsel %vm116, %v104, 0
    %v124 = vsel %vm116, %v105, 0
    %v126 = vsel %vm116, %v106, 0
    %v128 = vsel %vm116, %v107, 0
    %130 = vmatpush.msra.mxu0 0.0
    %131 = vmatpush.msra.mxu0 0.0
    %132 = vmatpush.msra.mxu0 0.0
    %133 = vmatpush.msra.mxu0 0.0
    %134 = vmatpush.msra.mxu0 0.0
    %135 = vmatpush.msra.mxu0 0.0
    %136 = vmatpush.msra.mxu0 0.0
    %137 = vmatpush.msra.mxu0 0.0
    %138 = vmatpush.msra.mxu0 0.0
    %139 = vmatpush.msra.mxu0 0.0
    %140 = vmatpush.msra.mxu0 0.0
    %141 = vmatpush.msra.mxu0 0.0
    %142 = vmatpush.msra.mxu0 0.0
    %143 = vmatpush.msra.mxu0 0.0
    %144 = vmatpush.msra.mxu0 0.0
    %145 = vmatpush.msra.mxu0 %v118
    %146 = vmatmul.f32.gmra.mxu0 %v114
    %v147 = vpop.f32.mrf.mxu0
    %v148 = vadd.f32 0.0, %v147
    %149 = vdwg.mxu0
    %150 = vmatpush.msra.mxu0 0.0
    %151 = vmatpush.msra.mxu0 0.0
    %152 = vmatpush.msra.mxu0 0.0
    %153 = vmatpush.msra.mxu0 0.0
    %154 = vmatpush.msra.mxu0 0.0
    %155 = vmatpush.msra.mxu0 0.0
    %156 = vmatpush.msra.mxu0 0.0
    %157 = vmatpush.msra.mxu0 0.0
    %158 = vmatpush.msra.mxu0 0.0
    %159 = vmatpush.msra.mxu0 0.0
    %160 = vmatpush.msra.mxu0 0.0
    %161 = vmatpush.msra.mxu0 0.0
    %162 = vmatpush.msra.mxu0 0.0
    %163 = vmatpush.msra.mxu0 0.0
    %164 = vmatpush.msra.mxu0 0.0
    %165 = vmatpush.msra.mxu0 %v120
    %166 = vmatmul.f32.gmra.mxu0 %v114
    %v167 = vpop.f32.mrf.mxu0
    %v168 = vadd.f32 0.0, %v167
    %169 = vdwg.mxu0
    %170 = vmatpush.msra.mxu0 0.0
    %171 = vmatpush.msra.mxu0 0.0
    %172 = vmatpush.msra.mxu0 0.0
    %173 = vmatpush.msra.mxu0 0.0
    %174 = vmatpush.msra.mxu0 0.0
    %175 = vmatpush.msra.mxu0 0.0
    %176 = vmatpush.msra.mxu0 0.0
    %177 = vmatpush.msra.mxu0 0.0
    %178 = vmatpush.msra.mxu0 0.0
    %179 = vmatpush.msra.mxu0 0.0
    %180 = vmatpush.msra.mxu0 0.0
    %181 = vmatpush.msra.mxu0 0.0
    %182 = vmatpush.msra.mxu0 0.0
    %183 = vmatpush.msra.mxu0 0.0
    %184 = vmatpush.msra.mxu0 0.0
    %185 = vmatpush.msra.mxu0 %v122
    %186 = vmatmul.f32.gmra.mxu0 %v114
    %v187 = vpop.f32.mrf.mxu0
    %v188 = vadd.f32 0.0, %v187
    %189 = vdwg.mxu0
    %190 = vmatpush.msra.mxu0 0.0
    %191 = vmatpush.msra.mxu0 0.0
    %192 = vmatpush.msra.mxu0 0.0
    %193 = vmatpush.msra.mxu0 0.0
    %194 = vmatpush.msra.mxu0 0.0
    %195 = vmatpush.msra.mxu0 0.0
    %196 = vmatpush.msra.mxu0 0.0
    %197 = vmatpush.msra.mxu0 0.0
    %198 = vmatpush.msra.mxu0 0.0
    %199 = vmatpush.msra.mxu0 0.0
    %200 = vmatpush.msra.mxu0 0.0
    %201 = vmatpush.msra.mxu0 0.0
    %202 = vmatpush.msra.mxu0 0.0
    %203 = vmatpush.msra.mxu0 0.0
    %204 = vmatpush.msra.mxu0 0.0
    %205 = vmatpush.msra.mxu0 %v124
    %206 = vmatmul.f32.gmra.mxu0 %v114
    %v207 = vpop.f32.mrf.mxu0
    %v208 = vadd.f32 0.0, %v207
    %209 = vdwg.mxu0
    %210 = vmatpush.msra.mxu0 0.0
    %211 = vmatpush.msra.mxu0 0.0
    %212 = vmatpush.msra.mxu0 0.0
    %213 = vmatpush.msra.mxu0 0.0
    %214 = vmatpush.msra.mxu0 0.0
    %215 = vmatpush.msra.mxu0 0.0
    %216 = vmatpush.msra.mxu0 0.0
    %217 = vmatpush.msra.mxu0 0.0
    %218 = vmatpush.msra.mxu0 0.0
    %219 = vmatpush.msra.mxu0 0.0
    %220 = vmatpush.msra.mxu0 0.0
    %221 = vmatpush.msra.mxu0 0.0
    %222 = vmatpush.msra.mxu0 0.0
    %223 = vmatpush.msra.mxu0 0.0
    %224 = vmatpush.msra.mxu0 0.0
    %225 = vmatpush.msra.mxu0 %v126
    %226 = vmatmul.f32.gmra.mxu0 %v114
    %v227 = vpop.f32.mrf.mxu0
    %v228 = vadd.f32 0.0, %v227
    %229 = vdwg.mxu0
    %230 = vmatpush.msra.mxu0 0.0
    %231 = vmatpush.msra.mxu0 0.0
    %232 = vmatpush.msra.mxu0 0.0
    %233 = vmatpush.msra.mxu0 0.0
    %234 = vmatpush.msra.mxu0 0.0
    %235 = vmatpush.msra.mxu0 0.0
    %236 = vmatpush.msra.mxu0 0.0
    %237 = vmatpush.msra.mxu0 0.0
    %238 = vmatpush.msra.mxu0 0.0
    %239 = vmatpush.msra.mxu0 0.0
    %240 = vmatpush.msra.mxu0 0.0
    %241 = vmatpush.msra.mxu0 0.0
    %242 = vmatpush.msra.mxu0 0.0
    %243 = vmatpush.msra.mxu0 0.0
    %244 = vmatpush.msra.mxu0 0.0
    %245 = vmatpush.msra.mxu0 %v128
    %246 = vmatmul.f32.gmra.mxu0 %v114
    %v247 = vpop.f32.mrf.mxu0
    %v248 = vadd.f32 0.0, %v247
    %249 = vdwg.mxu0
    %v251 = vsel %vm112, %v73, 0
    %v254 = vsel %vm116, %v72, 0
    %v256 = vsel %vm116, %v66, 0
    %v258 = vsel %vm116, %v67, 0
    %v260 = vsel %vm116, %v68, 0
    %v262 = vsel %vm116, %v69, 0
    %v264 = vsel %vm116, %v70, 0
    %266 = vmatpush.msra.mxu0 0.0
    %267 = vmatpush.msra.mxu0 0.0
    %268 = vmatpush.msra.mxu0 0.0
    %269 = vmatpush.msra.mxu0 0.0
    %270 = vmatpush.msra.mxu0 0.0
    %271 = vmatpush.msra.mxu0 0.0
    %272 = vmatpush.msra.mxu0 0.0
    %273 = vmatpush.msra.mxu0 0.0
    %274 = vmatpush.msra.mxu0 0.0
    %275 = vmatpush.msra.mxu0 0.0
    %276 = vmatpush.msra.mxu0 0.0
    %277 = vmatpush.msra.mxu0 0.0
    %278 = vmatpush.msra.mxu0 0.0
    %279 = vmatpush.msra.mxu0 0.0
    %280 = vmatpush.msra.mxu0 0.0
    %281 = vmatpush.msra.mxu0 %v254
    %282 = vmatmul.f32.gmra.mxu0 %v251
    %v283 = vpop.f32.mrf.mxu0
    %v284 = vadd.f32 %v148, %v283
    %285 = vdwg.mxu0
    %286 = vmatpush.msra.mxu0 0.0
    %287 = vmatpush.msra.mxu0 0.0
    %288 = vmatpush.msra.mxu0 0.0
    %289 = vmatpush.msra.mxu0 0.0
    %290 = vmatpush.msra.mxu0 0.0
    %291 = vmatpush.msra.mxu0 0.0
    %292 = vmatpush.msra.mxu0 0.0
    %293 = vmatpush.msra.mxu0 0.0
    %294 = vmatpush.msra.mxu0 0.0
    %295 = vmatpush.msra.mxu0 0.0
    %296 = vmatpush.msra.mxu0 0.0
    %297 = vmatpush.msra.mxu0 0.0
    %298 = vmatpush.msra.mxu0 0.0
    %299 = vmatpush.msra.mxu0 0.0
    %300 = vmatpush.msra.mxu0 0.0
    %301 = vmatpush.msra.mxu0 %v256
    %302 = vmatmul.f32.gmra.mxu0 %v251
    %v303 = vpop.f32.mrf.mxu0
    %v304 = vadd.f32 %v168, %v303
    %305 = vdwg.mxu0
    %306 = vmatpush.msra.mxu0 0.0
    %307 = vmatpush.msra.mxu0 0.0
    %308 = vmatpush.msra.mxu0 0.0
    %309 = vmatpush.msra.mxu0 0.0
    %310 = vmatpush.msra.mxu0 0.0
    %311 = vmatpush.msra.mxu0 0.0
    %312 = vmatpush.msra.mxu0 0.0
    %313 = vmatpush.msra.mxu0 0.0
    %314 = vmatpush.msra.mxu0 0.0
    %315 = vmatpush.msra.mxu0 0.0
    %316 = vmatpush.msra.mxu0 0.0
    %317 = vmatpush.msra.mxu0 0.0
    %318 = vmatpush.msra.mxu0 0.0
    %319 = vmatpush.msra.mxu0 0.0
    %320 = vmatpush.msra.mxu0 0.0
    %321 = vmatpush.msra.mxu0 %v258
    %322 = vmatmul.f32.gmra.mxu0 %v251
    %v323 = vpop.f32.mrf.mxu0
    %v324 = vadd.f32 %v188, %v323
    %325 = vdwg.mxu0
    %326 = vmatpush.msra.mxu0 0.0
    %327 = vmatpush.msra.mxu0 0.0
    %328 = vmatpush.msra.mxu0 0.0
    %329 = vmatpush.msra.mxu0 0.0
    %330 = vmatpush.msra.mxu0 0.0
    %331 = vmatpush.msra.mxu0 0.0
    %332 = vmatpush.msra.mxu0 0.0
    %333 = vmatpush.msra.mxu0 0.0
    %334 = vmatpush.msra.mxu0 0.0
    %335 = vmatpush.msra.mxu0 0.0
    %336 = vmatpush.msra.mxu0 0.0
    %337 = vmatpush.msra.mxu0 0.0
    %338 = vmatpush.msra.mxu0 0.0
    %339 = vmatpush.msra.mxu0 0.0
    %340 = vmatpush.msra.mxu0 0.0
    %341 = vmatpush.msra.mxu0 %v260
    %342 = vmatmul.f32.gmra.mxu0 %v251
    %v343 = vpop.f32.mrf.mxu0
    %v344 = vadd.f32 %v208, %v343
    %345 = vdwg.mxu0
    %346 = vmatpush.msra.mxu0 0.0
    %347 = vmatpush.msra.mxu0 0.0
    %348 = vmatpush.msra.mxu0 0.0
    %349 = vmatpush.msra.mxu0 0.0
    %350 = vmatpush.msra.mxu0 0.0
    %351 = vmatpush.msra.mxu0 0.0
    %352 = vmatpush.msra.mxu0 0.0
    %353 = vmatpush.msra.mxu0 0.0
    %354 = vmatpush.msra.mxu0 0.0
    %355 = vmatpush.msra.mxu0 0.0
    %356 = vmatpush.msra.mxu0 0.0
    %357 = vmatpush.msra.mxu0 0.0
    %358 = vmatpush.msra.mxu0 0.0
    %359 = vmatpush.msra.mxu0 0.0
    %360 = vmatpush.msra.mxu0 0.0
    %361 = vmatpush.msra.mxu0 %v262
    %362 = vmatmul.f32.gmra.mxu0 %v251
    %v363 = vpop.f32.mrf.mxu0
    %v364 = vadd.f32 %v228, %v363
    %365 = vdwg.mxu0
    %366 = vmatpush.msra.mxu0 0.0
    %367 = vmatpush.msra.mxu0 0.0
    %368 = vmatpush.msra.mxu0 0.0
    %369 = vmatpush.msra.mxu0 0.0
    %370 = vmatpush.msra.mxu0 0.0
    %371 = vmatpush.msra.mxu0 0.0
    %372 = vmatpush.msra.mxu0 0.0
    %373 = vmatpush.msra.mxu0 0.0
    %374 = vmatpush.msra.mxu0 0.0
    %375 = vmatpush.msra.mxu0 0.0
    %376 = vmatpush.msra.mxu0 0.0
    %377 = vmatpush.msra.mxu0 0.0
    %378 = vmatpush.msra.mxu0 0.0
    %379 = vmatpush.msra.mxu0 0.0
    %380 = vmatpush.msra.mxu0 0.0
    %381 = vmatpush.msra.mxu0 %v264
    %382 = vmatmul.f32.gmra.mxu0 %v251
    %v383 = vpop.f32.mrf.mxu0
    %v384 = vadd.f32 %v248, %v383
    %385 = vdwg.mxu0
    %386 = vst [vmem:[#allocation1] ss:$2 sm:$0xff] %v32
    %v387 = vld.sshfl [vmem:[#allocation1 + $0x8] sm:$0xff pattern:$0x75316420]
    %388 = vrot.lane.b32.xlu0 %v387, 17
    %v389 = vpop.permute.xlu0 %388
    %391 = vst [vmem:[#allocation1] ss:$2 sm:$0xff] %v30
    %s392 = scalar_lea.vmem [#allocation1], 16
    %393 = vst [vmem:[%s392] ss:$2 sm:$0xff] %v31
    %s394 = scalar_lea.vmem [#allocation1], 32
    %395 = vst [vmem:[%s394] ss:$2 sm:$0xff] %v32
    %v396 = vld.sshfl [vmem:[#allocation1] sm:$0xff pattern:$0x75316420]
    %v397 = vld.sshfl [vmem:[#allocation1 + $0x8] sm:$0xff pattern:$0x75316420]
    %v398 = vld.sshfl [vmem:[#allocation1 + $0x10] sm:$0xff pattern:$0x75316420]
    %v399 = vld.sshfl [vmem:[#allocation1 + $0x18] sm:$0xff pattern:$0x75316420]
    %v400 = vld.sshfl [vmem:[#allocation1 + $0x20] sm:$0xff pattern:$0x75316420]
    %v401 = vld.sshfl [vmem:[#allocation1 + $0x28] sm:$0xff pattern:$0x75316420]
    %402 = vrot.lane.b32.xlu0 %v396, 17
    %v403 = vpop.permute.xlu0 %402
    %404 = vrot.lane.b32.xlu0 %v397, 17
    %v405 = vpop.permute.xlu0 %404
    %406 = vrot.lane.b32.xlu0 %v398, 17
    %v407 = vpop.permute.xlu0 %406
    %408 = vrot.lane.b32.xlu0 %v399, 17
    %v409 = vpop.permute.xlu0 %408
    %410 = vrot.lane.b32.xlu0 %v400, 17
    %v411 = vpop.permute.xlu0 %410
    %412 = vrot.lane.b32.xlu0 %v401, 17
    %v413 = vpop.permute.xlu0 %412
    %vm414 = vcmask 138240
    %v415 = vsel %vm414, %v403, %v405
    %v416 = vsel %vm414, %v405, %v407
    %v417 = vsel %vm414, %v407, %v409
    %v418 = vsel %vm414, %v409, %v411
    %v419 = vsel %vm414, %v411, %v413
    %v421 = vsel %vm414, %v389, %v403
    %s422 = scalar_lea.vmem %s1, 8
    %v423 = vld [vmem:[%s422] sm:$0xf]
    %v425 = vsel %vm112, %v423, 0
    %v428 = vsel %vm116, %v421, 0
    %v430 = vsel %vm116, %v415, 0
    %v432 = vsel %vm116, %v416, 0
    %v434 = vsel %vm116, %v417, 0
    %v436 = vsel %vm116, %v418, 0
    %v438 = vsel %vm116, %v419, 0
    %440 = vmatpush.msra.mxu0 0.0
    %441 = vmatpush.msra.mxu0 0.0
    %442 = vmatpush.msra.mxu0 0.0
    %443 = vmatpush.msra.mxu0 0.0
    %444 = vmatpush.msra.mxu0 0.0
    %445 = vmatpush.msra.mxu0 0.0
    %446 = vmatpush.msra.mxu0 0.0
    %447 = vmatpush.msra.mxu0 0.0
    %448 = vmatpush.msra.mxu0 0.0
    %449 = vmatpush.msra.mxu0 0.0
    %450 = vmatpush.msra.mxu0 0.0
    %451 = vmatpush.msra.mxu0 0.0
    %452 = vmatpush.msra.mxu0 0.0
    %453 = vmatpush.msra.mxu0 0.0
    %454 = vmatpush.msra.mxu0 0.0
    %455 = vmatpush.msra.mxu0 %v428
    %456 = vmatmul.f32.gmra.mxu0 %v425
    %v457 = vpop.f32.mrf.mxu0
    %v458 = vadd.f32 0.0, %v457
    %459 = vdwg.mxu0
    %460 = vmatpush.msra.mxu0 0.0
    %461 = vmatpush.msra.mxu0 0.0
    %462 = vmatpush.msra.mxu0 0.0
    %463 = vmatpush.msra.mxu0 0.0
    %464 = vmatpush.msra.mxu0 0.0
    %465 = vmatpush.msra.mxu0 0.0
    %466 = vmatpush.msra.mxu0 0.0
    %467 = vmatpush.msra.mxu0 0.0
    %468 = vmatpush.msra.mxu0 0.0
    %469 = vmatpush.msra.mxu0 0.0
    %470 = vmatpush.msra.mxu0 0.0
    %471 = vmatpush.msra.mxu0 0.0
    %472 = vmatpush.msra.mxu0 0.0
    %473 = vmatpush.msra.mxu0 0.0
    %474 = vmatpush.msra.mxu0 0.0
    %475 = vmatpush.msra.mxu0 %v430
    %476 = vmatmul.f32.gmra.mxu0 %v425
    %v477 = vpop.f32.mrf.mxu0
    %v478 = vadd.f32 0.0, %v477
    %479 = vdwg.mxu0
    %480 = vmatpush.msra.mxu0 0.0
    %481 = vmatpush.msra.mxu0 0.0
    %482 = vmatpush.msra.mxu0 0.0
    %483 = vmatpush.msra.mxu0 0.0
    %484 = vmatpush.msra.mxu0 0.0
    %485 = vmatpush.msra.mxu0 0.0
    %486 = vmatpush.msra.mxu0 0.0
    %487 = vmatpush.msra.mxu0 0.0
    %488 = vmatpush.msra.mxu0 0.0
    %489 = vmatpush.msra.mxu0 0.0
    %490 = vmatpush.msra.mxu0 0.0
    %491 = vmatpush.msra.mxu0 0.0
    %492 = vmatpush.msra.mxu0 0.0
    %493 = vmatpush.msra.mxu0 0.0
    %494 = vmatpush.msra.mxu0 0.0
    %495 = vmatpush.msra.mxu0 %v432
    %496 = vmatmul.f32.gmra.mxu0 %v425
    %v497 = vpop.f32.mrf.mxu0
    %v498 = vadd.f32 0.0, %v497
    %499 = vdwg.mxu0
    %500 = vmatpush.msra.mxu0 0.0
    %501 = vmatpush.msra.mxu0 0.0
    %502 = vmatpush.msra.mxu0 0.0
    %503 = vmatpush.msra.mxu0 0.0
    %504 = vmatpush.msra.mxu0 0.0
    %505 = vmatpush.msra.mxu0 0.0
    %506 = vmatpush.msra.mxu0 0.0
    %507 = vmatpush.msra.mxu0 0.0
    %508 = vmatpush.msra.mxu0 0.0
    %509 = vmatpush.msra.mxu0 0.0
    %510 = vmatpush.msra.mxu0 0.0
    %511 = vmatpush.msra.mxu0 0.0
    %512 = vmatpush.msra.mxu0 0.0
    %513 = vmatpush.msra.mxu0 0.0
    %514 = vmatpush.msra.mxu0 0.0
    %515 = vmatpush.msra.mxu0 %v434
    %516 = vmatmul.f32.gmra.mxu0 %v425
    %v517 = vpop.f32.mrf.mxu0
    %v518 = vadd.f32 0.0, %v517
    %519 = vdwg.mxu0
    %520 = vmatpush.msra.mxu0 0.0
    %521 = vmatpush.msra.mxu0 0.0
    %522 = vmatpush.msra.mxu0 0.0
    %523 = vmatpush.msra.mxu0 0.0
    %524 = vmatpush.msra.mxu0 0.0
    %525 = vmatpush.msra.mxu0 0.0
    %526 = vmatpush.msra.mxu0 0.0
    %527 = vmatpush.msra.mxu0 0.0
    %528 = vmatpush.msra.mxu0 0.0
    %529 = vmatpush.msra.mxu0 0.0
    %530 = vmatpush.msra.mxu0 0.0
    %531 = vmatpush.msra.mxu0 0.0
    %532 = vmatpush.msra.mxu0 0.0
    %533 = vmatpush.msra.mxu0 0.0
    %534 = vmatpush.msra.mxu0 0.0
    %535 = vmatpush.msra.mxu0 %v436
    %536 = vmatmul.f32.gmra.mxu0 %v425
    %v537 = vpop.f32.mrf.mxu0
    %v538 = vadd.f32 0.0, %v537
    %539 = vdwg.mxu0
    %540 = vmatpush.msra.mxu0 0.0
    %541 = vmatpush.msra.mxu0 0.0
    %542 = vmatpush.msra.mxu0 0.0
    %543 = vmatpush.msra.mxu0 0.0
    %544 = vmatpush.msra.mxu0 0.0
    %545 = vmatpush.msra.mxu0 0.0
    %546 = vmatpush.msra.mxu0 0.0
    %547 = vmatpush.msra.mxu0 0.0
    %548 = vmatpush.msra.mxu0 0.0
    %549 = vmatpush.msra.mxu0 0.0
    %550 = vmatpush.msra.mxu0 0.0
    %551 = vmatpush.msra.mxu0 0.0
    %552 = vmatpush.msra.mxu0 0.0
    %553 = vmatpush.msra.mxu0 0.0
    %554 = vmatpush.msra.mxu0 0.0
    %555 = vmatpush.msra.mxu0 %v438
    %556 = vmatmul.f32.gmra.mxu0 %v425
    %v557 = vpop.f32.mrf.mxu0
    %v558 = vadd.f32 0.0, %v557
    %559 = vdwg.mxu0
    %v560 = vadd.f32 %v284, %v458
    %v561 = vadd.f32 %v304, %v478
    %v562 = vadd.f32 %v324, %v498
    %v563 = vadd.f32 %v344, %v518
    %v564 = vadd.f32 %v364, %v538
    %v565 = vadd.f32 %v384, %v558
    %566 = vst [vmem:[#allocation1] ss:$2 sm:$0xff] %v32
    %v567 = vld.sshfl [vmem:[#allocation1 + $0x8] sm:$0xff pattern:$0x75316420]
    %568 = vrot.lane.b32.xlu0 %v567, 1
    %v569 = vpop.permute.xlu0 %568
    %571 = vst [vmem:[#allocation1] ss:$2 sm:$0xff] %v30
    %s572 = scalar_lea.vmem [#allocation1], 16
    %573 = vst [vmem:[%s572] ss:$2 sm:$0xff] %v31
    %s574 = scalar_lea.vmem [#allocation1], 32
    %575 = vst [vmem:[%s574] ss:$2 sm:$0xff] %v32
    %v576 = vld.sshfl [vmem:[#allocation1] sm:$0xff pattern:$0x75316420]
    %v577 = vld.sshfl [vmem:[#allocation1 + $0x8] sm:$0xff pattern:$0x75316420]
    %v578 = vld.sshfl [vmem:[#allocation1 + $0x10] sm:$0xff pattern:$0x75316420]
    %v579 = vld.sshfl [vmem:[#allocation1 + $0x18] sm:$0xff pattern:$0x75316420]
    %v580 = vld.sshfl [vmem:[#allocation1 + $0x20] sm:$0xff pattern:$0x75316420]
    %v581 = vld.sshfl [vmem:[#allocation1 + $0x28] sm:$0xff pattern:$0x75316420]
    %582 = vrot.lane.b32.xlu0 %v576, 1
    %v583 = vpop.permute.xlu0 %582
    %584 = vrot.lane.b32.xlu0 %v577, 1
    %v585 = vpop.permute.xlu0 %584
    %586 = vrot.lane.b32.xlu0 %v578, 1
    %v587 = vpop.permute.xlu0 %586
    %588 = vrot.lane.b32.xlu0 %v579, 1
    %v589 = vpop.permute.xlu0 %588
    %590 = vrot.lane.b32.xlu0 %v580, 1
    %v591 = vpop.permute.xlu0 %590
    %592 = vrot.lane.b32.xlu0 %v581, 1
    %v593 = vpop.permute.xlu0 %592
    %vm594 = vcmask 7168
    %v595 = vsel %vm594, %v583, %v585
    %v596 = vsel %vm594, %v585, %v587
    %v597 = vsel %vm594, %v587, %v589
    %v598 = vsel %vm594, %v589, %v591
    %v599 = vsel %vm594, %v591, %v593
    %v601 = vsel %vm594, %v569, %v583
    %s602 = scalar_lea.vmem %s1, 12
    %v603 = vld [vmem:[%s602] sm:$0xf]
    %v605 = vsel %vm112, %v603, 0
    %v608 = vsel %vm116, %v601, 0
    %v610 = vsel %vm116, %v595, 0
    %v612 = vsel %vm116, %v596, 0
    %v614 = vsel %vm116, %v597, 0
    %v616 = vsel %vm116, %v598, 0
    %v618 = vsel %vm116, %v599, 0
    %620 = vmatpush.msra.mxu0 0.0
    %621 = vmatpush.msra.mxu0 0.0
    %622 = vmatpush.msra.mxu0 0.0
    %623 = vmatpush.msra.mxu0 0.0
    %624 = vmatpush.msra.mxu0 0.0
    %625 = vmatpush.msra.mxu0 0.0
    %626 = vmatpush.msra.mxu0 0.0
    %627 = vmatpush.msra.mxu0 0.0
    %628 = vmatpush.msra.mxu0 0.0
    %629 = vmatpush.msra.mxu0 0.0
    %630 = vmatpush.msra.mxu0 0.0
    %631 = vmatpush.msra.mxu0 0.0
    %632 = vmatpush.msra.mxu0 0.0
    %633 = vmatpush.msra.mxu0 0.0
    %634 = vmatpush.msra.mxu0 0.0
    %635 = vmatpush.msra.mxu0 %v608
    %636 = vmatmul.f32.gmra.mxu0 %v605
    %v637 = vpop.f32.mrf.mxu0
    %v638 = vadd.f32 0.0, %v637
    %639 = vdwg.mxu0
    %640 = vmatpush.msra.mxu0 0.0
    %641 = vmatpush.msra.mxu0 0.0
    %642 = vmatpush.msra.mxu0 0.0
    %643 = vmatpush.msra.mxu0 0.0
    %644 = vmatpush.msra.mxu0 0.0
    %645 = vmatpush.msra.mxu0 0.0
    %646 = vmatpush.msra.mxu0 0.0
    %647 = vmatpush.msra.mxu0 0.0
    %648 = vmatpush.msra.mxu0 0.0
    %649 = vmatpush.msra.mxu0 0.0
    %650 = vmatpush.msra.mxu0 0.0
    %651 = vmatpush.msra.mxu0 0.0
    %652 = vmatpush.msra.mxu0 0.0
    %653 = vmatpush.msra.mxu0 0.0
    %654 = vmatpush.msra.mxu0 0.0
    %655 = vmatpush.msra.mxu0 %v610
    %656 = vmatmul.f32.gmra.mxu0 %v605
    %v657 = vpop.f32.mrf.mxu0
    %v658 = vadd.f32 0.0, %v657
    %659 = vdwg.mxu0
    %660 = vmatpush.msra.mxu0 0.0
    %661 = vmatpush.msra.mxu0 0.0
    %662 = vmatpush.msra.mxu0 0.0
    %663 = vmatpush.msra.mxu0 0.0
    %664 = vmatpush.msra.mxu0 0.0
    %665 = vmatpush.msra.mxu0 0.0
    %666 = vmatpush.msra.mxu0 0.0
    %667 = vmatpush.msra.mxu0 0.0
    %668 = vmatpush.msra.mxu0 0.0
    %669 = vmatpush.msra.mxu0 0.0
    %670 = vmatpush.msra.mxu0 0.0
    %671 = vmatpush.msra.mxu0 0.0
    %672 = vmatpush.msra.mxu0 0.0
    %673 = vmatpush.msra.mxu0 0.0
    %674 = vmatpush.msra.mxu0 0.0
    %675 = vmatpush.msra.mxu0 %v612
    %676 = vmatmul.f32.gmra.mxu0 %v605
    %v677 = vpop.f32.mrf.mxu0
    %v678 = vadd.f32 0.0, %v677
    %679 = vdwg.mxu0
    %680 = vmatpush.msra.mxu0 0.0
    %681 = vmatpush.msra.mxu0 0.0
    %682 = vmatpush.msra.mxu0 0.0
    %683 = vmatpush.msra.mxu0 0.0
    %684 = vmatpush.msra.mxu0 0.0
    %685 = vmatpush.msra.mxu0 0.0
    %686 = vmatpush.msra.mxu0 0.0
    %687 = vmatpush.msra.mxu0 0.0
    %688 = vmatpush.msra.mxu0 0.0
    %689 = vmatpush.msra.mxu0 0.0
    %690 = vmatpush.msra.mxu0 0.0
    %691 = vmatpush.msra.mxu0 0.0
    %692 = vmatpush.msra.mxu0 0.0
    %693 = vmatpush.msra.mxu0 0.0
    %694 = vmatpush.msra.mxu0 0.0
    %695 = vmatpush.msra.mxu0 %v614
    %696 = vmatmul.f32.gmra.mxu0 %v605
    %v697 = vpop.f32.mrf.mxu0
    %v698 = vadd.f32 0.0, %v697
    %699 = vdwg.mxu0
    %700 = vmatpush.msra.mxu0 0.0
    %701 = vmatpush.msra.mxu0 0.0
    %702 = vmatpush.msra.mxu0 0.0
    %703 = vmatpush.msra.mxu0 0.0
    %704 = vmatpush.msra.mxu0 0.0
    %705 = vmatpush.msra.mxu0 0.0
    %706 = vmatpush.msra.mxu0 0.0
    %707 = vmatpush.msra.mxu0 0.0
    %708 = vmatpush.msra.mxu0 0.0
    %709 = vmatpush.msra.mxu0 0.0
    %710 = vmatpush.msra.mxu0 0.0
    %711 = vmatpush.msra.mxu0 0.0
    %712 = vmatpush.msra.mxu0 0.0
    %713 = vmatpush.msra.mxu0 0.0
    %714 = vmatpush.msra.mxu0 0.0
    %715 = vmatpush.msra.mxu0 %v616
    %716 = vmatmul.f32.gmra.mxu0 %v605
    %v717 = vpop.f32.mrf.mxu0
    %v718 = vadd.f32 0.0, %v717
    %719 = vdwg.mxu0
    %720 = vmatpush.msra.mxu0 0.0
    %721 = vmatpush.msra.mxu0 0.0
    %722 = vmatpush.msra.mxu0 0.0
    %723 = vmatpush.msra.mxu0 0.0
    %724 = vmatpush.msra.mxu0 0.0
    %725 = vmatpush.msra.mxu0 0.0
    %726 = vmatpush.msra.mxu0 0.0
    %727 = vmatpush.msra.mxu0 0.0
    %728 = vmatpush.msra.mxu0 0.0
    %729 = vmatpush.msra.mxu0 0.0
    %730 = vmatpush.msra.mxu0 0.0
    %731 = vmatpush.msra.mxu0 0.0
    %732 = vmatpush.msra.mxu0 0.0
    %733 = vmatpush.msra.mxu0 0.0
    %734 = vmatpush.msra.mxu0 0.0
    %735 = vmatpush.msra.mxu0 %v618
    %736 = vmatmul.f32.gmra.mxu0 %v605
    %v737 = vpop.f32.mrf.mxu0
    %v738 = vadd.f32 0.0, %v737
    %739 = vdwg.mxu0
    %v740 = vadd.f32 %v560, %v638
    %v741 = vadd.f32 %v561, %v658
    %v742 = vadd.f32 %v562, %v678
    %v743 = vadd.f32 %v563, %v698
    %v744 = vadd.f32 %v564, %v718
    %v745 = vadd.f32 %v565, %v738
    %s746 = scalar_lea.vmem %s1, 16
    %v747 = vld [vmem:[%s746] sm:$0xf]
    %748 = vst [vmem:[#allocation1] ss:$2 sm:$0xff] %v30
    %s749 = scalar_lea.vmem [#allocation1], 16
    %750 = vst [vmem:[%s749] ss:$2 sm:$0xff] %v31
    %s751 = scalar_lea.vmem [#allocation1], 32
    %752 = vst [vmem:[%s751] ss:$2 sm:$0xff] %v32
    %v753 = vld.sshfl [vmem:[#allocation1] sm:$0xff pattern:$0x75316420]
    %v754 = vld.sshfl [vmem:[#allocation1 + $0x8] sm:$0xff pattern:$0x75316420]
    %v755 = vld.sshfl [vmem:[#allocation1 + $0x10] sm:$0xff pattern:$0x75316420]
    %v756 = vld.sshfl [vmem:[#allocation1 + $0x18] sm:$0xff pattern:$0x75316420]
    %v757 = vld.sshfl [vmem:[#allocation1 + $0x20] sm:$0xff pattern:$0x75316420]
    %v758 = vld.sshfl [vmem:[#allocation1 + $0x28] sm:$0xff pattern:$0x75316420]
    %v760 = vsel %vm112, %v747, 0
    %v762 = vsel %vm116, %v753, 0
    %v764 = vsel %vm116, %v754, 0
    %v766 = vsel %vm116, %v755, 0
    %v768 = vsel %vm116, %v756, 0
    %v770 = vsel %vm116, %v757, 0
    %v772 = vsel %vm116, %v758, 0
    %774 = vmatpush.msra.mxu0 0.0
    %775 = vmatpush.msra.mxu0 0.0
    %776 = vmatpush.msra.mxu0 0.0
    %777 = vmatpush.msra.mxu0 0.0
    %778 = vmatpush.msra.mxu0 0.0
    %779 = vmatpush.msra.mxu0 0.0
    %780 = vmatpush.msra.mxu0 0.0
    %781 = vmatpush.msra.mxu0 0.0
    %782 = vmatpush.msra.mxu0 0.0
    %783 = vmatpush.msra.mxu0 0.0
    %784 = vmatpush.msra.mxu0 0.0
    %785 = vmatpush.msra.mxu0 0.0
    %786 = vmatpush.msra.mxu0 0.0
    %787 = vmatpush.msra.mxu0 0.0
    %788 = vmatpush.msra.mxu0 0.0
    %789 = vmatpush.msra.mxu0 %v762
    %790 = vmatmul.f32.gmra.mxu0 %v760
    %v791 = vpop.f32.mrf.mxu0
    %v792 = vadd.f32 0.0, %v791
    %793 = vdwg.mxu0
    %794 = vmatpush.msra.mxu0 0.0
    %795 = vmatpush.msra.mxu0 0.0
    %796 = vmatpush.msra.mxu0 0.0
    %797 = vmatpush.msra.mxu0 0.0
    %798 = vmatpush.msra.mxu0 0.0
    %799 = vmatpush.msra.mxu0 0.0
    %800 = vmatpush.msra.mxu0 0.0
    %801 = vmatpush.msra.mxu0 0.0
    %802 = vmatpush.msra.mxu0 0.0
    %803 = vmatpush.msra.mxu0 0.0
    %804 = vmatpush.msra.mxu0 0.0
    %805 = vmatpush.msra.mxu0 0.0
    %806 = vmatpush.msra.mxu0 0.0
    %807 = vmatpush.msra.mxu0 0.0
    %808 = vmatpush.msra.mxu0 0.0
    %809 = vmatpush.msra.mxu0 %v764
    %810 = vmatmul.f32.gmra.mxu0 %v760
    %v811 = vpop.f32.mrf.mxu0
    %v812 = vadd.f32 0.0, %v811
    %813 = vdwg.mxu0
    %814 = vmatpush.msra.mxu0 0.0
    %815 = vmatpush.msra.mxu0 0.0
    %816 = vmatpush.msra.mxu0 0.0
    %817 = vmatpush.msra.mxu0 0.0
    %818 = vmatpush.msra.mxu0 0.0
    %819 = vmatpush.msra.mxu0 0.0
    %820 = vmatpush.msra.mxu0 0.0
    %821 = vmatpush.msra.mxu0 0.0
    %822 = vmatpush.msra.mxu0 0.0
    %823 = vmatpush.msra.mxu0 0.0
    %824 = vmatpush.msra.mxu0 0.0
    %825 = vmatpush.msra.mxu0 0.0
    %826 = vmatpush.msra.mxu0 0.0
    %827 = vmatpush.msra.mxu0 0.0
    %828 = vmatpush.msra.mxu0 0.0
    %829 = vmatpush.msra.mxu0 %v766
    %830 = vmatmul.f32.gmra.mxu0 %v760
    %v831 = vpop.f32.mrf.mxu0
    %v832 = vadd.f32 0.0, %v831
    %833 = vdwg.mxu0
    %834 = vmatpush.msra.mxu0 0.0
    %835 = vmatpush.msra.mxu0 0.0
    %836 = vmatpush.msra.mxu0 0.0
    %837 = vmatpush.msra.mxu0 0.0
    %838 = vmatpush.msra.mxu0 0.0
    %839 = vmatpush.msra.mxu0 0.0
    %840 = vmatpush.msra.mxu0 0.0
    %841 = vmatpush.msra.mxu0 0.0
    %842 = vmatpush.msra.mxu0 0.0
    %843 = vmatpush.msra.mxu0 0.0
    %844 = vmatpush.msra.mxu0 0.0
    %845 = vmatpush.msra.mxu0 0.0
    %846 = vmatpush.msra.mxu0 0.0
    %847 = vmatpush.msra.mxu0 0.0
    %848 = vmatpush.msra.mxu0 0.0
    %849 = vmatpush.msra.mxu0 %v768
    %850 = vmatmul.f32.gmra.mxu0 %v760
    %v851 = vpop.f32.mrf.mxu0
    %v852 = vadd.f32 0.0, %v851
    %853 = vdwg.mxu0
    %854 = vmatpush.msra.mxu0 0.0
    %855 = vmatpush.msra.mxu0 0.0
    %856 = vmatpush.msra.mxu0 0.0
    %857 = vmatpush.msra.mxu0 0.0
    %858 = vmatpush.msra.mxu0 0.0
    %859 = vmatpush.msra.mxu0 0.0
    %860 = vmatpush.msra.mxu0 0.0
    %861 = vmatpush.msra.mxu0 0.0
    %862 = vmatpush.msra.mxu0 0.0
    %863 = vmatpush.msra.mxu0 0.0
    %864 = vmatpush.msra.mxu0 0.0
    %865 = vmatpush.msra.mxu0 0.0
    %866 = vmatpush.msra.mxu0 0.0
    %867 = vmatpush.msra.mxu0 0.0
    %868 = vmatpush.msra.mxu0 0.0
    %869 = vmatpush.msra.mxu0 %v770
    %870 = vmatmul.f32.gmra.mxu0 %v760
    %v871 = vpop.f32.mrf.mxu0
    %v872 = vadd.f32 0.0, %v871
    %873 = vdwg.mxu0
    %874 = vmatpush.msra.mxu0 0.0
    %875 = vmatpush.msra.mxu0 0.0
    %876 = vmatpush.msra.mxu0 0.0
    %877 = vmatpush.msra.mxu0 0.0
    %878 = vmatpush.msra.mxu0 0.0
    %879 = vmatpush.msra.mxu0 0.0
    %880 = vmatpush.msra.mxu0 0.0
    %881 = vmatpush.msra.mxu0 0.0
    %882 = vmatpush.msra.mxu0 0.0
    %883 = vmatpush.msra.mxu0 0.0
    %884 = vmatpush.msra.mxu0 0.0
    %885 = vmatpush.msra.mxu0 0.0
    %886 = vmatpush.msra.mxu0 0.0
    %887 = vmatpush.msra.mxu0 0.0
    %888 = vmatpush.msra.mxu0 0.0
    %889 = vmatpush.msra.mxu0 %v772
    %890 = vmatmul.f32.gmra.mxu0 %v760
    %v891 = vpop.f32.mrf.mxu0
    %v892 = vadd.f32 0.0, %v891
    %893 = vdwg.mxu0
    %v894 = vadd.f32 %v740, %v792
    %v895 = vadd.f32 %v741, %v812
    %v896 = vadd.f32 %v742, %v832
    %v897 = vadd.f32 %v743, %v852
    %v898 = vadd.f32 %v744, %v872
    %v899 = vadd.f32 %v745, %v892
    %900 = vst [vmem:[#allocation1] ss:$2 sm:$0xff] %v30
    %s901 = scalar_lea.vmem [#allocation1], 16
    %902 = vst [vmem:[%s901] ss:$2 sm:$0xff] %v31
    %s903 = scalar_lea.vmem [#allocation1], 32
    %904 = vst [vmem:[%s903] ss:$2 sm:$0xff] %v32
    %v905 = vld.sshfl [vmem:[#allocation1] sm:$0xff pattern:$0x75316420]
    %v906 = vld.sshfl [vmem:[#allocation1 + $0x8] sm:$0xff pattern:$0x75316420]
    %v907 = vld.sshfl [vmem:[#allocation1 + $0x10] sm:$0xff pattern:$0x75316420]
    %v908 = vld.sshfl [vmem:[#allocation1 + $0x18] sm:$0xff pattern:$0x75316420]
    %v909 = vld.sshfl [vmem:[#allocation1 + $0x20] sm:$0xff pattern:$0x75316420]
    %v910 = vld.sshfl [vmem:[#allocation1 + $0x28] sm:$0xff pattern:$0x75316420]
    %911 = vrot.lane.b32.xlu0 %v905, 127
    %v912 = vpop.permute.xlu0 %911
    %913 = vrot.lane.b32.xlu0 %v906, 127
    %v914 = vpop.permute.xlu0 %913
    %915 = vrot.lane.b32.xlu0 %v907, 127
    %v916 = vpop.permute.xlu0 %915
    %917 = vrot.lane.b32.xlu0 %v908, 127
    %v918 = vpop.permute.xlu0 %917
    %919 = vrot.lane.b32.xlu0 %v909, 127
    %v920 = vpop.permute.xlu0 %919
    %921 = vrot.lane.b32.xlu0 %v910, 127
    %v922 = vpop.permute.xlu0 %921
    %vm923 = vcmask 1039360
    %v924 = vsel %vm923, %v912, %v914
    %v925 = vsel %vm923, %v914, %v916
    %v926 = vsel %vm923, %v916, %v918
    %v927 = vsel %vm923, %v918, %v920
    %v928 = vsel %vm923, %v920, %v922
    %930 = vst [vmem:[#allocation1] ss:$2 sm:$0xff] %v30
    %v931 = vld.sshfl [vmem:[#allocation1] sm:$0xff pattern:$0x75316420]
    %932 = vrot.lane.b32.xlu0 %v931, 127
    %v933 = vpop.permute.xlu0 %932
    %v935 = vsel %vm923, %v922, %v933
    %s936 = scalar_lea.vmem %s1, 20
    %v937 = vld [vmem:[%s936] sm:$0xf]
    %v939 = vsel %vm112, %v937, 0
    %v941 = vsel %vm116, %v924, 0
    %v943 = vsel %vm116, %v925, 0
    %v945 = vsel %vm116, %v926, 0
    %v947 = vsel %vm116, %v927, 0
    %v949 = vsel %vm116, %v928, 0
    %v952 = vsel %vm116, %v935, 0
    %954 = vmatpush.msra.mxu0 0.0
    %955 = vmatpush.msra.mxu0 0.0
    %956 = vmatpush.msra.mxu0 0.0
    %957 = vmatpush.msra.mxu0 0.0
    %958 = vmatpush.msra.mxu0 0.0
    %959 = vmatpush.msra.mxu0 0.0
    %960 = vmatpush.msra.mxu0 0.0
    %961 = vmatpush.msra.mxu0 0.0
    %962 = vmatpush.msra.mxu0 0.0
    %963 = vmatpush.msra.mxu0 0.0
    %964 = vmatpush.msra.mxu0 0.0
    %965 = vmatpush.msra.mxu0 0.0
    %966 = vmatpush.msra.mxu0 0.0
    %967 = vmatpush.msra.mxu0 0.0
    %968 = vmatpush.msra.mxu0 0.0
    %969 = vmatpush.msra.mxu0 %v941
    %970 = vmatmul.f32.gmra.mxu0 %v939
    %v971 = vpop.f32.mrf.mxu0
    %v972 = vadd.f32 0.0, %v971
    %973 = vdwg.mxu0
    %974 = vmatpush.msra.mxu0 0.0
    %975 = vmatpush.msra.mxu0 0.0
    %976 = vmatpush.msra.mxu0 0.0
    %977 = vmatpush.msra.mxu0 0.0
    %978 = vmatpush.msra.mxu0 0.0
    %979 = vmatpush.msra.mxu0 0.0
    %980 = vmatpush.msra.mxu0 0.0
    %981 = vmatpush.msra.mxu0 0.0
    %982 = vmatpush.msra.mxu0 0.0
    %983 = vmatpush.msra.mxu0 0.0
    %984 = vmatpush.msra.mxu0 0.0
    %985 = vmatpush.msra.mxu0 0.0
    %986 = vmatpush.msra.mxu0 0.0
    %987 = vmatpush.msra.mxu0 0.0
    %988 = vmatpush.msra.mxu0 0.0
    %989 = vmatpush.msra.mxu0 %v943
    %990 = vmatmul.f32.gmra.mxu0 %v939
    %v991 = vpop.f32.mrf.mxu0
    %v992 = vadd.f32 0.0, %v991
    %993 = vdwg.mxu0
    %994 = vmatpush.msra.mxu0 0.0
    %995 = vmatpush.msra.mxu0 0.0
    %996 = vmatpush.msra.mxu0 0.0
    %997 = vmatpush.msra.mxu0 0.0
    %998 = vmatpush.msra.mxu0 0.0
    %999 = vmatpush.msra.mxu0 0.0
    %1000 = vmatpush.msra.mxu0 0.0
    %1001 = vmatpush.msra.mxu0 0.0
    %1002 = vmatpush.msra.mxu0 0.0
    %1003 = vmatpush.msra.mxu0 0.0
    %1004 = vmatpush.msra.mxu0 0.0
    %1005 = vmatpush.msra.mxu0 0.0
    %1006 = vmatpush.msra.mxu0 0.0
    %1007 = vmatpush.msra.mxu0 0.0
    %1008 = vmatpush.msra.mxu0 0.0
    %1009 = vmatpush.msra.mxu0 %v945
    %1010 = vmatmul.f32.gmra.mxu0 %v939
    %v1011 = vpop.f32.mrf.mxu0
    %v1012 = vadd.f32 0.0, %v1011
    %1013 = vdwg.mxu0
    %1014 = vmatpush.msra.mxu0 0.0
    %1015 = vmatpush.msra.mxu0 0.0
    %1016 = vmatpush.msra.mxu0 0.0
    %1017 = vmatpush.msra.mxu0 0.0
    %1018 = vmatpush.msra.mxu0 0.0
    %1019 = vmatpush.msra.mxu0 0.0
    %1020 = vmatpush.msra.mxu0 0.0
    %1021 = vmatpush.msra.mxu0 0.0
    %1022 = vmatpush.msra.mxu0 0.0
    %1023 = vmatpush.msra.mxu0 0.0
    %1024 = vmatpush.msra.mxu0 0.0
    %1025 = vmatpush.msra.mxu0 0.0
    %1026 = vmatpush.msra.mxu0 0.0
    %1027 = vmatpush.msra.mxu0 0.0
    %1028 = vmatpush.msra.mxu0 0.0
    %1029 = vmatpush.msra.mxu0 %v947
    %1030 = vmatmul.f32.gmra.mxu0 %v939
    %v1031 = vpop.f32.mrf.mxu0
    %v1032 = vadd.f32 0.0, %v1031
    %1033 = vdwg.mxu0
    %1034 = vmatpush.msra.mxu0 0.0
    %1035 = vmatpush.msra.mxu0 0.0
    %1036 = vmatpush.msra.mxu0 0.0
    %1037 = vmatpush.msra.mxu0 0.0
    %1038 = vmatpush.msra.mxu0 0.0
    %1039 = vmatpush.msra.mxu0 0.0
    %1040 = vmatpush.msra.mxu0 0.0
    %1041 = vmatpush.msra.mxu0 0.0
    %1042 = vmatpush.msra.mxu0 0.0
    %1043 = vmatpush.msra.mxu0 0.0
    %1044 = vmatpush.msra.mxu0 0.0
    %1045 = vmatpush.msra.mxu0 0.0
    %1046 = vmatpush.msra.mxu0 0.0
    %1047 = vmatpush.msra.mxu0 0.0
    %1048 = vmatpush.msra.mxu0 0.0
    %1049 = vmatpush.msra.mxu0 %v949
    %1050 = vmatmul.f32.gmra.mxu0 %v939
    %v1051 = vpop.f32.mrf.mxu0
    %v1052 = vadd.f32 0.0, %v1051
    %1053 = vdwg.mxu0
    %1054 = vmatpush.msra.mxu0 0.0
    %1055 = vmatpush.msra.mxu0 0.0
    %1056 = vmatpush.msra.mxu0 0.0
    %1057 = vmatpush.msra.mxu0 0.0
    %1058 = vmatpush.msra.mxu0 0.0
    %1059 = vmatpush.msra.mxu0 0.0
    %1060 = vmatpush.msra.mxu0 0.0
    %1061 = vmatpush.msra.mxu0 0.0
    %1062 = vmatpush.msra.mxu0 0.0
    %1063 = vmatpush.msra.mxu0 0.0
    %1064 = vmatpush.msra.mxu0 0.0
    %1065 = vmatpush.msra.mxu0 0.0
    %1066 = vmatpush.msra.mxu0 0.0
    %1067 = vmatpush.msra.mxu0 0.0
    %1068 = vmatpush.msra.mxu0 0.0
    %1069 = vmatpush.msra.mxu0 %v952
    %1070 = vmatmul.f32.gmra.mxu0 %v939
    %v1071 = vpop.f32.mrf.mxu0
    %v1072 = vadd.f32 0.0, %v1071
    %1073 = vdwg.mxu0
    %v1074 = vadd.f32 %v894, %v972
    %v1075 = vadd.f32 %v895, %v992
    %v1076 = vadd.f32 %v896, %v1012
    %v1077 = vadd.f32 %v897, %v1032
    %v1078 = vadd.f32 %v898, %v1052
    %v1079 = vadd.f32 %v899, %v1072
    %1080 = vst [vmem:[#allocation1] ss:$2 sm:$0xff] %v30
    %s1081 = scalar_lea.vmem [#allocation1], 16
    %1082 = vst [vmem:[%s1081] ss:$2 sm:$0xff] %v31
    %s1083 = scalar_lea.vmem [#allocation1], 32
    %1084 = vst [vmem:[%s1083] ss:$2 sm:$0xff] %v32
    %v1085 = vld.sshfl [vmem:[#allocation1] sm:$0xff pattern:$0x75316420]
    %v1086 = vld.sshfl [vmem:[#allocation1 + $0x8] sm:$0xff pattern:$0x75316420]
    %v1087 = vld.sshfl [vmem:[#allocation1 + $0x10] sm:$0xff pattern:$0x75316420]
    %v1088 = vld.sshfl [vmem:[#allocation1 + $0x18] sm:$0xff pattern:$0x75316420]
    %v1089 = vld.sshfl [vmem:[#allocation1 + $0x20] sm:$0xff pattern:$0x75316420]
    %v1090 = vld.sshfl [vmem:[#allocation1 + $0x28] sm:$0xff pattern:$0x75316420]
    %1091 = vrot.lane.b32.xlu0 %v1085, 111
    %v1092 = vpop.permute.xlu0 %1091
    %1093 = vrot.lane.b32.xlu0 %v1086, 111
    %v1094 = vpop.permute.xlu0 %1093
    %1095 = vrot.lane.b32.xlu0 %v1087, 111
    %v1096 = vpop.permute.xlu0 %1095
    %1097 = vrot.lane.b32.xlu0 %v1088, 111
    %v1098 = vpop.permute.xlu0 %1097
    %1099 = vrot.lane.b32.xlu0 %v1089, 111
    %v1100 = vpop.permute.xlu0 %1099
    %1101 = vrot.lane.b32.xlu0 %v1090, 111
    %v1102 = vpop.permute.xlu0 %1101
    %vm1103 = vcmask 908288
    %v1104 = vsel %vm1103, %v1092, %v1094
    %v1105 = vsel %vm1103, %v1094, %v1096
    %v1106 = vsel %vm1103, %v1096, %v1098
    %v1107 = vsel %vm1103, %v1098, %v1100
    %v1108 = vsel %vm1103, %v1100, %v1102
    %1110 = vst [vmem:[#allocation1] ss:$2 sm:$0xff] %v30
    %v1111 = vld.sshfl [vmem:[#allocation1] sm:$0xff pattern:$0x75316420]
    %1112 = vrot.lane.b32.xlu0 %v1111, 111
    %v1113 = vpop.permute.xlu0 %1112
    %v1115 = vsel %vm1103, %v1102, %v1113
    %s1116 = scalar_lea.vmem %s1, 24
    %v1117 = vld [vmem:[%s1116] sm:$0xf]
    %v1119 = vsel %vm112, %v1117, 0
    %v1121 = vsel %vm116, %v1104, 0
    %v1123 = vsel %vm116, %v1105, 0
    %v1125 = vsel %vm116, %v1106, 0
    %v1127 = vsel %vm116, %v1107, 0
    %v1129 = vsel %vm116, %v1108, 0
    %v1132 = vsel %vm116, %v1115, 0
    %1134 = vmatpush.msra.mxu0 0.0
    %1135 = vmatpush.msra.mxu0 0.0
    %1136 = vmatpush.msra.mxu0 0.0
    %1137 = vmatpush.msra.mxu0 0.0
    %1138 = vmatpush.msra.mxu0 0.0
    %1139 = vmatpush.msra.mxu0 0.0
    %1140 = vmatpush.msra.mxu0 0.0
    %1141 = vmatpush.msra.mxu0 0.0
    %1142 = vmatpush.msra.mxu0 0.0
    %1143 = vmatpush.msra.mxu0 0.0
    %1144 = vmatpush.msra.mxu0 0.0
    %1145 = vmatpush.msra.mxu0 0.0
    %1146 = vmatpush.msra.mxu0 0.0
    %1147 = vmatpush.msra.mxu0 0.0
    %1148 = vmatpush.msra.mxu0 0.0
    %1149 = vmatpush.msra.mxu0 %v1121
    %1150 = vmatmul.f32.gmra.mxu0 %v1119
    %v1151 = vpop.f32.mrf.mxu0
    %v1152 = vadd.f32 0.0, %v1151
    %1153 = vdwg.mxu0
    %1154 = vmatpush.msra.mxu0 0.0
    %1155 = vmatpush.msra.mxu0 0.0
    %1156 = vmatpush.msra.mxu0 0.0
    %1157 = vmatpush.msra.mxu0 0.0
    %1158 = vmatpush.msra.mxu0 0.0
    %1159 = vmatpush.msra.mxu0 0.0
    %1160 = vmatpush.msra.mxu0 0.0
    %1161 = vmatpush.msra.mxu0 0.0
    %1162 = vmatpush.msra.mxu0 0.0
    %1163 = vmatpush.msra.mxu0 0.0
    %1164 = vmatpush.msra.mxu0 0.0
    %1165 = vmatpush.msra.mxu0 0.0
    %1166 = vmatpush.msra.mxu0 0.0
    %1167 = vmatpush.msra.mxu0 0.0
    %1168 = vmatpush.msra.mxu0 0.0
    %1169 = vmatpush.msra.mxu0 %v1123
    %1170 = vmatmul.f32.gmra.mxu0 %v1119
    %v1171 = vpop.f32.mrf.mxu0
    %v1172 = vadd.f32 0.0, %v1171
    %1173 = vdwg.mxu0
    %1174 = vmatpush.msra.mxu0 0.0
    %1175 = vmatpush.msra.mxu0 0.0
    %1176 = vmatpush.msra.mxu0 0.0
    %1177 = vmatpush.msra.mxu0 0.0
    %1178 = vmatpush.msra.mxu0 0.0
    %1179 = vmatpush.msra.mxu0 0.0
    %1180 = vmatpush.msra.mxu0 0.0
    %1181 = vmatpush.msra.mxu0 0.0
    %1182 = vmatpush.msra.mxu0 0.0
    %1183 = vmatpush.msra.mxu0 0.0
    %1184 = vmatpush.msra.mxu0 0.0
    %1185 = vmatpush.msra.mxu0 0.0
    %1186 = vmatpush.msra.mxu0 0.0
    %1187 = vmatpush.msra.mxu0 0.0
    %1188 = vmatpush.msra.mxu0 0.0
    %1189 = vmatpush.msra.mxu0 %v1125
    %1190 = vmatmul.f32.gmra.mxu0 %v1119
    %v1191 = vpop.f32.mrf.mxu0
    %v1192 = vadd.f32 0.0, %v1191
    %1193 = vdwg.mxu0
    %1194 = vmatpush.msra.mxu0 0.0
    %1195 = vmatpush.msra.mxu0 0.0
    %1196 = vmatpush.msra.mxu0 0.0
    %1197 = vmatpush.msra.mxu0 0.0
    %1198 = vmatpush.msra.mxu0 0.0
    %1199 = vmatpush.msra.mxu0 0.0
    %1200 = vmatpush.msra.mxu0 0.0
    %1201 = vmatpush.msra.mxu0 0.0
    %1202 = vmatpush.msra.mxu0 0.0
    %1203 = vmatpush.msra.mxu0 0.0
    %1204 = vmatpush.msra.mxu0 0.0
    %1205 = vmatpush.msra.mxu0 0.0
    %1206 = vmatpush.msra.mxu0 0.0
    %1207 = vmatpush.msra.mxu0 0.0
    %1208 = vmatpush.msra.mxu0 0.0
    %1209 = vmatpush.msra.mxu0 %v1127
    %1210 = vmatmul.f32.gmra.mxu0 %v1119
    %v1211 = vpop.f32.mrf.mxu0
    %v1212 = vadd.f32 0.0, %v1211
    %1213 = vdwg.mxu0
    %1214 = vmatpush.msra.mxu0 0.0
    %1215 = vmatpush.msra.mxu0 0.0
    %1216 = vmatpush.msra.mxu0 0.0
    %1217 = vmatpush.msra.mxu0 0.0
    %1218 = vmatpush.msra.mxu0 0.0
    %1219 = vmatpush.msra.mxu0 0.0
    %1220 = vmatpush.msra.mxu0 0.0
    %1221 = vmatpush.msra.mxu0 0.0
    %1222 = vmatpush.msra.mxu0 0.0
    %1223 = vmatpush.msra.mxu0 0.0
    %1224 = vmatpush.msra.mxu0 0.0
    %1225 = vmatpush.msra.mxu0 0.0
    %1226 = vmatpush.msra.mxu0 0.0
    %1227 = vmatpush.msra.mxu0 0.0
    %1228 = vmatpush.msra.mxu0 0.0
    %1229 = vmatpush.msra.mxu0 %v1129
    %1230 = vmatmul.f32.gmra.mxu0 %v1119
    %v1231 = vpop.f32.mrf.mxu0
    %v1232 = vadd.f32 0.0, %v1231
    %1233 = vdwg.mxu0
    %1234 = vmatpush.msra.mxu0 0.0
    %1235 = vmatpush.msra.mxu0 0.0
    %1236 = vmatpush.msra.mxu0 0.0
    %1237 = vmatpush.msra.mxu0 0.0
    %1238 = vmatpush.msra.mxu0 0.0
    %1239 = vmatpush.msra.mxu0 0.0
    %1240 = vmatpush.msra.mxu0 0.0
    %1241 = vmatpush.msra.mxu0 0.0
    %1242 = vmatpush.msra.mxu0 0.0
    %1243 = vmatpush.msra.mxu0 0.0
    %1244 = vmatpush.msra.mxu0 0.0
    %1245 = vmatpush.msra.mxu0 0.0
    %1246 = vmatpush.msra.mxu0 0.0
    %1247 = vmatpush.msra.mxu0 0.0
    %1248 = vmatpush.msra.mxu0 0.0
    %1249 = vmatpush.msra.mxu0 %v1132
    %1250 = vmatmul.f32.gmra.mxu0 %v1119
    %v1251 = vpop.f32.mrf.mxu0
    %v1252 = vadd.f32 0.0, %v1251
    %1253 = vdwg.mxu0
    %v1254 = vadd.f32 %v1074, %v1152
    %v1255 = vadd.f32 %v1075, %v1172
    %v1256 = vadd.f32 %v1076, %v1192
    %v1257 = vadd.f32 %v1077, %v1212
    %v1258 = vadd.f32 %v1078, %v1232
    %v1259 = vadd.f32 %v1079, %v1252
    %1260 = vst [vmem:[#allocation1] ss:$2 sm:$0xff] %v30
    %s1261 = scalar_lea.vmem [#allocation1], 16
    %1262 = vst [vmem:[%s1261] ss:$2 sm:$0xff] %v31
    %s1263 = scalar_lea.vmem [#allocation1], 32
    %1264 = vst [vmem:[%s1263] ss:$2 sm:$0xff] %v32
    %v1265 = vld.sshfl [vmem:[#allocation1] sm:$0xff pattern:$0x75316420]
    %v1266 = vld.sshfl [vmem:[#allocation1 + $0x8] sm:$0xff pattern:$0x75316420]
    %v1267 = vld.sshfl [vmem:[#allocation1 + $0x10] sm:$0xff pattern:$0x75316420]
    %v1268 = vld.sshfl [vmem:[#allocation1 + $0x18] sm:$0xff pattern:$0x75316420]
    %v1269 = vld.sshfl [vmem:[#allocation1 + $0x20] sm:$0xff pattern:$0x75316420]
    %v1270 = vld.sshfl [vmem:[#allocation1 + $0x28] sm:$0xff pattern:$0x75316420]
    %1271 = vrot.lane.b32.xlu0 %v1265, 110
    %v1272 = vpop.permute.xlu0 %1271
    %1273 = vrot.lane.b32.xlu0 %v1266, 110
    %v1274 = vpop.permute.xlu0 %1273
    %1275 = vrot.lane.b32.xlu0 %v1267, 110
    %v1276 = vpop.permute.xlu0 %1275
    %1277 = vrot.lane.b32.xlu0 %v1268, 110
    %v1278 = vpop.permute.xlu0 %1277
    %1279 = vrot.lane.b32.xlu0 %v1269, 110
    %v1280 = vpop.permute.xlu0 %1279
    %1281 = vrot.lane.b32.xlu0 %v1270, 110
    %v1282 = vpop.permute.xlu0 %1281
    %vm1283 = vcmask 900096
    %v1284 = vsel %vm1283, %v1272, %v1274
    %v1285 = vsel %vm1283, %v1274, %v1276
    %v1286 = vsel %vm1283, %v1276, %v1278
    %v1287 = vsel %vm1283, %v1278, %v1280
    %v1288 = vsel %vm1283, %v1280, %v1282
    %1290 = vst [vmem:[#allocation1] ss:$2 sm:$0xff] %v30
    %v1291 = vld.sshfl [vmem:[#allocation1] sm:$0xff pattern:$0x75316420]
    %1292 = vrot.lane.b32.xlu0 %v1291, 110
    %v1293 = vpop.permute.xlu0 %1292
    %v1295 = vsel %vm1283, %v1282, %v1293
    %s1296 = scalar_lea.vmem %s1, 28
    %v1297 = vld [vmem:[%s1296] sm:$0xf]
    %v1299 = vsel %vm112, %v1297, 0
    %v1301 = vsel %vm116, %v1284, 0
    %v1303 = vsel %vm116, %v1285, 0
    %v1305 = vsel %vm116, %v1286, 0
    %v1307 = vsel %vm116, %v1287, 0
    %v1309 = vsel %vm116, %v1288, 0
    %v1312 = vsel %vm116, %v1295, 0
    %1314 = vmatpush.msra.mxu0 0.0
    %1315 = vmatpush.msra.mxu0 0.0
    %1316 = vmatpush.msra.mxu0 0.0
    %1317 = vmatpush.msra.mxu0 0.0
    %1318 = vmatpush.msra.mxu0 0.0
    %1319 = vmatpush.msra.mxu0 0.0
    %1320 = vmatpush.msra.mxu0 0.0
    %1321 = vmatpush.msra.mxu0 0.0
    %1322 = vmatpush.msra.mxu0 0.0
    %1323 = vmatpush.msra.mxu0 0.0
    %1324 = vmatpush.msra.mxu0 0.0
    %1325 = vmatpush.msra.mxu0 0.0
    %1326 = vmatpush.msra.mxu0 0.0
    %1327 = vmatpush.msra.mxu0 0.0
    %1328 = vmatpush.msra.mxu0 0.0
    %1329 = vmatpush.msra.mxu0 %v1301
    %1330 = vmatmul.f32.gmra.mxu0 %v1299
    %v1331 = vpop.f32.mrf.mxu0
    %v1332 = vadd.f32 0.0, %v1331
    %1333 = vdwg.mxu0
    %1334 = vmatpush.msra.mxu0 0.0
    %1335 = vmatpush.msra.mxu0 0.0
    %1336 = vmatpush.msra.mxu0 0.0
    %1337 = vmatpush.msra.mxu0 0.0
    %1338 = vmatpush.msra.mxu0 0.0
    %1339 = vmatpush.msra.mxu0 0.0
    %1340 = vmatpush.msra.mxu0 0.0
    %1341 = vmatpush.msra.mxu0 0.0
    %1342 = vmatpush.msra.mxu0 0.0
    %1343 = vmatpush.msra.mxu0 0.0
    %1344 = vmatpush.msra.mxu0 0.0
    %1345 = vmatpush.msra.mxu0 0.0
    %1346 = vmatpush.msra.mxu0 0.0
    %1347 = vmatpush.msra.mxu0 0.0
    %1348 = vmatpush.msra.mxu0 0.0
    %1349 = vmatpush.msra.mxu0 %v1303
    %1350 = vmatmul.f32.gmra.mxu0 %v1299
    %v1351 = vpop.f32.mrf.mxu0
    %v1352 = vadd.f32 0.0, %v1351
    %1353 = vdwg.mxu0
    %1354 = vmatpush.msra.mxu0 0.0
    %1355 = vmatpush.msra.mxu0 0.0
    %1356 = vmatpush.msra.mxu0 0.0
    %1357 = vmatpush.msra.mxu0 0.0
    %1358 = vmatpush.msra.mxu0 0.0
    %1359 = vmatpush.msra.mxu0 0.0
    %1360 = vmatpush.msra.mxu0 0.0
    %1361 = vmatpush.msra.mxu0 0.0
    %1362 = vmatpush.msra.mxu0 0.0
    %1363 = vmatpush.msra.mxu0 0.0
    %1364 = vmatpush.msra.mxu0 0.0
    %1365 = vmatpush.msra.mxu0 0.0
    %1366 = vmatpush.msra.mxu0 0.0
    %1367 = vmatpush.msra.mxu0 0.0
    %1368 = vmatpush.msra.mxu0 0.0
    %1369 = vmatpush.msra.mxu0 %v1305
    %1370 = vmatmul.f32.gmra.mxu0 %v1299
    %v1371 = vpop.f32.mrf.mxu0
    %v1372 = vadd.f32 0.0, %v1371
    %1373 = vdwg.mxu0
    %1374 = vmatpush.msra.mxu0 0.0
    %1375 = vmatpush.msra.mxu0 0.0
    %1376 = vmatpush.msra.mxu0 0.0
    %1377 = vmatpush.msra.mxu0 0.0
    %1378 = vmatpush.msra.mxu0 0.0
    %1379 = vmatpush.msra.mxu0 0.0
    %1380 = vmatpush.msra.mxu0 0.0
    %1381 = vmatpush.msra.mxu0 0.0
    %1382 = vmatpush.msra.mxu0 0.0
    %1383 = vmatpush.msra.mxu0 0.0
    %1384 = vmatpush.msra.mxu0 0.0
    %1385 = vmatpush.msra.mxu0 0.0
    %1386 = vmatpush.msra.mxu0 0.0
    %1387 = vmatpush.msra.mxu0 0.0
    %1388 = vmatpush.msra.mxu0 0.0
    %1389 = vmatpush.msra.mxu0 %v1307
    %1390 = vmatmul.f32.gmra.mxu0 %v1299
    %v1391 = vpop.f32.mrf.mxu0
    %v1392 = vadd.f32 0.0, %v1391
    %1393 = vdwg.mxu0
    %1394 = vmatpush.msra.mxu0 0.0
    %1395 = vmatpush.msra.mxu0 0.0
    %1396 = vmatpush.msra.mxu0 0.0
    %1397 = vmatpush.msra.mxu0 0.0
    %1398 = vmatpush.msra.mxu0 0.0
    %1399 = vmatpush.msra.mxu0 0.0
    %1400 = vmatpush.msra.mxu0 0.0
    %1401 = vmatpush.msra.mxu0 0.0
    %1402 = vmatpush.msra.mxu0 0.0
    %1403 = vmatpush.msra.mxu0 0.0
    %1404 = vmatpush.msra.mxu0 0.0
    %1405 = vmatpush.msra.mxu0 0.0
    %1406 = vmatpush.msra.mxu0 0.0
    %1407 = vmatpush.msra.mxu0 0.0
    %1408 = vmatpush.msra.mxu0 0.0
    %1409 = vmatpush.msra.mxu0 %v1309
    %1410 = vmatmul.f32.gmra.mxu0 %v1299
    %v1411 = vpop.f32.mrf.mxu0
    %v1412 = vadd.f32 0.0, %v1411
    %1413 = vdwg.mxu0
    %1414 = vmatpush.msra.mxu0 0.0
    %1415 = vmatpush.msra.mxu0 0.0
    %1416 = vmatpush.msra.mxu0 0.0
    %1417 = vmatpush.msra.mxu0 0.0
    %1418 = vmatpush.msra.mxu0 0.0
    %1419 = vmatpush.msra.mxu0 0.0
    %1420 = vmatpush.msra.mxu0 0.0
    %1421 = vmatpush.msra.mxu0 0.0
    %1422 = vmatpush.msra.mxu0 0.0
    %1423 = vmatpush.msra.mxu0 0.0
    %1424 = vmatpush.msra.mxu0 0.0
    %1425 = vmatpush.msra.mxu0 0.0
    %1426 = vmatpush.msra.mxu0 0.0
    %1427 = vmatpush.msra.mxu0 0.0
    %1428 = vmatpush.msra.mxu0 0.0
    %1429 = vmatpush.msra.mxu0 %v1312
    %1430 = vmatmul.f32.gmra.mxu0 %v1299
    %v1431 = vpop.f32.mrf.mxu0
    %v1432 = vadd.f32 0.0, %v1431
    %1433 = vdwg.mxu0
    %v1434 = vadd.f32 %v1254, %v1332
    %v1435 = vadd.f32 %v1255, %v1352
    %v1436 = vadd.f32 %v1256, %v1372
    %v1437 = vadd.f32 %v1257, %v1392
    %v1438 = vadd.f32 %v1258, %v1412
    %v1439 = vadd.f32 %v1259, %v1432
    %1440 = vst [vmem:[#allocation1] ss:$2 sm:$0xff] %v30
    %s1441 = scalar_lea.vmem [#allocation1], 16
    %1442 = vst [vmem:[%s1441] ss:$2 sm:$0xff] %v31
    %s1443 = scalar_lea.vmem [#allocation1], 32
    %1444 = vst [vmem:[%s1443] ss:$2 sm:$0xff] %v32
    %v1445 = vld.sshfl [vmem:[#allocation1] sm:$0xff pattern:$0x75316420]
    %v1446 = vld.sshfl [vmem:[#allocation1 + $0x8] sm:$0xff pattern:$0x75316420]
    %v1447 = vld.sshfl [vmem:[#allocation1 + $0x10] sm:$0xff pattern:$0x75316420]
    %v1448 = vld.sshfl [vmem:[#allocation1 + $0x18] sm:$0xff pattern:$0x75316420]
    %v1449 = vld.sshfl [vmem:[#allocation1 + $0x20] sm:$0xff pattern:$0x75316420]
    %v1450 = vld.sshfl [vmem:[#allocation1 + $0x28] sm:$0xff pattern:$0x75316420]
    %1451 = vrot.lane.b32.xlu0 %v1445, 109
    %v1452 = vpop.permute.xlu0 %1451
    %1453 = vrot.lane.b32.xlu0 %v1446, 109
    %v1454 = vpop.permute.xlu0 %1453
    %1455 = vrot.lane.b32.xlu0 %v1447, 109
    %v1456 = vpop.permute.xlu0 %1455
    %1457 = vrot.lane.b32.xlu0 %v1448, 109
    %v1458 = vpop.permute.xlu0 %1457
    %1459 = vrot.lane.b32.xlu0 %v1449, 109
    %v1460 = vpop.permute.xlu0 %1459
    %1461 = vrot.lane.b32.xlu0 %v1450, 109
    %v1462 = vpop.permute.xlu0 %1461
    %vm1463 = vcmask 891904
    %v1464 = vsel %vm1463, %v1452, %v1454
    %v1465 = vsel %vm1463, %v1454, %v1456
    %v1466 = vsel %vm1463, %v1456, %v1458
    %v1467 = vsel %vm1463, %v1458, %v1460
    %v1468 = vsel %vm1463, %v1460, %v1462
    %1470 = vst [vmem:[#allocation1] ss:$2 sm:$0xff] %v30
    %v1471 = vld.sshfl [vmem:[#allocation1] sm:$0xff pattern:$0x75316420]
    %1472 = vrot.lane.b32.xlu0 %v1471, 109
    %v1473 = vpop.permute.xlu0 %1472
    %v1475 = vsel %vm1463, %v1462, %v1473
    %s1476 = scalar_lea.vmem %s1, 32
    %v1477 = vld [vmem:[%s1476] sm:$0xf]
    %v1479 = vsel %vm112, %v1477, 0
    %v1481 = vsel %vm116, %v1464, 0
    %v1483 = vsel %vm116, %v1465, 0
    %v1485 = vsel %vm116, %v1466, 0
    %v1487 = vsel %vm116, %v1467, 0
    %v1489 = vsel %vm116, %v1468, 0
    %v1492 = vsel %vm116, %v1475, 0
    %1494 = vmatpush.msra.mxu0 0.0
    %1495 = vmatpush.msra.mxu0 0.0
    %1496 = vmatpush.msra.mxu0 0.0
    %1497 = vmatpush.msra.mxu0 0.0
    %1498 = vmatpush.msra.mxu0 0.0
    %1499 = vmatpush.msra.mxu0 0.0
    %1500 = vmatpush.msra.mxu0 0.0
    %1501 = vmatpush.msra.mxu0 0.0
    %1502 = vmatpush.msra.mxu0 0.0
    %1503 = vmatpush.msra.mxu0 0.0
    %1504 = vmatpush.msra.mxu0 0.0
    %1505 = vmatpush.msra.mxu0 0.0
    %1506 = vmatpush.msra.mxu0 0.0
    %1507 = vmatpush.msra.mxu0 0.0
    %1508 = vmatpush.msra.mxu0 0.0
    %1509 = vmatpush.msra.mxu0 %v1481
    %1510 = vmatmul.f32.gmra.mxu0 %v1479
    %v1511 = vpop.f32.mrf.mxu0
    %v1512 = vadd.f32 0.0, %v1511
    %1513 = vdwg.mxu0
    %1514 = vmatpush.msra.mxu0 0.0
    %1515 = vmatpush.msra.mxu0 0.0
    %1516 = vmatpush.msra.mxu0 0.0
    %1517 = vmatpush.msra.mxu0 0.0
    %1518 = vmatpush.msra.mxu0 0.0
    %1519 = vmatpush.msra.mxu0 0.0
    %1520 = vmatpush.msra.mxu0 0.0
    %1521 = vmatpush.msra.mxu0 0.0
    %1522 = vmatpush.msra.mxu0 0.0
    %1523 = vmatpush.msra.mxu0 0.0
    %1524 = vmatpush.msra.mxu0 0.0
    %1525 = vmatpush.msra.mxu0 0.0
    %1526 = vmatpush.msra.mxu0 0.0
    %1527 = vmatpush.msra.mxu0 0.0
    %1528 = vmatpush.msra.mxu0 0.0
    %1529 = vmatpush.msra.mxu0 %v1483
    %1530 = vmatmul.f32.gmra.mxu0 %v1479
    %v1531 = vpop.f32.mrf.mxu0
    %v1532 = vadd.f32 0.0, %v1531
    %1533 = vdwg.mxu0
    %1534 = vmatpush.msra.mxu0 0.0
    %1535 = vmatpush.msra.mxu0 0.0
    %1536 = vmatpush.msra.mxu0 0.0
    %1537 = vmatpush.msra.mxu0 0.0
    %1538 = vmatpush.msra.mxu0 0.0
    %1539 = vmatpush.msra.mxu0 0.0
    %1540 = vmatpush.msra.mxu0 0.0
    %1541 = vmatpush.msra.mxu0 0.0
    %1542 = vmatpush.msra.mxu0 0.0
    %1543 = vmatpush.msra.mxu0 0.0
    %1544 = vmatpush.msra.mxu0 0.0
    %1545 = vmatpush.msra.mxu0 0.0
    %1546 = vmatpush.msra.mxu0 0.0
    %1547 = vmatpush.msra.mxu0 0.0
    %1548 = vmatpush.msra.mxu0 0.0
    %1549 = vmatpush.msra.mxu0 %v1485
    %1550 = vmatmul.f32.gmra.mxu0 %v1479
    %v1551 = vpop.f32.mrf.mxu0
    %v1552 = vadd.f32 0.0, %v1551
    %1553 = vdwg.mxu0
    %1554 = vmatpush.msra.mxu0 0.0
    %1555 = vmatpush.msra.mxu0 0.0
    %1556 = vmatpush.msra.mxu0 0.0
    %1557 = vmatpush.msra.mxu0 0.0
    %1558 = vmatpush.msra.mxu0 0.0
    %1559 = vmatpush.msra.mxu0 0.0
    %1560 = vmatpush.msra.mxu0 0.0
    %1561 = vmatpush.msra.mxu0 0.0
    %1562 = vmatpush.msra.mxu0 0.0
    %1563 = vmatpush.msra.mxu0 0.0
    %1564 = vmatpush.msra.mxu0 0.0
    %1565 = vmatpush.msra.mxu0 0.0
    %1566 = vmatpush.msra.mxu0 0.0
    %1567 = vmatpush.msra.mxu0 0.0
    %1568 = vmatpush.msra.mxu0 0.0
    %1569 = vmatpush.msra.mxu0 %v1487
    %1570 = vmatmul.f32.gmra.mxu0 %v1479
    %v1571 = vpop.f32.mrf.mxu0
    %v1572 = vadd.f32 0.0, %v1571
    %1573 = vdwg.mxu0
    %1574 = vmatpush.msra.mxu0 0.0
    %1575 = vmatpush.msra.mxu0 0.0
    %1576 = vmatpush.msra.mxu0 0.0
    %1577 = vmatpush.msra.mxu0 0.0
    %1578 = vmatpush.msra.mxu0 0.0
    %1579 = vmatpush.msra.mxu0 0.0
    %1580 = vmatpush.msra.mxu0 0.0
    %1581 = vmatpush.msra.mxu0 0.0
    %1582 = vmatpush.msra.mxu0 0.0
    %1583 = vmatpush.msra.mxu0 0.0
    %1584 = vmatpush.msra.mxu0 0.0
    %1585 = vmatpush.msra.mxu0 0.0
    %1586 = vmatpush.msra.mxu0 0.0
    %1587 = vmatpush.msra.mxu0 0.0
    %1588 = vmatpush.msra.mxu0 0.0
    %1589 = vmatpush.msra.mxu0 %v1489
    %1590 = vmatmul.f32.gmra.mxu0 %v1479
    %v1591 = vpop.f32.mrf.mxu0
    %v1592 = vadd.f32 0.0, %v1591
    %1593 = vdwg.mxu0
    %1594 = vmatpush.msra.mxu0 0.0
    %1595 = vmatpush.msra.mxu0 0.0
    %1596 = vmatpush.msra.mxu0 0.0
    %1597 = vmatpush.msra.mxu0 0.0
    %1598 = vmatpush.msra.mxu0 0.0
    %1599 = vmatpush.msra.mxu0 0.0
    %1600 = vmatpush.msra.mxu0 0.0
    %1601 = vmatpush.msra.mxu0 0.0
    %1602 = vmatpush.msra.mxu0 0.0
    %1603 = vmatpush.msra.mxu0 0.0
    %1604 = vmatpush.msra.mxu0 0.0
    %1605 = vmatpush.msra.mxu0 0.0
    %1606 = vmatpush.msra.mxu0 0.0
    %1607 = vmatpush.msra.mxu0 0.0
    %1608 = vmatpush.msra.mxu0 0.0
    %1609 = vmatpush.msra.mxu0 %v1492
    %1610 = vmatmul.f32.gmra.mxu0 %v1479
    %v1611 = vpop.f32.mrf.mxu0
    %v1612 = vadd.f32 0.0, %v1611
    %1613 = vdwg.mxu0
    %v1614 = vadd.f32 %v1434, %v1512
    %v1615 = vadd.f32 %v1435, %v1532
    %v1616 = vadd.f32 %v1436, %v1552
    %v1617 = vadd.f32 %v1437, %v1572
    %v1618 = vadd.f32 %v1438, %v1592
    %v1619 = vadd.f32 %v1439, %v1612
    %v1620 = vld [vmem:[%s3] sm:$0xf]
    %v1621 = vld [vmem:[%s4] sm:$0xf]
    %v1623 = vperm.slane %v33, 0
    %v1624 = vperm.slane %v33, 1
    %v1625 = vperm.slane %v33, 2
    %v1626 = vperm.slane %v33, 3
    %v1627 = vperm.slane %v33, 4
    %v1628 = vperm.slane %v33, 5
    %v1635 = vmul.f32 %v1614, %v1623
    %v1636 = vmul.f32 %v1615, %v1624
    %v1637 = vmul.f32 %v1616, %v1625
    %v1638 = vmul.f32 %v1617, %v1626
    %v1639 = vmul.f32 %v1618, %v1627
    %v1640 = vmul.f32 %v1619, %v1628
    %v1641 = vsel %vm116, %v1635, 0.0
    %v1642 = vsel %vm116, %v1636, 0.0
    %v1643 = vadd.f32 %v1641, %v1642
    %v1644 = vsel %vm116, %v1637, 0.0
    %v1645 = vadd.f32 %v1643, %v1644
    %v1646 = vsel %vm116, %v1638, 0.0
    %v1647 = vadd.f32 %v1645, %v1646
    %v1648 = vsel %vm116, %v1639, 0.0
    %v1649 = vadd.f32 %v1647, %v1648
    %v1650 = vsel %vm116, %v1640, 0.0
    %v1651 = vadd.f32 %v1649, %v1650
    %1652 = vadd.xlane.f32.xlu0 %v1651
    %v1653 = vpop.xlane.xlu0 %1652
    %v1654 = vmul.f32 %v1653, 0.001953125
    %v1655 = vmul.f32 %v1614, %v1614
    %v1656 = vmul.f32 %v1615, %v1615
    %v1657 = vmul.f32 %v1616, %v1616
    %v1658 = vmul.f32 %v1617, %v1617
    %v1659 = vmul.f32 %v1618, %v1618
    %v1660 = vmul.f32 %v1619, %v1619
    %v1661 = vmul.f32 %v1655, %v1623
    %v1662 = vmul.f32 %v1656, %v1624
    %v1663 = vmul.f32 %v1657, %v1625
    %v1664 = vmul.f32 %v1658, %v1626
    %v1665 = vmul.f32 %v1659, %v1627
    %v1666 = vmul.f32 %v1660, %v1628
    %v1667 = vsel %vm116, %v1661, 0.0
    %v1668 = vsel %vm116, %v1662, 0.0
    %v1669 = vadd.f32 %v1667, %v1668
    %v1670 = vsel %vm116, %v1663, 0.0
    %v1671 = vadd.f32 %v1669, %v1670
    %v1672 = vsel %vm116, %v1664, 0.0
    %v1673 = vadd.f32 %v1671, %v1672
    %v1674 = vsel %vm116, %v1665, 0.0
    %v1675 = vadd.f32 %v1673, %v1674
    %v1676 = vsel %vm116, %v1666, 0.0
    %v1677 = vadd.f32 %v1675, %v1676
    %1678 = vadd.xlane.f32.xlu0 %v1677
    %v1679 = vpop.xlane.xlu0 %1678
    %v1680 = vmul.f32 %v1679, 0.001953125
    %v1681 = vmul.f32 %v1654, %v1654
    %v1682 = vsub.f32 %v1680, %v1681
    %v1683 = vadd.f32 %v1682, 1e-05
    %v1684 = vrsqrt.pop %v1683
    %v1685 = vmul.f32 %v1684, %v1683
    %v1686 = vmul.f32 %v1685, %v1684
    %v1687 = vmul.f32 0.5, %v1686
    %v1688 = vsub.f32 1.5, %v1687
    %v1689 = vmul.f32 %v1684, %v1688
    %vm1690 = vweird.f32 %v1683
    %vm1691 = vweird.f32 %v1684
    %vm1692 = vmor %vm1690, %vm1691
    %v1693 = vsel %vm1692, %v1684, %v1689
    %v1694 = vmul.f32 %v1620, %v1693
    %v1695 = vsub.f32 %v1614, %v1654
    %v1696 = vsub.f32 %v1615, %v1654
    %v1697 = vsub.f32 %v1616, %v1654
    %v1698 = vsub.f32 %v1617, %v1654
    %v1699 = vsub.f32 %v1618, %v1654
    %v1700 = vsub.f32 %v1619, %v1654
    %1702 = vset.pattern.permute.xlu0 0
    %1703 = vperm.xlu0 %1702, %v1694
    %v1704 = vpop.permute.xlu0 %1703
    %v1706 = vmul.f32 %v1695, %v1704
    %v1707 = vmul.f32 %v1696, %v1704
    %v1708 = vmul.f32 %v1697, %v1704
    %v1709 = vmul.f32 %v1698, %v1704
    %v1710 = vmul.f32 %v1699, %v1704
    %v1711 = vmul.f32 %v1700, %v1704
    %1713 = vset.pattern.permute.xlu0 0
    %1714 = vperm.xlu0 %1713, %v1621
    %v1715 = vpop.permute.xlu0 %1714
    %v1717 = vadd.f32 %v1706, %v1715
    %v1718 = vadd.f32 %v1707, %v1715
    %v1719 = vadd.f32 %v1708, %v1715
    %v1720 = vadd.f32 %v1709, %v1715
    %v1721 = vadd.f32 %v1710, %v1715
    %v1722 = vadd.f32 %v1711, %v1715
    %v1723 = vmax.f32 %v1717, 0.0
    %v1724 = vmax.f32 %v1718, 0.0
    %v1725 = vmax.f32 %v1719, 0.0
    %v1726 = vmax.f32 %v1720, 0.0
    %v1727 = vmax.f32 %v1721, 0.0
    %v1728 = vmax.f32 %v1722, 0.0
    %v1729 = vmul.f32 %v1723, %v1623
    %v1730 = vmul.f32 %v1724, %v1624
    %v1731 = vmul.f32 %v1725, %v1625
    %v1732 = vmul.f32 %v1726, %v1626
    %v1733 = vmul.f32 %v1727, %v1627
    %v1734 = vmul.f32 %v1728, %v1628
    %1736 = vrot.lane.b32.xlu0 %v1734, 19
    %v1737 = vpop.permute.xlu0 %1736
    %1744 = vrot.lane.b32.xlu0 %v1729, 19
    %v1745 = vpop.permute.xlu0 %1744
    %1746 = vrot.lane.b32.xlu0 %v1730, 19
    %v1747 = vpop.permute.xlu0 %1746
    %1748 = vrot.lane.b32.xlu0 %v1731, 19
    %v1749 = vpop.permute.xlu0 %1748
    %1750 = vrot.lane.b32.xlu0 %v1732, 19
    %v1751 = vpop.permute.xlu0 %1750
    %1752 = vrot.lane.b32.xlu0 %v1733, 19
    %v1753 = vpop.permute.xlu0 %1752
    %v1754 = vsel %vm65, %v1745, %v1747
    %v1755 = vsel %vm65, %v1747, %v1749
    %v1756 = vsel %vm65, %v1749, %v1751
    %v1757 = vsel %vm65, %v1751, %v1753
    %v1758 = vsel %vm65, %v1753, %v1737
    %v1760 = vsel %vm65, %v1737, %v1745
    %v1761 = vld [vmem:[%s2] sm:$0xf]
    %1762 = vrot.lane.b32.xlu0 %v1734, 18
    %v1763 = vpop.permute.xlu0 %1762
    %1765 = vrot.lane.b32.xlu0 %v1729, 18
    %v1766 = vpop.permute.xlu0 %1765
    %1767 = vrot.lane.b32.xlu0 %v1730, 18
    %v1768 = vpop.permute.xlu0 %1767
    %1769 = vrot.lane.b32.xlu0 %v1731, 18
    %v1770 = vpop.permute.xlu0 %1769
    %1771 = vrot.lane.b32.xlu0 %v1732, 18
    %v1772 = vpop.permute.xlu0 %1771
    %1773 = vrot.lane.b32.xlu0 %v1733, 18
    %v1774 = vpop.permute.xlu0 %1773
    %v1775 = vsel %vm102, %v1766, %v1768
    %v1776 = vsel %vm102, %v1768, %v1770
    %v1777 = vsel %vm102, %v1770, %v1772
    %v1778 = vsel %vm102, %v1772, %v1774
    %v1779 = vsel %vm102, %v1774, %v1763
    %v1781 = vsel %vm102, %v1763, %v1766
    %s1782 = scalar_lea.vmem %s2, 4
    %v1783 = vld [vmem:[%s1782] sm:$0xf]
    %v1785 = vsel %vm112, %v1783, 0
    %v1788 = vsel %vm116, %v1781, 0
    %v1790 = vsel %vm116, %v1775, 0
    %v1792 = vsel %vm116, %v1776, 0
    %v1794 = vsel %vm116, %v1777, 0
    %v1796 = vsel %vm116, %v1778, 0
    %v1798 = vsel %vm116, %v1779, 0
    %1800 = vmatpush.msra.mxu0 0.0
    %1801 = vmatpush.msra.mxu0 0.0
    %1802 = vmatpush.msra.mxu0 0.0
    %1803 = vmatpush.msra.mxu0 0.0
    %1804 = vmatpush.msra.mxu0 0.0
    %1805 = vmatpush.msra.mxu0 0.0
    %1806 = vmatpush.msra.mxu0 0.0
    %1807 = vmatpush.msra.mxu0 0.0
    %1808 = vmatpush.msra.mxu0 0.0
    %1809 = vmatpush.msra.mxu0 0.0
    %1810 = vmatpush.msra.mxu0 0.0
    %1811 = vmatpush.msra.mxu0 0.0
    %1812 = vmatpush.msra.mxu0 0.0
    %1813 = vmatpush.msra.mxu0 0.0
    %1814 = vmatpush.msra.mxu0 0.0
    %1815 = vmatpush.msra.mxu0 %v1788
    %1816 = vmatmul.f32.gmra.mxu0 %v1785
    %v1817 = vpop.f32.mrf.mxu0
    %v1818 = vadd.f32 0.0, %v1817
    %1819 = vdwg.mxu0
    %1820 = vmatpush.msra.mxu0 0.0
    %1821 = vmatpush.msra.mxu0 0.0
    %1822 = vmatpush.msra.mxu0 0.0
    %1823 = vmatpush.msra.mxu0 0.0
    %1824 = vmatpush.msra.mxu0 0.0
    %1825 = vmatpush.msra.mxu0 0.0
    %1826 = vmatpush.msra.mxu0 0.0
    %1827 = vmatpush.msra.mxu0 0.0
    %1828 = vmatpush.msra.mxu0 0.0
    %1829 = vmatpush.msra.mxu0 0.0
    %1830 = vmatpush.msra.mxu0 0.0
    %1831 = vmatpush.msra.mxu0 0.0
    %1832 = vmatpush.msra.mxu0 0.0
    %1833 = vmatpush.msra.mxu0 0.0
    %1834 = vmatpush.msra.mxu0 0.0
    %1835 = vmatpush.msra.mxu0 %v1790
    %1836 = vmatmul.f32.gmra.mxu0 %v1785
    %v1837 = vpop.f32.mrf.mxu0
    %v1838 = vadd.f32 0.0, %v1837
    %1839 = vdwg.mxu0
    %1840 = vmatpush.msra.mxu0 0.0
    %1841 = vmatpush.msra.mxu0 0.0
    %1842 = vmatpush.msra.mxu0 0.0
    %1843 = vmatpush.msra.mxu0 0.0
    %1844 = vmatpush.msra.mxu0 0.0
    %1845 = vmatpush.msra.mxu0 0.0
    %1846 = vmatpush.msra.mxu0 0.0
    %1847 = vmatpush.msra.mxu0 0.0
    %1848 = vmatpush.msra.mxu0 0.0
    %1849 = vmatpush.msra.mxu0 0.0
    %1850 = vmatpush.msra.mxu0 0.0
    %1851 = vmatpush.msra.mxu0 0.0
    %1852 = vmatpush.msra.mxu0 0.0
    %1853 = vmatpush.msra.mxu0 0.0
    %1854 = vmatpush.msra.mxu0 0.0
    %1855 = vmatpush.msra.mxu0 %v1792
    %1856 = vmatmul.f32.gmra.mxu0 %v1785
    %v1857 = vpop.f32.mrf.mxu0
    %v1858 = vadd.f32 0.0, %v1857
    %1859 = vdwg.mxu0
    %1860 = vmatpush.msra.mxu0 0.0
    %1861 = vmatpush.msra.mxu0 0.0
    %1862 = vmatpush.msra.mxu0 0.0
    %1863 = vmatpush.msra.mxu0 0.0
    %1864 = vmatpush.msra.mxu0 0.0
    %1865 = vmatpush.msra.mxu0 0.0
    %1866 = vmatpush.msra.mxu0 0.0
    %1867 = vmatpush.msra.mxu0 0.0
    %1868 = vmatpush.msra.mxu0 0.0
    %1869 = vmatpush.msra.mxu0 0.0
    %1870 = vmatpush.msra.mxu0 0.0
    %1871 = vmatpush.msra.mxu0 0.0
    %1872 = vmatpush.msra.mxu0 0.0
    %1873 = vmatpush.msra.mxu0 0.0
    %1874 = vmatpush.msra.mxu0 0.0
    %1875 = vmatpush.msra.mxu0 %v1794
    %1876 = vmatmul.f32.gmra.mxu0 %v1785
    %v1877 = vpop.f32.mrf.mxu0
    %v1878 = vadd.f32 0.0, %v1877
    %1879 = vdwg.mxu0
    %1880 = vmatpush.msra.mxu0 0.0
    %1881 = vmatpush.msra.mxu0 0.0
    %1882 = vmatpush.msra.mxu0 0.0
    %1883 = vmatpush.msra.mxu0 0.0
    %1884 = vmatpush.msra.mxu0 0.0
    %1885 = vmatpush.msra.mxu0 0.0
    %1886 = vmatpush.msra.mxu0 0.0
    %1887 = vmatpush.msra.mxu0 0.0
    %1888 = vmatpush.msra.mxu0 0.0
    %1889 = vmatpush.msra.mxu0 0.0
    %1890 = vmatpush.msra.mxu0 0.0
    %1891 = vmatpush.msra.mxu0 0.0
    %1892 = vmatpush.msra.mxu0 0.0
    %1893 = vmatpush.msra.mxu0 0.0
    %1894 = vmatpush.msra.mxu0 0.0
    %1895 = vmatpush.msra.mxu0 %v1796
    %1896 = vmatmul.f32.gmra.mxu0 %v1785
    %v1897 = vpop.f32.mrf.mxu0
    %v1898 = vadd.f32 0.0, %v1897
    %1899 = vdwg.mxu0
    %1900 = vmatpush.msra.mxu0 0.0
    %1901 = vmatpush.msra.mxu0 0.0
    %1902 = vmatpush.msra.mxu0 0.0
    %1903 = vmatpush.msra.mxu0 0.0
    %1904 = vmatpush.msra.mxu0 0.0
    %1905 = vmatpush.msra.mxu0 0.0
    %1906 = vmatpush.msra.mxu0 0.0
    %1907 = vmatpush.msra.mxu0 0.0
    %1908 = vmatpush.msra.mxu0 0.0
    %1909 = vmatpush.msra.mxu0 0.0
    %1910 = vmatpush.msra.mxu0 0.0
    %1911 = vmatpush.msra.mxu0 0.0
    %1912 = vmatpush.msra.mxu0 0.0
    %1913 = vmatpush.msra.mxu0 0.0
    %1914 = vmatpush.msra.mxu0 0.0
    %1915 = vmatpush.msra.mxu0 %v1798
    %1916 = vmatmul.f32.gmra.mxu0 %v1785
    %v1917 = vpop.f32.mrf.mxu0
    %v1918 = vadd.f32 0.0, %v1917
    %1919 = vdwg.mxu0
    %v1921 = vsel %vm112, %v1761, 0
    %v1924 = vsel %vm116, %v1760, 0
    %v1926 = vsel %vm116, %v1754, 0
    %v1928 = vsel %vm116, %v1755, 0
    %v1930 = vsel %vm116, %v1756, 0
    %v1932 = vsel %vm116, %v1757, 0
    %v1934 = vsel %vm116, %v1758, 0
    %1936 = vmatpush.msra.mxu0 0.0
    %1937 = vmatpush.msra.mxu0 0.0
    %1938 = vmatpush.msra.mxu0 0.0
    %1939 = vmatpush.msra.mxu0 0.0
    %1940 = vmatpush.msra.mxu0 0.0
    %1941 = vmatpush.msra.mxu0 0.0
    %1942 = vmatpush.msra.mxu0 0.0
    %1943 = vmatpush.msra.mxu0 0.0
    %1944 = vmatpush.msra.mxu0 0.0
    %1945 = vmatpush.msra.mxu0 0.0
    %1946 = vmatpush.msra.mxu0 0.0
    %1947 = vmatpush.msra.mxu0 0.0
    %1948 = vmatpush.msra.mxu0 0.0
    %1949 = vmatpush.msra.mxu0 0.0
    %1950 = vmatpush.msra.mxu0 0.0
    %1951 = vmatpush.msra.mxu0 %v1924
    %1952 = vmatmul.f32.gmra.mxu0 %v1921
    %v1953 = vpop.f32.mrf.mxu0
    %v1954 = vadd.f32 %v1818, %v1953
    %1955 = vdwg.mxu0
    %1956 = vmatpush.msra.mxu0 0.0
    %1957 = vmatpush.msra.mxu0 0.0
    %1958 = vmatpush.msra.mxu0 0.0
    %1959 = vmatpush.msra.mxu0 0.0
    %1960 = vmatpush.msra.mxu0 0.0
    %1961 = vmatpush.msra.mxu0 0.0
    %1962 = vmatpush.msra.mxu0 0.0
    %1963 = vmatpush.msra.mxu0 0.0
    %1964 = vmatpush.msra.mxu0 0.0
    %1965 = vmatpush.msra.mxu0 0.0
    %1966 = vmatpush.msra.mxu0 0.0
    %1967 = vmatpush.msra.mxu0 0.0
    %1968 = vmatpush.msra.mxu0 0.0
    %1969 = vmatpush.msra.mxu0 0.0
    %1970 = vmatpush.msra.mxu0 0.0
    %1971 = vmatpush.msra.mxu0 %v1926
    %1972 = vmatmul.f32.gmra.mxu0 %v1921
    %v1973 = vpop.f32.mrf.mxu0
    %v1974 = vadd.f32 %v1838, %v1973
    %1975 = vdwg.mxu0
    %1976 = vmatpush.msra.mxu0 0.0
    %1977 = vmatpush.msra.mxu0 0.0
    %1978 = vmatpush.msra.mxu0 0.0
    %1979 = vmatpush.msra.mxu0 0.0
    %1980 = vmatpush.msra.mxu0 0.0
    %1981 = vmatpush.msra.mxu0 0.0
    %1982 = vmatpush.msra.mxu0 0.0
    %1983 = vmatpush.msra.mxu0 0.0
    %1984 = vmatpush.msra.mxu0 0.0
    %1985 = vmatpush.msra.mxu0 0.0
    %1986 = vmatpush.msra.mxu0 0.0
    %1987 = vmatpush.msra.mxu0 0.0
    %1988 = vmatpush.msra.mxu0 0.0
    %1989 = vmatpush.msra.mxu0 0.0
    %1990 = vmatpush.msra.mxu0 0.0
    %1991 = vmatpush.msra.mxu0 %v1928
    %1992 = vmatmul.f32.gmra.mxu0 %v1921
    %v1993 = vpop.f32.mrf.mxu0
    %v1994 = vadd.f32 %v1858, %v1993
    %1995 = vdwg.mxu0
    %1996 = vmatpush.msra.mxu0 0.0
    %1997 = vmatpush.msra.mxu0 0.0
    %1998 = vmatpush.msra.mxu0 0.0
    %1999 = vmatpush.msra.mxu0 0.0
    %2000 = vmatpush.msra.mxu0 0.0
    %2001 = vmatpush.msra.mxu0 0.0
    %2002 = vmatpush.msra.mxu0 0.0
    %2003 = vmatpush.msra.mxu0 0.0
    %2004 = vmatpush.msra.mxu0 0.0
    %2005 = vmatpush.msra.mxu0 0.0
    %2006 = vmatpush.msra.mxu0 0.0
    %2007 = vmatpush.msra.mxu0 0.0
    %2008 = vmatpush.msra.mxu0 0.0
    %2009 = vmatpush.msra.mxu0 0.0
    %2010 = vmatpush.msra.mxu0 0.0
    %2011 = vmatpush.msra.mxu0 %v1930
    %2012 = vmatmul.f32.gmra.mxu0 %v1921
    %v2013 = vpop.f32.mrf.mxu0
    %v2014 = vadd.f32 %v1878, %v2013
    %2015 = vdwg.mxu0
    %2016 = vmatpush.msra.mxu0 0.0
    %2017 = vmatpush.msra.mxu0 0.0
    %2018 = vmatpush.msra.mxu0 0.0
    %2019 = vmatpush.msra.mxu0 0.0
    %2020 = vmatpush.msra.mxu0 0.0
    %2021 = vmatpush.msra.mxu0 0.0
    %2022 = vmatpush.msra.mxu0 0.0
    %2023 = vmatpush.msra.mxu0 0.0
    %2024 = vmatpush.msra.mxu0 0.0
    %2025 = vmatpush.msra.mxu0 0.0
    %2026 = vmatpush.msra.mxu0 0.0
    %2027 = vmatpush.msra.mxu0 0.0
    %2028 = vmatpush.msra.mxu0 0.0
    %2029 = vmatpush.msra.mxu0 0.0
    %2030 = vmatpush.msra.mxu0 0.0
    %2031 = vmatpush.msra.mxu0 %v1932
    %2032 = vmatmul.f32.gmra.mxu0 %v1921
    %v2033 = vpop.f32.mrf.mxu0
    %v2034 = vadd.f32 %v1898, %v2033
    %2035 = vdwg.mxu0
    %2036 = vmatpush.msra.mxu0 0.0
    %2037 = vmatpush.msra.mxu0 0.0
    %2038 = vmatpush.msra.mxu0 0.0
    %2039 = vmatpush.msra.mxu0 0.0
    %2040 = vmatpush.msra.mxu0 0.0
    %2041 = vmatpush.msra.mxu0 0.0
    %2042 = vmatpush.msra.mxu0 0.0
    %2043 = vmatpush.msra.mxu0 0.0
    %2044 = vmatpush.msra.mxu0 0.0
    %2045 = vmatpush.msra.mxu0 0.0
    %2046 = vmatpush.msra.mxu0 0.0
    %2047 = vmatpush.msra.mxu0 0.0
    %2048 = vmatpush.msra.mxu0 0.0
    %2049 = vmatpush.msra.mxu0 0.0
    %2050 = vmatpush.msra.mxu0 0.0
    %2051 = vmatpush.msra.mxu0 %v1934
    %2052 = vmatmul.f32.gmra.mxu0 %v1921
    %v2053 = vpop.f32.mrf.mxu0
    %v2054 = vadd.f32 %v1918, %v2053
    %2055 = vdwg.mxu0
    %2056 = vrot.lane.b32.xlu0 %v1734, 17
    %v2057 = vpop.permute.xlu0 %2056
    %2059 = vrot.lane.b32.xlu0 %v1729, 17
    %v2060 = vpop.permute.xlu0 %2059
    %2061 = vrot.lane.b32.xlu0 %v1730, 17
    %v2062 = vpop.permute.xlu0 %2061
    %2063 = vrot.lane.b32.xlu0 %v1731, 17
    %v2064 = vpop.permute.xlu0 %2063
    %2065 = vrot.lane.b32.xlu0 %v1732, 17
    %v2066 = vpop.permute.xlu0 %2065
    %2067 = vrot.lane.b32.xlu0 %v1733, 17
    %v2068 = vpop.permute.xlu0 %2067
    %v2069 = vsel %vm414, %v2060, %v2062
    %v2070 = vsel %vm414, %v2062, %v2064
    %v2071 = vsel %vm414, %v2064, %v2066
    %v2072 = vsel %vm414, %v2066, %v2068
    %v2073 = vsel %vm414, %v2068, %v2057
    %v2075 = vsel %vm414, %v2057, %v2060
    %s2076 = scalar_lea.vmem %s2, 8
    %v2077 = vld [vmem:[%s2076] sm:$0xf]
    %v2079 = vsel %vm112, %v2077, 0
    %v2082 = vsel %vm116, %v2075, 0
    %v2084 = vsel %vm116, %v2069, 0
    %v2086 = vsel %vm116, %v2070, 0
    %v2088 = vsel %vm116, %v2071, 0
    %v2090 = vsel %vm116, %v2072, 0
    %v2092 = vsel %vm116, %v2073, 0
    %2094 = vmatpush.msra.mxu0 0.0
    %2095 = vmatpush.msra.mxu0 0.0
    %2096 = vmatpush.msra.mxu0 0.0
    %2097 = vmatpush.msra.mxu0 0.0
    %2098 = vmatpush.msra.mxu0 0.0
    %2099 = vmatpush.msra.mxu0 0.0
    %2100 = vmatpush.msra.mxu0 0.0
    %2101 = vmatpush.msra.mxu0 0.0
    %2102 = vmatpush.msra.mxu0 0.0
    %2103 = vmatpush.msra.mxu0 0.0
    %2104 = vmatpush.msra.mxu0 0.0
    %2105 = vmatpush.msra.mxu0 0.0
    %2106 = vmatpush.msra.mxu0 0.0
    %2107 = vmatpush.msra.mxu0 0.0
    %2108 = vmatpush.msra.mxu0 0.0
    %2109 = vmatpush.msra.mxu0 %v2082
    %2110 = vmatmul.f32.gmra.mxu0 %v2079
    %v2111 = vpop.f32.mrf.mxu0
    %v2112 = vadd.f32 0.0, %v2111
    %2113 = vdwg.mxu0
    %2114 = vmatpush.msra.mxu0 0.0
    %2115 = vmatpush.msra.mxu0 0.0
    %2116 = vmatpush.msra.mxu0 0.0
    %2117 = vmatpush.msra.mxu0 0.0
    %2118 = vmatpush.msra.mxu0 0.0
    %2119 = vmatpush.msra.mxu0 0.0
    %2120 = vmatpush.msra.mxu0 0.0
    %2121 = vmatpush.msra.mxu0 0.0
    %2122 = vmatpush.msra.mxu0 0.0
    %2123 = vmatpush.msra.mxu0 0.0
    %2124 = vmatpush.msra.mxu0 0.0
    %2125 = vmatpush.msra.mxu0 0.0
    %2126 = vmatpush.msra.mxu0 0.0
    %2127 = vmatpush.msra.mxu0 0.0
    %2128 = vmatpush.msra.mxu0 0.0
    %2129 = vmatpush.msra.mxu0 %v2084
    %2130 = vmatmul.f32.gmra.mxu0 %v2079
    %v2131 = vpop.f32.mrf.mxu0
    %v2132 = vadd.f32 0.0, %v2131
    %2133 = vdwg.mxu0
    %2134 = vmatpush.msra.mxu0 0.0
    %2135 = vmatpush.msra.mxu0 0.0
    %2136 = vmatpush.msra.mxu0 0.0
    %2137 = vmatpush.msra.mxu0 0.0
    %2138 = vmatpush.msra.mxu0 0.0
    %2139 = vmatpush.msra.mxu0 0.0
    %2140 = vmatpush.msra.mxu0 0.0
    %2141 = vmatpush.msra.mxu0 0.0
    %2142 = vmatpush.msra.mxu0 0.0
    %2143 = vmatpush.msra.mxu0 0.0
    %2144 = vmatpush.msra.mxu0 0.0
    %2145 = vmatpush.msra.mxu0 0.0
    %2146 = vmatpush.msra.mxu0 0.0
    %2147 = vmatpush.msra.mxu0 0.0
    %2148 = vmatpush.msra.mxu0 0.0
    %2149 = vmatpush.msra.mxu0 %v2086
    %2150 = vmatmul.f32.gmra.mxu0 %v2079
    %v2151 = vpop.f32.mrf.mxu0
    %v2152 = vadd.f32 0.0, %v2151
    %2153 = vdwg.mxu0
    %2154 = vmatpush.msra.mxu0 0.0
    %2155 = vmatpush.msra.mxu0 0.0
    %2156 = vmatpush.msra.mxu0 0.0
    %2157 = vmatpush.msra.mxu0 0.0
    %2158 = vmatpush.msra.mxu0 0.0
    %2159 = vmatpush.msra.mxu0 0.0
    %2160 = vmatpush.msra.mxu0 0.0
    %2161 = vmatpush.msra.mxu0 0.0
    %2162 = vmatpush.msra.mxu0 0.0
    %2163 = vmatpush.msra.mxu0 0.0
    %2164 = vmatpush.msra.mxu0 0.0
    %2165 = vmatpush.msra.mxu0 0.0
    %2166 = vmatpush.msra.mxu0 0.0
    %2167 = vmatpush.msra.mxu0 0.0
    %2168 = vmatpush.msra.mxu0 0.0
    %2169 = vmatpush.msra.mxu0 %v2088
    %2170 = vmatmul.f32.gmra.mxu0 %v2079
    %v2171 = vpop.f32.mrf.mxu0
    %v2172 = vadd.f32 0.0, %v2171
    %2173 = vdwg.mxu0
    %2174 = vmatpush.msra.mxu0 0.0
    %2175 = vmatpush.msra.mxu0 0.0
    %2176 = vmatpush.msra.mxu0 0.0
    %2177 = vmatpush.msra.mxu0 0.0
    %2178 = vmatpush.msra.mxu0 0.0
    %2179 = vmatpush.msra.mxu0 0.0
    %2180 = vmatpush.msra.mxu0 0.0
    %2181 = vmatpush.msra.mxu0 0.0
    %2182 = vmatpush.msra.mxu0 0.0
    %2183 = vmatpush.msra.mxu0 0.0
    %2184 = vmatpush.msra.mxu0 0.0
    %2185 = vmatpush.msra.mxu0 0.0
    %2186 = vmatpush.msra.mxu0 0.0
    %2187 = vmatpush.msra.mxu0 0.0
    %2188 = vmatpush.msra.mxu0 0.0
    %2189 = vmatpush.msra.mxu0 %v2090
    %2190 = vmatmul.f32.gmra.mxu0 %v2079
    %v2191 = vpop.f32.mrf.mxu0
    %v2192 = vadd.f32 0.0, %v2191
    %2193 = vdwg.mxu0
    %2194 = vmatpush.msra.mxu0 0.0
    %2195 = vmatpush.msra.mxu0 0.0
    %2196 = vmatpush.msra.mxu0 0.0
    %2197 = vmatpush.msra.mxu0 0.0
    %2198 = vmatpush.msra.mxu0 0.0
    %2199 = vmatpush.msra.mxu0 0.0
    %2200 = vmatpush.msra.mxu0 0.0
    %2201 = vmatpush.msra.mxu0 0.0
    %2202 = vmatpush.msra.mxu0 0.0
    %2203 = vmatpush.msra.mxu0 0.0
    %2204 = vmatpush.msra.mxu0 0.0
    %2205 = vmatpush.msra.mxu0 0.0
    %2206 = vmatpush.msra.mxu0 0.0
    %2207 = vmatpush.msra.mxu0 0.0
    %2208 = vmatpush.msra.mxu0 0.0
    %2209 = vmatpush.msra.mxu0 %v2092
    %2210 = vmatmul.f32.gmra.mxu0 %v2079
    %v2211 = vpop.f32.mrf.mxu0
    %v2212 = vadd.f32 0.0, %v2211
    %2213 = vdwg.mxu0
    %v2214 = vadd.f32 %v1954, %v2112
    %v2215 = vadd.f32 %v1974, %v2132
    %v2216 = vadd.f32 %v1994, %v2152
    %v2217 = vadd.f32 %v2014, %v2172
    %v2218 = vadd.f32 %v2034, %v2192
    %v2219 = vadd.f32 %v2054, %v2212
    %2220 = vrot.lane.b32.xlu0 %v1734, 1
    %v2221 = vpop.permute.xlu0 %2220
    %2223 = vrot.lane.b32.xlu0 %v1729, 1
    %v2224 = vpop.permute.xlu0 %2223
    %2225 = vrot.lane.b32.xlu0 %v1730, 1
    %v2226 = vpop.permute.xlu0 %2225
    %2227 = vrot.lane.b32.xlu0 %v1731, 1
    %v2228 = vpop.permute.xlu0 %2227
    %2229 = vrot.lane.b32.xlu0 %v1732, 1
    %v2230 = vpop.permute.xlu0 %2229
    %2231 = vrot.lane.b32.xlu0 %v1733, 1
    %v2232 = vpop.permute.xlu0 %2231
    %v2233 = vsel %vm594, %v2224, %v2226
    %v2234 = vsel %vm594, %v2226, %v2228
    %v2235 = vsel %vm594, %v2228, %v2230
    %v2236 = vsel %vm594, %v2230, %v2232
    %v2237 = vsel %vm594, %v2232, %v2221
    %v2239 = vsel %vm594, %v2221, %v2224
    %s2240 = scalar_lea.vmem %s2, 12
    %v2241 = vld [vmem:[%s2240] sm:$0xf]
    %v2243 = vsel %vm112, %v2241, 0
    %v2246 = vsel %vm116, %v2239, 0
    %v2248 = vsel %vm116, %v2233, 0
    %v2250 = vsel %vm116, %v2234, 0
    %v2252 = vsel %vm116, %v2235, 0
    %v2254 = vsel %vm116, %v2236, 0
    %v2256 = vsel %vm116, %v2237, 0
    %2258 = vmatpush.msra.mxu0 0.0
    %2259 = vmatpush.msra.mxu0 0.0
    %2260 = vmatpush.msra.mxu0 0.0
    %2261 = vmatpush.msra.mxu0 0.0
    %2262 = vmatpush.msra.mxu0 0.0
    %2263 = vmatpush.msra.mxu0 0.0
    %2264 = vmatpush.msra.mxu0 0.0
    %2265 = vmatpush.msra.mxu0 0.0
    %2266 = vmatpush.msra.mxu0 0.0
    %2267 = vmatpush.msra.mxu0 0.0
    %2268 = vmatpush.msra.mxu0 0.0
    %2269 = vmatpush.msra.mxu0 0.0
    %2270 = vmatpush.msra.mxu0 0.0
    %2271 = vmatpush.msra.mxu0 0.0
    %2272 = vmatpush.msra.mxu0 0.0
    %2273 = vmatpush.msra.mxu0 %v2246
    %2274 = vmatmul.f32.gmra.mxu0 %v2243
    %v2275 = vpop.f32.mrf.mxu0
    %v2276 = vadd.f32 0.0, %v2275
    %2277 = vdwg.mxu0
    %2278 = vmatpush.msra.mxu0 0.0
    %2279 = vmatpush.msra.mxu0 0.0
    %2280 = vmatpush.msra.mxu0 0.0
    %2281 = vmatpush.msra.mxu0 0.0
    %2282 = vmatpush.msra.mxu0 0.0
    %2283 = vmatpush.msra.mxu0 0.0
    %2284 = vmatpush.msra.mxu0 0.0
    %2285 = vmatpush.msra.mxu0 0.0
    %2286 = vmatpush.msra.mxu0 0.0
    %2287 = vmatpush.msra.mxu0 0.0
    %2288 = vmatpush.msra.mxu0 0.0
    %2289 = vmatpush.msra.mxu0 0.0
    %2290 = vmatpush.msra.mxu0 0.0
    %2291 = vmatpush.msra.mxu0 0.0
    %2292 = vmatpush.msra.mxu0 0.0
    %2293 = vmatpush.msra.mxu0 %v2248
    %2294 = vmatmul.f32.gmra.mxu0 %v2243
    %v2295 = vpop.f32.mrf.mxu0
    %v2296 = vadd.f32 0.0, %v2295
    %2297 = vdwg.mxu0
    %2298 = vmatpush.msra.mxu0 0.0
    %2299 = vmatpush.msra.mxu0 0.0
    %2300 = vmatpush.msra.mxu0 0.0
    %2301 = vmatpush.msra.mxu0 0.0
    %2302 = vmatpush.msra.mxu0 0.0
    %2303 = vmatpush.msra.mxu0 0.0
    %2304 = vmatpush.msra.mxu0 0.0
    %2305 = vmatpush.msra.mxu0 0.0
    %2306 = vmatpush.msra.mxu0 0.0
    %2307 = vmatpush.msra.mxu0 0.0
    %2308 = vmatpush.msra.mxu0 0.0
    %2309 = vmatpush.msra.mxu0 0.0
    %2310 = vmatpush.msra.mxu0 0.0
    %2311 = vmatpush.msra.mxu0 0.0
    %2312 = vmatpush.msra.mxu0 0.0
    %2313 = vmatpush.msra.mxu0 %v2250
    %2314 = vmatmul.f32.gmra.mxu0 %v2243
    %v2315 = vpop.f32.mrf.mxu0
    %v2316 = vadd.f32 0.0, %v2315
    %2317 = vdwg.mxu0
    %2318 = vmatpush.msra.mxu0 0.0
    %2319 = vmatpush.msra.mxu0 0.0
    %2320 = vmatpush.msra.mxu0 0.0
    %2321 = vmatpush.msra.mxu0 0.0
    %2322 = vmatpush.msra.mxu0 0.0
    %2323 = vmatpush.msra.mxu0 0.0
    %2324 = vmatpush.msra.mxu0 0.0
    %2325 = vmatpush.msra.mxu0 0.0
    %2326 = vmatpush.msra.mxu0 0.0
    %2327 = vmatpush.msra.mxu0 0.0
    %2328 = vmatpush.msra.mxu0 0.0
    %2329 = vmatpush.msra.mxu0 0.0
    %2330 = vmatpush.msra.mxu0 0.0
    %2331 = vmatpush.msra.mxu0 0.0
    %2332 = vmatpush.msra.mxu0 0.0
    %2333 = vmatpush.msra.mxu0 %v2252
    %2334 = vmatmul.f32.gmra.mxu0 %v2243
    %v2335 = vpop.f32.mrf.mxu0
    %v2336 = vadd.f32 0.0, %v2335
    %2337 = vdwg.mxu0
    %2338 = vmatpush.msra.mxu0 0.0
    %2339 = vmatpush.msra.mxu0 0.0
    %2340 = vmatpush.msra.mxu0 0.0
    %2341 = vmatpush.msra.mxu0 0.0
    %2342 = vmatpush.msra.mxu0 0.0
    %2343 = vmatpush.msra.mxu0 0.0
    %2344 = vmatpush.msra.mxu0 0.0
    %2345 = vmatpush.msra.mxu0 0.0
    %2346 = vmatpush.msra.mxu0 0.0
    %2347 = vmatpush.msra.mxu0 0.0
    %2348 = vmatpush.msra.mxu0 0.0
    %2349 = vmatpush.msra.mxu0 0.0
    %2350 = vmatpush.msra.mxu0 0.0
    %2351 = vmatpush.msra.mxu0 0.0
    %2352 = vmatpush.msra.mxu0 0.0
    %2353 = vmatpush.msra.mxu0 %v2254
    %2354 = vmatmul.f32.gmra.mxu0 %v2243
    %v2355 = vpop.f32.mrf.mxu0
    %v2356 = vadd.f32 0.0, %v2355
    %2357 = vdwg.mxu0
    %2358 = vmatpush.msra.mxu0 0.0
    %2359 = vmatpush.msra.mxu0 0.0
    %2360 = vmatpush.msra.mxu0 0.0
    %2361 = vmatpush.msra.mxu0 0.0
    %2362 = vmatpush.msra.mxu0 0.0
    %2363 = vmatpush.msra.mxu0 0.0
    %2364 = vmatpush.msra.mxu0 0.0
    %2365 = vmatpush.msra.mxu0 0.0
    %2366 = vmatpush.msra.mxu0 0.0
    %2367 = vmatpush.msra.mxu0 0.0
    %2368 = vmatpush.msra.mxu0 0.0
    %2369 = vmatpush.msra.mxu0 0.0
    %2370 = vmatpush.msra.mxu0 0.0
    %2371 = vmatpush.msra.mxu0 0.0
    %2372 = vmatpush.msra.mxu0 0.0
    %2373 = vmatpush.msra.mxu0 %v2256
    %2374 = vmatmul.f32.gmra.mxu0 %v2243
    %v2375 = vpop.f32.mrf.mxu0
    %v2376 = vadd.f32 0.0, %v2375
    %2377 = vdwg.mxu0
    %v2378 = vadd.f32 %v2214, %v2276
    %v2379 = vadd.f32 %v2215, %v2296
    %v2380 = vadd.f32 %v2216, %v2316
    %v2381 = vadd.f32 %v2217, %v2336
    %v2382 = vadd.f32 %v2218, %v2356
    %v2383 = vadd.f32 %v2219, %v2376
    %s2384 = scalar_lea.vmem %s2, 16
    %v2385 = vld [vmem:[%s2384] sm:$0xf]
    %v2387 = vsel %vm112, %v2385, 0
    %v2389 = vsel %vm116, %v1729, 0
    %v2391 = vsel %vm116, %v1730, 0
    %v2393 = vsel %vm116, %v1731, 0
    %v2395 = vsel %vm116, %v1732, 0
    %v2397 = vsel %vm116, %v1733, 0
    %v2399 = vsel %vm116, %v1734, 0
    %2401 = vmatpush.msra.mxu0 0.0
    %2402 = vmatpush.msra.mxu0 0.0
    %2403 = vmatpush.msra.mxu0 0.0
    %2404 = vmatpush.msra.mxu0 0.0
    %2405 = vmatpush.msra.mxu0 0.0
    %2406 = vmatpush.msra.mxu0 0.0
    %2407 = vmatpush.msra.mxu0 0.0
    %2408 = vmatpush.msra.mxu0 0.0
    %2409 = vmatpush.msra.mxu0 0.0
    %2410 = vmatpush.msra.mxu0 0.0
    %2411 = vmatpush.msra.mxu0 0.0
    %2412 = vmatpush.msra.mxu0 0.0
    %2413 = vmatpush.msra.mxu0 0.0
    %2414 = vmatpush.msra.mxu0 0.0
    %2415 = vmatpush.msra.mxu0 0.0
    %2416 = vmatpush.msra.mxu0 %v2389
    %2417 = vmatmul.f32.gmra.mxu0 %v2387
    %v2418 = vpop.f32.mrf.mxu0
    %v2419 = vadd.f32 0.0, %v2418
    %2420 = vdwg.mxu0
    %2421 = vmatpush.msra.mxu0 0.0
    %2422 = vmatpush.msra.mxu0 0.0
    %2423 = vmatpush.msra.mxu0 0.0
    %2424 = vmatpush.msra.mxu0 0.0
    %2425 = vmatpush.msra.mxu0 0.0
    %2426 = vmatpush.msra.mxu0 0.0
    %2427 = vmatpush.msra.mxu0 0.0
    %2428 = vmatpush.msra.mxu0 0.0
    %2429 = vmatpush.msra.mxu0 0.0
    %2430 = vmatpush.msra.mxu0 0.0
    %2431 = vmatpush.msra.mxu0 0.0
    %2432 = vmatpush.msra.mxu0 0.0
    %2433 = vmatpush.msra.mxu0 0.0
    %2434 = vmatpush.msra.mxu0 0.0
    %2435 = vmatpush.msra.mxu0 0.0
    %2436 = vmatpush.msra.mxu0 %v2391
    %2437 = vmatmul.f32.gmra.mxu0 %v2387
    %v2438 = vpop.f32.mrf.mxu0
    %v2439 = vadd.f32 0.0, %v2438
    %2440 = vdwg.mxu0
    %2441 = vmatpush.msra.mxu0 0.0
    %2442 = vmatpush.msra.mxu0 0.0
    %2443 = vmatpush.msra.mxu0 0.0
    %2444 = vmatpush.msra.mxu0 0.0
    %2445 = vmatpush.msra.mxu0 0.0
    %2446 = vmatpush.msra.mxu0 0.0
    %2447 = vmatpush.msra.mxu0 0.0
    %2448 = vmatpush.msra.mxu0 0.0
    %2449 = vmatpush.msra.mxu0 0.0
    %2450 = vmatpush.msra.mxu0 0.0
    %2451 = vmatpush.msra.mxu0 0.0
    %2452 = vmatpush.msra.mxu0 0.0
    %2453 = vmatpush.msra.mxu0 0.0
    %2454 = vmatpush.msra.mxu0 0.0
    %2455 = vmatpush.msra.mxu0 0.0
    %2456 = vmatpush.msra.mxu0 %v2393
    %2457 = vmatmul.f32.gmra.mxu0 %v2387
    %v2458 = vpop.f32.mrf.mxu0
    %v2459 = vadd.f32 0.0, %v2458
    %2460 = vdwg.mxu0
    %2461 = vmatpush.msra.mxu0 0.0
    %2462 = vmatpush.msra.mxu0 0.0
    %2463 = vmatpush.msra.mxu0 0.0
    %2464 = vmatpush.msra.mxu0 0.0
    %2465 = vmatpush.msra.mxu0 0.0
    %2466 = vmatpush.msra.mxu0 0.0
    %2467 = vmatpush.msra.mxu0 0.0
    %2468 = vmatpush.msra.mxu0 0.0
    %2469 = vmatpush.msra.mxu0 0.0
    %2470 = vmatpush.msra.mxu0 0.0
    %2471 = vmatpush.msra.mxu0 0.0
    %2472 = vmatpush.msra.mxu0 0.0
    %2473 = vmatpush.msra.mxu0 0.0
    %2474 = vmatpush.msra.mxu0 0.0
    %2475 = vmatpush.msra.mxu0 0.0
    %2476 = vmatpush.msra.mxu0 %v2395
    %2477 = vmatmul.f32.gmra.mxu0 %v2387
    %v2478 = vpop.f32.mrf.mxu0
    %v2479 = vadd.f32 0.0, %v2478
    %2480 = vdwg.mxu0
    %2481 = vmatpush.msra.mxu0 0.0
    %2482 = vmatpush.msra.mxu0 0.0
    %2483 = vmatpush.msra.mxu0 0.0
    %2484 = vmatpush.msra.mxu0 0.0
    %2485 = vmatpush.msra.mxu0 0.0
    %2486 = vmatpush.msra.mxu0 0.0
    %2487 = vmatpush.msra.mxu0 0.0
    %2488 = vmatpush.msra.mxu0 0.0
    %2489 = vmatpush.msra.mxu0 0.0
    %2490 = vmatpush.msra.mxu0 0.0
    %2491 = vmatpush.msra.mxu0 0.0
    %2492 = vmatpush.msra.mxu0 0.0
    %2493 = vmatpush.msra.mxu0 0.0
    %2494 = vmatpush.msra.mxu0 0.0
    %2495 = vmatpush.msra.mxu0 0.0
    %2496 = vmatpush.msra.mxu0 %v2397
    %2497 = vmatmul.f32.gmra.mxu0 %v2387
    %v2498 = vpop.f32.mrf.mxu0
    %v2499 = vadd.f32 0.0, %v2498
    %2500 = vdwg.mxu0
    %2501 = vmatpush.msra.mxu0 0.0
    %2502 = vmatpush.msra.mxu0 0.0
    %2503 = vmatpush.msra.mxu0 0.0
    %2504 = vmatpush.msra.mxu0 0.0
    %2505 = vmatpush.msra.mxu0 0.0
    %2506 = vmatpush.msra.mxu0 0.0
    %2507 = vmatpush.msra.mxu0 0.0
    %2508 = vmatpush.msra.mxu0 0.0
    %2509 = vmatpush.msra.mxu0 0.0
    %2510 = vmatpush.msra.mxu0 0.0
    %2511 = vmatpush.msra.mxu0 0.0
    %2512 = vmatpush.msra.mxu0 0.0
    %2513 = vmatpush.msra.mxu0 0.0
    %2514 = vmatpush.msra.mxu0 0.0
    %2515 = vmatpush.msra.mxu0 0.0
    %2516 = vmatpush.msra.mxu0 %v2399
    %2517 = vmatmul.f32.gmra.mxu0 %v2387
    %v2518 = vpop.f32.mrf.mxu0
    %v2519 = vadd.f32 0.0, %v2518
    %2520 = vdwg.mxu0
    %v2521 = vadd.f32 %v2378, %v2419
    %v2522 = vadd.f32 %v2379, %v2439
    %v2523 = vadd.f32 %v2380, %v2459
    %v2524 = vadd.f32 %v2381, %v2479
    %v2525 = vadd.f32 %v2382, %v2499
    %v2526 = vadd.f32 %v2383, %v2519
    %2527 = vrot.lane.b32.xlu0 %v1729, 127
    %v2528 = vpop.permute.xlu0 %2527
    %2529 = vrot.lane.b32.xlu0 %v1730, 127
    %v2530 = vpop.permute.xlu0 %2529
    %2531 = vrot.lane.b32.xlu0 %v1731, 127
    %v2532 = vpop.permute.xlu0 %2531
    %2533 = vrot.lane.b32.xlu0 %v1732, 127
    %v2534 = vpop.permute.xlu0 %2533
    %2535 = vrot.lane.b32.xlu0 %v1733, 127
    %v2536 = vpop.permute.xlu0 %2535
    %2537 = vrot.lane.b32.xlu0 %v1734, 127
    %v2538 = vpop.permute.xlu0 %2537
    %v2539 = vsel %vm923, %v2528, %v2530
    %v2540 = vsel %vm923, %v2530, %v2532
    %v2541 = vsel %vm923, %v2532, %v2534
    %v2542 = vsel %vm923, %v2534, %v2536
    %v2543 = vsel %vm923, %v2536, %v2538
    %v2546 = vsel %vm923, %v2538, %v2528
    %s2547 = scalar_lea.vmem %s2, 20
    %v2548 = vld [vmem:[%s2547] sm:$0xf]
    %v2550 = vsel %vm112, %v2548, 0
    %v2552 = vsel %vm116, %v2539, 0
    %v2554 = vsel %vm116, %v2540, 0
    %v2556 = vsel %vm116, %v2541, 0
    %v2558 = vsel %vm116, %v2542, 0
    %v2560 = vsel %vm116, %v2543, 0
    %v2563 = vsel %vm116, %v2546, 0
    %2565 = vmatpush.msra.mxu0 0.0
    %2566 = vmatpush.msra.mxu0 0.0
    %2567 = vmatpush.msra.mxu0 0.0
    %2568 = vmatpush.msra.mxu0 0.0
    %2569 = vmatpush.msra.mxu0 0.0
    %2570 = vmatpush.msra.mxu0 0.0
    %2571 = vmatpush.msra.mxu0 0.0
    %2572 = vmatpush.msra.mxu0 0.0
    %2573 = vmatpush.msra.mxu0 0.0
    %2574 = vmatpush.msra.mxu0 0.0
    %2575 = vmatpush.msra.mxu0 0.0
    %2576 = vmatpush.msra.mxu0 0.0
    %2577 = vmatpush.msra.mxu0 0.0
    %2578 = vmatpush.msra.mxu0 0.0
    %2579 = vmatpush.msra.mxu0 0.0
    %2580 = vmatpush.msra.mxu0 %v2552
    %2581 = vmatmul.f32.gmra.mxu0 %v2550
    %v2582 = vpop.f32.mrf.mxu0
    %v2583 = vadd.f32 0.0, %v2582
    %2584 = vdwg.mxu0
    %2585 = vmatpush.msra.mxu0 0.0
    %2586 = vmatpush.msra.mxu0 0.0
    %2587 = vmatpush.msra.mxu0 0.0
    %2588 = vmatpush.msra.mxu0 0.0
    %2589 = vmatpush.msra.mxu0 0.0
    %2590 = vmatpush.msra.mxu0 0.0
    %2591 = vmatpush.msra.mxu0 0.0
    %2592 = vmatpush.msra.mxu0 0.0
    %2593 = vmatpush.msra.mxu0 0.0
    %2594 = vmatpush.msra.mxu0 0.0
    %2595 = vmatpush.msra.mxu0 0.0
    %2596 = vmatpush.msra.mxu0 0.0
    %2597 = vmatpush.msra.mxu0 0.0
    %2598 = vmatpush.msra.mxu0 0.0
    %2599 = vmatpush.msra.mxu0 0.0
    %2600 = vmatpush.msra.mxu0 %v2554
    %2601 = vmatmul.f32.gmra.mxu0 %v2550
    %v2602 = vpop.f32.mrf.mxu0
    %v2603 = vadd.f32 0.0, %v2602
    %2604 = vdwg.mxu0
    %2605 = vmatpush.msra.mxu0 0.0
    %2606 = vmatpush.msra.mxu0 0.0
    %2607 = vmatpush.msra.mxu0 0.0
    %2608 = vmatpush.msra.mxu0 0.0
    %2609 = vmatpush.msra.mxu0 0.0
    %2610 = vmatpush.msra.mxu0 0.0
    %2611 = vmatpush.msra.mxu0 0.0
    %2612 = vmatpush.msra.mxu0 0.0
    %2613 = vmatpush.msra.mxu0 0.0
    %2614 = vmatpush.msra.mxu0 0.0
    %2615 = vmatpush.msra.mxu0 0.0
    %2616 = vmatpush.msra.mxu0 0.0
    %2617 = vmatpush.msra.mxu0 0.0
    %2618 = vmatpush.msra.mxu0 0.0
    %2619 = vmatpush.msra.mxu0 0.0
    %2620 = vmatpush.msra.mxu0 %v2556
    %2621 = vmatmul.f32.gmra.mxu0 %v2550
    %v2622 = vpop.f32.mrf.mxu0
    %v2623 = vadd.f32 0.0, %v2622
    %2624 = vdwg.mxu0
    %2625 = vmatpush.msra.mxu0 0.0
    %2626 = vmatpush.msra.mxu0 0.0
    %2627 = vmatpush.msra.mxu0 0.0
    %2628 = vmatpush.msra.mxu0 0.0
    %2629 = vmatpush.msra.mxu0 0.0
    %2630 = vmatpush.msra.mxu0 0.0
    %2631 = vmatpush.msra.mxu0 0.0
    %2632 = vmatpush.msra.mxu0 0.0
    %2633 = vmatpush.msra.mxu0 0.0
    %2634 = vmatpush.msra.mxu0 0.0
    %2635 = vmatpush.msra.mxu0 0.0
    %2636 = vmatpush.msra.mxu0 0.0
    %2637 = vmatpush.msra.mxu0 0.0
    %2638 = vmatpush.msra.mxu0 0.0
    %2639 = vmatpush.msra.mxu0 0.0
    %2640 = vmatpush.msra.mxu0 %v2558
    %2641 = vmatmul.f32.gmra.mxu0 %v2550
    %v2642 = vpop.f32.mrf.mxu0
    %v2643 = vadd.f32 0.0, %v2642
    %2644 = vdwg.mxu0
    %2645 = vmatpush.msra.mxu0 0.0
    %2646 = vmatpush.msra.mxu0 0.0
    %2647 = vmatpush.msra.mxu0 0.0
    %2648 = vmatpush.msra.mxu0 0.0
    %2649 = vmatpush.msra.mxu0 0.0
    %2650 = vmatpush.msra.mxu0 0.0
    %2651 = vmatpush.msra.mxu0 0.0
    %2652 = vmatpush.msra.mxu0 0.0
    %2653 = vmatpush.msra.mxu0 0.0
    %2654 = vmatpush.msra.mxu0 0.0
    %2655 = vmatpush.msra.mxu0 0.0
    %2656 = vmatpush.msra.mxu0 0.0
    %2657 = vmatpush.msra.mxu0 0.0
    %2658 = vmatpush.msra.mxu0 0.0
    %2659 = vmatpush.msra.mxu0 0.0
    %2660 = vmatpush.msra.mxu0 %v2560
    %2661 = vmatmul.f32.gmra.mxu0 %v2550
    %v2662 = vpop.f32.mrf.mxu0
    %v2663 = vadd.f32 0.0, %v2662
    %2664 = vdwg.mxu0
    %2665 = vmatpush.msra.mxu0 0.0
    %2666 = vmatpush.msra.mxu0 0.0
    %2667 = vmatpush.msra.mxu0 0.0
    %2668 = vmatpush.msra.mxu0 0.0
    %2669 = vmatpush.msra.mxu0 0.0
    %2670 = vmatpush.msra.mxu0 0.0
    %2671 = vmatpush.msra.mxu0 0.0
    %2672 = vmatpush.msra.mxu0 0.0
    %2673 = vmatpush.msra.mxu0 0.0
    %2674 = vmatpush.msra.mxu0 0.0
    %2675 = vmatpush.msra.mxu0 0.0
    %2676 = vmatpush.msra.mxu0 0.0
    %2677 = vmatpush.msra.mxu0 0.0
    %2678 = vmatpush.msra.mxu0 0.0
    %2679 = vmatpush.msra.mxu0 0.0
    %2680 = vmatpush.msra.mxu0 %v2563
    %2681 = vmatmul.f32.gmra.mxu0 %v2550
    %v2682 = vpop.f32.mrf.mxu0
    %v2683 = vadd.f32 0.0, %v2682
    %2684 = vdwg.mxu0
    %v2685 = vadd.f32 %v2521, %v2583
    %v2686 = vadd.f32 %v2522, %v2603
    %v2687 = vadd.f32 %v2523, %v2623
    %v2688 = vadd.f32 %v2524, %v2643
    %v2689 = vadd.f32 %v2525, %v2663
    %v2690 = vadd.f32 %v2526, %v2683
    %2691 = vrot.lane.b32.xlu0 %v1729, 111
    %v2692 = vpop.permute.xlu0 %2691
    %2693 = vrot.lane.b32.xlu0 %v1730, 111
    %v2694 = vpop.permute.xlu0 %2693
    %2695 = vrot.lane.b32.xlu0 %v1731, 111
    %v2696 = vpop.permute.xlu0 %2695
    %2697 = vrot.lane.b32.xlu0 %v1732, 111
    %v2698 = vpop.permute.xlu0 %2697
    %2699 = vrot.lane.b32.xlu0 %v1733, 111
    %v2700 = vpop.permute.xlu0 %2699
    %2701 = vrot.lane.b32.xlu0 %v1734, 111
    %v2702 = vpop.permute.xlu0 %2701
    %v2703 = vsel %vm1103, %v2692, %v2694
    %v2704 = vsel %vm1103, %v2694, %v2696
    %v2705 = vsel %vm1103, %v2696, %v2698
    %v2706 = vsel %vm1103, %v2698, %v2700
    %v2707 = vsel %vm1103, %v2700, %v2702
    %v2710 = vsel %vm1103, %v2702, %v2692
    %s2711 = scalar_lea.vmem %s2, 24
    %v2712 = vld [vmem:[%s2711] sm:$0xf]
    %v2714 = vsel %vm112, %v2712, 0
    %v2716 = vsel %vm116, %v2703, 0
    %v2718 = vsel %vm116, %v2704, 0
    %v2720 = vsel %vm116, %v2705, 0
    %v2722 = vsel %vm116, %v2706, 0
    %v2724 = vsel %vm116, %v2707, 0
    %v2727 = vsel %vm116, %v2710, 0
    %2729 = vmatpush.msra.mxu0 0.0
    %2730 = vmatpush.msra.mxu0 0.0
    %2731 = vmatpush.msra.mxu0 0.0
    %2732 = vmatpush.msra.mxu0 0.0
    %2733 = vmatpush.msra.mxu0 0.0
    %2734 = vmatpush.msra.mxu0 0.0
    %2735 = vmatpush.msra.mxu0 0.0
    %2736 = vmatpush.msra.mxu0 0.0
    %2737 = vmatpush.msra.mxu0 0.0
    %2738 = vmatpush.msra.mxu0 0.0
    %2739 = vmatpush.msra.mxu0 0.0
    %2740 = vmatpush.msra.mxu0 0.0
    %2741 = vmatpush.msra.mxu0 0.0
    %2742 = vmatpush.msra.mxu0 0.0
    %2743 = vmatpush.msra.mxu0 0.0
    %2744 = vmatpush.msra.mxu0 %v2716
    %2745 = vmatmul.f32.gmra.mxu0 %v2714
    %v2746 = vpop.f32.mrf.mxu0
    %v2747 = vadd.f32 0.0, %v2746
    %2748 = vdwg.mxu0
    %2749 = vmatpush.msra.mxu0 0.0
    %2750 = vmatpush.msra.mxu0 0.0
    %2751 = vmatpush.msra.mxu0 0.0
    %2752 = vmatpush.msra.mxu0 0.0
    %2753 = vmatpush.msra.mxu0 0.0
    %2754 = vmatpush.msra.mxu0 0.0
    %2755 = vmatpush.msra.mxu0 0.0
    %2756 = vmatpush.msra.mxu0 0.0
    %2757 = vmatpush.msra.mxu0 0.0
    %2758 = vmatpush.msra.mxu0 0.0
    %2759 = vmatpush.msra.mxu0 0.0
    %2760 = vmatpush.msra.mxu0 0.0
    %2761 = vmatpush.msra.mxu0 0.0
    %2762 = vmatpush.msra.mxu0 0.0
    %2763 = vmatpush.msra.mxu0 0.0
    %2764 = vmatpush.msra.mxu0 %v2718
    %2765 = vmatmul.f32.gmra.mxu0 %v2714
    %v2766 = vpop.f32.mrf.mxu0
    %v2767 = vadd.f32 0.0, %v2766
    %2768 = vdwg.mxu0
    %2769 = vmatpush.msra.mxu0 0.0
    %2770 = vmatpush.msra.mxu0 0.0
    %2771 = vmatpush.msra.mxu0 0.0
    %2772 = vmatpush.msra.mxu0 0.0
    %2773 = vmatpush.msra.mxu0 0.0
    %2774 = vmatpush.msra.mxu0 0.0
    %2775 = vmatpush.msra.mxu0 0.0
    %2776 = vmatpush.msra.mxu0 0.0
    %2777 = vmatpush.msra.mxu0 0.0
    %2778 = vmatpush.msra.mxu0 0.0
    %2779 = vmatpush.msra.mxu0 0.0
    %2780 = vmatpush.msra.mxu0 0.0
    %2781 = vmatpush.msra.mxu0 0.0
    %2782 = vmatpush.msra.mxu0 0.0
    %2783 = vmatpush.msra.mxu0 0.0
    %2784 = vmatpush.msra.mxu0 %v2720
    %2785 = vmatmul.f32.gmra.mxu0 %v2714
    %v2786 = vpop.f32.mrf.mxu0
    %v2787 = vadd.f32 0.0, %v2786
    %2788 = vdwg.mxu0
    %2789 = vmatpush.msra.mxu0 0.0
    %2790 = vmatpush.msra.mxu0 0.0
    %2791 = vmatpush.msra.mxu0 0.0
    %2792 = vmatpush.msra.mxu0 0.0
    %2793 = vmatpush.msra.mxu0 0.0
    %2794 = vmatpush.msra.mxu0 0.0
    %2795 = vmatpush.msra.mxu0 0.0
    %2796 = vmatpush.msra.mxu0 0.0
    %2797 = vmatpush.msra.mxu0 0.0
    %2798 = vmatpush.msra.mxu0 0.0
    %2799 = vmatpush.msra.mxu0 0.0
    %2800 = vmatpush.msra.mxu0 0.0
    %2801 = vmatpush.msra.mxu0 0.0
    %2802 = vmatpush.msra.mxu0 0.0
    %2803 = vmatpush.msra.mxu0 0.0
    %2804 = vmatpush.msra.mxu0 %v2722
    %2805 = vmatmul.f32.gmra.mxu0 %v2714
    %v2806 = vpop.f32.mrf.mxu0
    %v2807 = vadd.f32 0.0, %v2806
    %2808 = vdwg.mxu0
    %2809 = vmatpush.msra.mxu0 0.0
    %2810 = vmatpush.msra.mxu0 0.0
    %2811 = vmatpush.msra.mxu0 0.0
    %2812 = vmatpush.msra.mxu0 0.0
    %2813 = vmatpush.msra.mxu0 0.0
    %2814 = vmatpush.msra.mxu0 0.0
    %2815 = vmatpush.msra.mxu0 0.0
    %2816 = vmatpush.msra.mxu0 0.0
    %2817 = vmatpush.msra.mxu0 0.0
    %2818 = vmatpush.msra.mxu0 0.0
    %2819 = vmatpush.msra.mxu0 0.0
    %2820 = vmatpush.msra.mxu0 0.0
    %2821 = vmatpush.msra.mxu0 0.0
    %2822 = vmatpush.msra.mxu0 0.0
    %2823 = vmatpush.msra.mxu0 0.0
    %2824 = vmatpush.msra.mxu0 %v2724
    %2825 = vmatmul.f32.gmra.mxu0 %v2714
    %v2826 = vpop.f32.mrf.mxu0
    %v2827 = vadd.f32 0.0, %v2826
    %2828 = vdwg.mxu0
    %2829 = vmatpush.msra.mxu0 0.0
    %2830 = vmatpush.msra.mxu0 0.0
    %2831 = vmatpush.msra.mxu0 0.0
    %2832 = vmatpush.msra.mxu0 0.0
    %2833 = vmatpush.msra.mxu0 0.0
    %2834 = vmatpush.msra.mxu0 0.0
    %2835 = vmatpush.msra.mxu0 0.0
    %2836 = vmatpush.msra.mxu0 0.0
    %2837 = vmatpush.msra.mxu0 0.0
    %2838 = vmatpush.msra.mxu0 0.0
    %2839 = vmatpush.msra.mxu0 0.0
    %2840 = vmatpush.msra.mxu0 0.0
    %2841 = vmatpush.msra.mxu0 0.0
    %2842 = vmatpush.msra.mxu0 0.0
    %2843 = vmatpush.msra.mxu0 0.0
    %2844 = vmatpush.msra.mxu0 %v2727
    %2845 = vmatmul.f32.gmra.mxu0 %v2714
    %v2846 = vpop.f32.mrf.mxu0
    %v2847 = vadd.f32 0.0, %v2846
    %2848 = vdwg.mxu0
    %v2849 = vadd.f32 %v2685, %v2747
    %v2850 = vadd.f32 %v2686, %v2767
    %v2851 = vadd.f32 %v2687, %v2787
    %v2852 = vadd.f32 %v2688, %v2807
    %v2853 = vadd.f32 %v2689, %v2827
    %v2854 = vadd.f32 %v2690, %v2847
    %2855 = vrot.lane.b32.xlu0 %v1729, 110
    %v2856 = vpop.permute.xlu0 %2855
    %2857 = vrot.lane.b32.xlu0 %v1730, 110
    %v2858 = vpop.permute.xlu0 %2857
    %2859 = vrot.lane.b32.xlu0 %v1731, 110
    %v2860 = vpop.permute.xlu0 %2859
    %2861 = vrot.lane.b32.xlu0 %v1732, 110
    %v2862 = vpop.permute.xlu0 %2861
    %2863 = vrot.lane.b32.xlu0 %v1733, 110
    %v2864 = vpop.permute.xlu0 %2863
    %2865 = vrot.lane.b32.xlu0 %v1734, 110
    %v2866 = vpop.permute.xlu0 %2865
    %v2867 = vsel %vm1283, %v2856, %v2858
    %v2868 = vsel %vm1283, %v2858, %v2860
    %v2869 = vsel %vm1283, %v2860, %v2862
    %v2870 = vsel %vm1283, %v2862, %v2864
    %v2871 = vsel %vm1283, %v2864, %v2866
    %v2874 = vsel %vm1283, %v2866, %v2856
    %s2875 = scalar_lea.vmem %s2, 28
    %v2876 = vld [vmem:[%s2875] sm:$0xf]
    %v2878 = vsel %vm112, %v2876, 0
    %v2880 = vsel %vm116, %v2867, 0
    %v2882 = vsel %vm116, %v2868, 0
    %v2884 = vsel %vm116, %v2869, 0
    %v2886 = vsel %vm116, %v2870, 0
    %v2888 = vsel %vm116, %v2871, 0
    %v2891 = vsel %vm116, %v2874, 0
    %2893 = vmatpush.msra.mxu0 0.0
    %2894 = vmatpush.msra.mxu0 0.0
    %2895 = vmatpush.msra.mxu0 0.0
    %2896 = vmatpush.msra.mxu0 0.0
    %2897 = vmatpush.msra.mxu0 0.0
    %2898 = vmatpush.msra.mxu0 0.0
    %2899 = vmatpush.msra.mxu0 0.0
    %2900 = vmatpush.msra.mxu0 0.0
    %2901 = vmatpush.msra.mxu0 0.0
    %2902 = vmatpush.msra.mxu0 0.0
    %2903 = vmatpush.msra.mxu0 0.0
    %2904 = vmatpush.msra.mxu0 0.0
    %2905 = vmatpush.msra.mxu0 0.0
    %2906 = vmatpush.msra.mxu0 0.0
    %2907 = vmatpush.msra.mxu0 0.0
    %2908 = vmatpush.msra.mxu0 %v2880
    %2909 = vmatmul.f32.gmra.mxu0 %v2878
    %v2910 = vpop.f32.mrf.mxu0
    %v2911 = vadd.f32 0.0, %v2910
    %2912 = vdwg.mxu0
    %2913 = vmatpush.msra.mxu0 0.0
    %2914 = vmatpush.msra.mxu0 0.0
    %2915 = vmatpush.msra.mxu0 0.0
    %2916 = vmatpush.msra.mxu0 0.0
    %2917 = vmatpush.msra.mxu0 0.0
    %2918 = vmatpush.msra.mxu0 0.0
    %2919 = vmatpush.msra.mxu0 0.0
    %2920 = vmatpush.msra.mxu0 0.0
    %2921 = vmatpush.msra.mxu0 0.0
    %2922 = vmatpush.msra.mxu0 0.0
    %2923 = vmatpush.msra.mxu0 0.0
    %2924 = vmatpush.msra.mxu0 0.0
    %2925 = vmatpush.msra.mxu0 0.0
    %2926 = vmatpush.msra.mxu0 0.0
    %2927 = vmatpush.msra.mxu0 0.0
    %2928 = vmatpush.msra.mxu0 %v2882
    %2929 = vmatmul.f32.gmra.mxu0 %v2878
    %v2930 = vpop.f32.mrf.mxu0
    %v2931 = vadd.f32 0.0, %v2930
    %2932 = vdwg.mxu0
    %2933 = vmatpush.msra.mxu0 0.0
    %2934 = vmatpush.msra.mxu0 0.0
    %2935 = vmatpush.msra.mxu0 0.0
    %2936 = vmatpush.msra.mxu0 0.0
    %2937 = vmatpush.msra.mxu0 0.0
    %2938 = vmatpush.msra.mxu0 0.0
    %2939 = vmatpush.msra.mxu0 0.0
    %2940 = vmatpush.msra.mxu0 0.0
    %2941 = vmatpush.msra.mxu0 0.0
    %2942 = vmatpush.msra.mxu0 0.0
    %2943 = vmatpush.msra.mxu0 0.0
    %2944 = vmatpush.msra.mxu0 0.0
    %2945 = vmatpush.msra.mxu0 0.0
    %2946 = vmatpush.msra.mxu0 0.0
    %2947 = vmatpush.msra.mxu0 0.0
    %2948 = vmatpush.msra.mxu0 %v2884
    %2949 = vmatmul.f32.gmra.mxu0 %v2878
    %v2950 = vpop.f32.mrf.mxu0
    %v2951 = vadd.f32 0.0, %v2950
    %2952 = vdwg.mxu0
    %2953 = vmatpush.msra.mxu0 0.0
    %2954 = vmatpush.msra.mxu0 0.0
    %2955 = vmatpush.msra.mxu0 0.0
    %2956 = vmatpush.msra.mxu0 0.0
    %2957 = vmatpush.msra.mxu0 0.0
    %2958 = vmatpush.msra.mxu0 0.0
    %2959 = vmatpush.msra.mxu0 0.0
    %2960 = vmatpush.msra.mxu0 0.0
    %2961 = vmatpush.msra.mxu0 0.0
    %2962 = vmatpush.msra.mxu0 0.0
    %2963 = vmatpush.msra.mxu0 0.0
    %2964 = vmatpush.msra.mxu0 0.0
    %2965 = vmatpush.msra.mxu0 0.0
    %2966 = vmatpush.msra.mxu0 0.0
    %2967 = vmatpush.msra.mxu0 0.0
    %2968 = vmatpush.msra.mxu0 %v2886
    %2969 = vmatmul.f32.gmra.mxu0 %v2878
    %v2970 = vpop.f32.mrf.mxu0
    %v2971 = vadd.f32 0.0, %v2970
    %2972 = vdwg.mxu0
    %2973 = vmatpush.msra.mxu0 0.0
    %2974 = vmatpush.msra.mxu0 0.0
    %2975 = vmatpush.msra.mxu0 0.0
    %2976 = vmatpush.msra.mxu0 0.0
    %2977 = vmatpush.msra.mxu0 0.0
    %2978 = vmatpush.msra.mxu0 0.0
    %2979 = vmatpush.msra.mxu0 0.0
    %2980 = vmatpush.msra.mxu0 0.0
    %2981 = vmatpush.msra.mxu0 0.0
    %2982 = vmatpush.msra.mxu0 0.0
    %2983 = vmatpush.msra.mxu0 0.0
    %2984 = vmatpush.msra.mxu0 0.0
    %2985 = vmatpush.msra.mxu0 0.0
    %2986 = vmatpush.msra.mxu0 0.0
    %2987 = vmatpush.msra.mxu0 0.0
    %2988 = vmatpush.msra.mxu0 %v2888
    %2989 = vmatmul.f32.gmra.mxu0 %v2878
    %v2990 = vpop.f32.mrf.mxu0
    %v2991 = vadd.f32 0.0, %v2990
    %2992 = vdwg.mxu0
    %2993 = vmatpush.msra.mxu0 0.0
    %2994 = vmatpush.msra.mxu0 0.0
    %2995 = vmatpush.msra.mxu0 0.0
    %2996 = vmatpush.msra.mxu0 0.0
    %2997 = vmatpush.msra.mxu0 0.0
    %2998 = vmatpush.msra.mxu0 0.0
    %2999 = vmatpush.msra.mxu0 0.0
    %3000 = vmatpush.msra.mxu0 0.0
    %3001 = vmatpush.msra.mxu0 0.0
    %3002 = vmatpush.msra.mxu0 0.0
    %3003 = vmatpush.msra.mxu0 0.0
    %3004 = vmatpush.msra.mxu0 0.0
    %3005 = vmatpush.msra.mxu0 0.0
    %3006 = vmatpush.msra.mxu0 0.0
    %3007 = vmatpush.msra.mxu0 0.0
    %3008 = vmatpush.msra.mxu0 %v2891
    %3009 = vmatmul.f32.gmra.mxu0 %v2878
    %v3010 = vpop.f32.mrf.mxu0
    %v3011 = vadd.f32 0.0, %v3010
    %3012 = vdwg.mxu0
    %v3013 = vadd.f32 %v2849, %v2911
    %v3014 = vadd.f32 %v2850, %v2931
    %v3015 = vadd.f32 %v2851, %v2951
    %v3016 = vadd.f32 %v2852, %v2971
    %v3017 = vadd.f32 %v2853, %v2991
    %v3018 = vadd.f32 %v2854, %v3011
    %3019 = vrot.lane.b32.xlu0 %v1729, 109
    %v3020 = vpop.permute.xlu0 %3019
    %3021 = vrot.lane.b32.xlu0 %v1730, 109
    %v3022 = vpop.permute.xlu0 %3021
    %3023 = vrot.lane.b32.xlu0 %v1731, 109
    %v3024 = vpop.permute.xlu0 %3023
    %3025 = vrot.lane.b32.xlu0 %v1732, 109
    %v3026 = vpop.permute.xlu0 %3025
    %3027 = vrot.lane.b32.xlu0 %v1733, 109
    %v3028 = vpop.permute.xlu0 %3027
    %3029 = vrot.lane.b32.xlu0 %v1734, 109
    %v3030 = vpop.permute.xlu0 %3029
    %v3031 = vsel %vm1463, %v3020, %v3022
    %v3032 = vsel %vm1463, %v3022, %v3024
    %v3033 = vsel %vm1463, %v3024, %v3026
    %v3034 = vsel %vm1463, %v3026, %v3028
    %v3035 = vsel %vm1463, %v3028, %v3030
    %v3038 = vsel %vm1463, %v3030, %v3020
    %s3039 = scalar_lea.vmem %s2, 32
    %v3040 = vld [vmem:[%s3039] sm:$0xf]
    %v3042 = vsel %vm112, %v3040, 0
    %v3044 = vsel %vm116, %v3031, 0
    %v3046 = vsel %vm116, %v3032, 0
    %v3048 = vsel %vm116, %v3033, 0
    %v3050 = vsel %vm116, %v3034, 0
    %v3052 = vsel %vm116, %v3035, 0
    %v3055 = vsel %vm116, %v3038, 0
    %3057 = vmatpush.msra.mxu0 0.0
    %3058 = vmatpush.msra.mxu0 0.0
    %3059 = vmatpush.msra.mxu0 0.0
    %3060 = vmatpush.msra.mxu0 0.0
    %3061 = vmatpush.msra.mxu0 0.0
    %3062 = vmatpush.msra.mxu0 0.0
    %3063 = vmatpush.msra.mxu0 0.0
    %3064 = vmatpush.msra.mxu0 0.0
    %3065 = vmatpush.msra.mxu0 0.0
    %3066 = vmatpush.msra.mxu0 0.0
    %3067 = vmatpush.msra.mxu0 0.0
    %3068 = vmatpush.msra.mxu0 0.0
    %3069 = vmatpush.msra.mxu0 0.0
    %3070 = vmatpush.msra.mxu0 0.0
    %3071 = vmatpush.msra.mxu0 0.0
    %3072 = vmatpush.msra.mxu0 %v3044
    %3073 = vmatmul.f32.gmra.mxu0 %v3042
    %v3074 = vpop.f32.mrf.mxu0
    %v3075 = vadd.f32 0.0, %v3074
    %3076 = vdwg.mxu0
    %3077 = vmatpush.msra.mxu0 0.0
    %3078 = vmatpush.msra.mxu0 0.0
    %3079 = vmatpush.msra.mxu0 0.0
    %3080 = vmatpush.msra.mxu0 0.0
    %3081 = vmatpush.msra.mxu0 0.0
    %3082 = vmatpush.msra.mxu0 0.0
    %3083 = vmatpush.msra.mxu0 0.0
    %3084 = vmatpush.msra.mxu0 0.0
    %3085 = vmatpush.msra.mxu0 0.0
    %3086 = vmatpush.msra.mxu0 0.0
    %3087 = vmatpush.msra.mxu0 0.0
    %3088 = vmatpush.msra.mxu0 0.0
    %3089 = vmatpush.msra.mxu0 0.0
    %3090 = vmatpush.msra.mxu0 0.0
    %3091 = vmatpush.msra.mxu0 0.0
    %3092 = vmatpush.msra.mxu0 %v3046
    %3093 = vmatmul.f32.gmra.mxu0 %v3042
    %v3094 = vpop.f32.mrf.mxu0
    %v3095 = vadd.f32 0.0, %v3094
    %3096 = vdwg.mxu0
    %3097 = vmatpush.msra.mxu0 0.0
    %3098 = vmatpush.msra.mxu0 0.0
    %3099 = vmatpush.msra.mxu0 0.0
    %3100 = vmatpush.msra.mxu0 0.0
    %3101 = vmatpush.msra.mxu0 0.0
    %3102 = vmatpush.msra.mxu0 0.0
    %3103 = vmatpush.msra.mxu0 0.0
    %3104 = vmatpush.msra.mxu0 0.0
    %3105 = vmatpush.msra.mxu0 0.0
    %3106 = vmatpush.msra.mxu0 0.0
    %3107 = vmatpush.msra.mxu0 0.0
    %3108 = vmatpush.msra.mxu0 0.0
    %3109 = vmatpush.msra.mxu0 0.0
    %3110 = vmatpush.msra.mxu0 0.0
    %3111 = vmatpush.msra.mxu0 0.0
    %3112 = vmatpush.msra.mxu0 %v3048
    %3113 = vmatmul.f32.gmra.mxu0 %v3042
    %v3114 = vpop.f32.mrf.mxu0
    %v3115 = vadd.f32 0.0, %v3114
    %3116 = vdwg.mxu0
    %3117 = vmatpush.msra.mxu0 0.0
    %3118 = vmatpush.msra.mxu0 0.0
    %3119 = vmatpush.msra.mxu0 0.0
    %3120 = vmatpush.msra.mxu0 0.0
    %3121 = vmatpush.msra.mxu0 0.0
    %3122 = vmatpush.msra.mxu0 0.0
    %3123 = vmatpush.msra.mxu0 0.0
    %3124 = vmatpush.msra.mxu0 0.0
    %3125 = vmatpush.msra.mxu0 0.0
    %3126 = vmatpush.msra.mxu0 0.0
    %3127 = vmatpush.msra.mxu0 0.0
    %3128 = vmatpush.msra.mxu0 0.0
    %3129 = vmatpush.msra.mxu0 0.0
    %3130 = vmatpush.msra.mxu0 0.0
    %3131 = vmatpush.msra.mxu0 0.0
    %3132 = vmatpush.msra.mxu0 %v3050
    %3133 = vmatmul.f32.gmra.mxu0 %v3042
    %v3134 = vpop.f32.mrf.mxu0
    %v3135 = vadd.f32 0.0, %v3134
    %3136 = vdwg.mxu0
    %3137 = vmatpush.msra.mxu0 0.0
    %3138 = vmatpush.msra.mxu0 0.0
    %3139 = vmatpush.msra.mxu0 0.0
    %3140 = vmatpush.msra.mxu0 0.0
    %3141 = vmatpush.msra.mxu0 0.0
    %3142 = vmatpush.msra.mxu0 0.0
    %3143 = vmatpush.msra.mxu0 0.0
    %3144 = vmatpush.msra.mxu0 0.0
    %3145 = vmatpush.msra.mxu0 0.0
    %3146 = vmatpush.msra.mxu0 0.0
    %3147 = vmatpush.msra.mxu0 0.0
    %3148 = vmatpush.msra.mxu0 0.0
    %3149 = vmatpush.msra.mxu0 0.0
    %3150 = vmatpush.msra.mxu0 0.0
    %3151 = vmatpush.msra.mxu0 0.0
    %3152 = vmatpush.msra.mxu0 %v3052
    %3153 = vmatmul.f32.gmra.mxu0 %v3042
    %v3154 = vpop.f32.mrf.mxu0
    %v3155 = vadd.f32 0.0, %v3154
    %3156 = vdwg.mxu0
    %3157 = vmatpush.msra.mxu0 0.0
    %3158 = vmatpush.msra.mxu0 0.0
    %3159 = vmatpush.msra.mxu0 0.0
    %3160 = vmatpush.msra.mxu0 0.0
    %3161 = vmatpush.msra.mxu0 0.0
    %3162 = vmatpush.msra.mxu0 0.0
    %3163 = vmatpush.msra.mxu0 0.0
    %3164 = vmatpush.msra.mxu0 0.0
    %3165 = vmatpush.msra.mxu0 0.0
    %3166 = vmatpush.msra.mxu0 0.0
    %3167 = vmatpush.msra.mxu0 0.0
    %3168 = vmatpush.msra.mxu0 0.0
    %3169 = vmatpush.msra.mxu0 0.0
    %3170 = vmatpush.msra.mxu0 0.0
    %3171 = vmatpush.msra.mxu0 0.0
    %3172 = vmatpush.msra.mxu0 %v3055
    %3173 = vmatmul.f32.gmra.mxu0 %v3042
    %v3174 = vpop.f32.mrf.mxu0
    %v3175 = vadd.f32 0.0, %v3174
    %3176 = vdwg.mxu0
    %v3177 = vadd.f32 %v3013, %v3075
    %v3178 = vadd.f32 %v3014, %v3095
    %v3179 = vadd.f32 %v3015, %v3115
    %v3180 = vadd.f32 %v3016, %v3135
    %v3181 = vadd.f32 %v3017, %v3155
    %v3182 = vadd.f32 %v3018, %v3175
    %v3183 = vld [vmem:[%s5] sm:$0xf]
    %v3184 = vld [vmem:[%s6] sm:$0xf]
    %v3185 = vmul.f32 %v3177, %v1623
    %v3186 = vmul.f32 %v3178, %v1624
    %v3187 = vmul.f32 %v3179, %v1625
    %v3188 = vmul.f32 %v3180, %v1626
    %v3189 = vmul.f32 %v3181, %v1627
    %v3190 = vmul.f32 %v3182, %v1628
    %v3191 = vsel %vm116, %v3185, 0.0
    %v3192 = vsel %vm116, %v3186, 0.0
    %v3193 = vadd.f32 %v3191, %v3192
    %v3194 = vsel %vm116, %v3187, 0.0
    %v3195 = vadd.f32 %v3193, %v3194
    %v3196 = vsel %vm116, %v3188, 0.0
    %v3197 = vadd.f32 %v3195, %v3196
    %v3198 = vsel %vm116, %v3189, 0.0
    %v3199 = vadd.f32 %v3197, %v3198
    %v3200 = vsel %vm116, %v3190, 0.0
    %v3201 = vadd.f32 %v3199, %v3200
    %3202 = vadd.xlane.f32.xlu0 %v3201
    %v3203 = vpop.xlane.xlu0 %3202
    %v3204 = vmul.f32 %v3203, 0.001953125
    %v3205 = vmul.f32 %v3177, %v3177
    %v3206 = vmul.f32 %v3178, %v3178
    %v3207 = vmul.f32 %v3179, %v3179
    %v3208 = vmul.f32 %v3180, %v3180
    %v3209 = vmul.f32 %v3181, %v3181
    %v3210 = vmul.f32 %v3182, %v3182
    %v3211 = vmul.f32 %v3205, %v1623
    %v3212 = vmul.f32 %v3206, %v1624
    %v3213 = vmul.f32 %v3207, %v1625
    %v3214 = vmul.f32 %v3208, %v1626
    %v3215 = vmul.f32 %v3209, %v1627
    %v3216 = vmul.f32 %v3210, %v1628
    %v3217 = vsel %vm116, %v3211, 0.0
    %v3218 = vsel %vm116, %v3212, 0.0
    %v3219 = vadd.f32 %v3217, %v3218
    %v3220 = vsel %vm116, %v3213, 0.0
    %v3221 = vadd.f32 %v3219, %v3220
    %v3222 = vsel %vm116, %v3214, 0.0
    %v3223 = vadd.f32 %v3221, %v3222
    %v3224 = vsel %vm116, %v3215, 0.0
    %v3225 = vadd.f32 %v3223, %v3224
    %v3226 = vsel %vm116, %v3216, 0.0
    %v3227 = vadd.f32 %v3225, %v3226
    %3228 = vadd.xlane.f32.xlu0 %v3227
    %v3229 = vpop.xlane.xlu0 %3228
    %v3230 = vmul.f32 %v3229, 0.001953125
    %v3231 = vmul.f32 %v3204, %v3204
    %v3232 = vsub.f32 %v3230, %v3231
    %v3233 = vadd.f32 %v3232, 1e-05
    %v3234 = vrsqrt.pop %v3233
    %v3235 = vmul.f32 %v3234, %v3233
    %v3236 = vmul.f32 %v3235, %v3234
    %v3237 = vmul.f32 0.5, %v3236
    %v3238 = vsub.f32 1.5, %v3237
    %v3239 = vmul.f32 %v3234, %v3238
    %vm3240 = vweird.f32 %v3233
    %vm3241 = vweird.f32 %v3234
    %vm3242 = vmor %vm3240, %vm3241
    %v3243 = vsel %vm3242, %v3234, %v3239
    %v3244 = vmul.f32 %v3183, %v3243
    %v3245 = vsub.f32 %v3177, %v3204
    %v3246 = vsub.f32 %v3178, %v3204
    %v3247 = vsub.f32 %v3179, %v3204
    %v3248 = vsub.f32 %v3180, %v3204
    %v3249 = vsub.f32 %v3181, %v3204
    %v3250 = vsub.f32 %v3182, %v3204
    %3252 = vset.pattern.permute.xlu0 0
    %3253 = vperm.xlu0 %3252, %v3244
    %v3254 = vpop.permute.xlu0 %3253
    %v3256 = vmul.f32 %v3245, %v3254
    %v3257 = vmul.f32 %v3246, %v3254
    %v3258 = vmul.f32 %v3247, %v3254
    %v3259 = vmul.f32 %v3248, %v3254
    %v3260 = vmul.f32 %v3249, %v3254
    %v3261 = vmul.f32 %v3250, %v3254
    %3263 = vset.pattern.permute.xlu0 0
    %3264 = vperm.xlu0 %3263, %v3184
    %v3265 = vpop.permute.xlu0 %3264
    %v3267 = vadd.f32 %v3256, %v3265
    %v3268 = vadd.f32 %v3257, %v3265
    %v3269 = vadd.f32 %v3258, %v3265
    %v3270 = vadd.f32 %v3259, %v3265
    %v3271 = vadd.f32 %v3260, %v3265
    %v3272 = vadd.f32 %v3261, %v3265
    %3273 = vst [vmem:[#allocation1] ss:$2 sm:$0xff] %v30
    %s3274 = scalar_lea.vmem [#allocation1], 16
    %3275 = vst [vmem:[%s3274] ss:$2 sm:$0xff] %v31
    %s3276 = scalar_lea.vmem [#allocation1], 32
    %3277 = vst [vmem:[%s3276] ss:$2 sm:$0xff] %v32
    %v3278 = vld.sshfl [vmem:[#allocation1] sm:$0xff pattern:$0x75316420]
    %v3279 = vld.sshfl [vmem:[#allocation1 + $0x8] sm:$0xff pattern:$0x75316420]
    %v3280 = vld.sshfl [vmem:[#allocation1 + $0x10] sm:$0xff pattern:$0x75316420]
    %v3281 = vld.sshfl [vmem:[#allocation1 + $0x18] sm:$0xff pattern:$0x75316420]
    %v3282 = vld.sshfl [vmem:[#allocation1 + $0x20] sm:$0xff pattern:$0x75316420]
    %v3283 = vld.sshfl [vmem:[#allocation1 + $0x28] sm:$0xff pattern:$0x75316420]
    %v3290 = vadd.f32 %v3267, %v3278
    %v3291 = vadd.f32 %v3268, %v3279
    %v3292 = vadd.f32 %v3269, %v3280
    %v3293 = vadd.f32 %v3270, %v3281
    %v3294 = vadd.f32 %v3271, %v3282
    %v3295 = vadd.f32 %v3272, %v3283
    %v3296 = vmax.f32 %v3290, 0.0
    %v3297 = vmax.f32 %v3291, 0.0
    %v3298 = vmax.f32 %v3292, 0.0
    %v3299 = vmax.f32 %v3293, 0.0
    %v3300 = vmax.f32 %v3294, 0.0
    %v3301 = vmax.f32 %v3295, 0.0
    %v3308 = vrot.slane %v3297, 4
    %v3309 = vrot.slane %v3299, 4
    %v3310 = vrot.slane %v3301, 4
    %v3311 = vsel %vm116, %v3296, %v3308
    %v3312 = vsel %vm116, %v3298, %v3309
    %v3313 = vsel %vm116, %v3300, %v3310
    %3317 = vst [vmem:[#allocation2] sm:$0xff] %v3311
    %3318 = vst [vmem:[#allocation2 + $0x8] sm:$0xff] %v3312
    %3319 = vst [vmem:[#allocation2 + $0x10] sm:$0xff] %v3313
    // Predicated region
    $region34: #{tpu_custom_call.1} parent=1 // pred_check
      _
    $region35: #{tpu_custom_call.1} parent=1 // pred_check_branch
      %3321 = sbr.rel (0) target = $region37
    $region36: #{tpu_custom_call.1} parent=1 // pred_region
      %3323 = vsyncadd [#allocation3], 0
      %s3325 = sshll.u32 [#allocation2], 4
      %s3326 = int_to_ptr.vmem [resolvable:$true] %s3325
      %s3327 = sshll.u32 %s8, 4
      %s3328 = int_to_ptr.hbm [resolvable:$true] %s3327
      %3330 = dma.vmem_to_hbm [thread:$0]  %s3326, 384, %s3328, [#allocation3]
    $region37: #{tpu_custom_call.1} parent=1 // pred_fallthru
      _
    // Predicated region
    $region38: #{tpu_custom_call.1} parent=1 // pred_check
      _
    $region39: #{tpu_custom_call.1} parent=1 // pred_check_branch
      %3332 = sbr.rel (0) target = $region41
    $region40: #{tpu_custom_call.1} parent=1 // pred_region
      %3334 = dma.done [#allocation3], 384
    $region41: #{tpu_custom_call.1} parent=1 // pred_fallthru
      _
    %3335 = vsyncpa [#allocation3], 1

</llo_original>
